<compile_context>
chip_gen: v6e
topology: v6e:2x2x1
jax: 0.10.0
libtpu: 0.0.40
codegen_flags: <defaults>
</compile_context>

<pallas_src>
import jax
import jax.numpy as jnp
from jax.experimental import pallas as pl
from jax.experimental.pallas import tpu as pltpu

HW = 16           # input spatial size (hard-coded by the reconstruction)
HO = HW // 2      # conv output spatial (8)
COUT = 32
KPAD = 32         # im2col K (27) zero-padded to 32
FEAT = 16 * COUT  # 512 lanes per view: pooled-spatial (4x4) x channels (32)


# -----------------------------------------------------------------------------
# Fused kernel: conv (block-diag matmul) + ReLU + 2x2 avg-pool + view concat +
#               fc1 + ReLU + (dropout = identity in eval) + fc2
# -----------------------------------------------------------------------------
def make_fused_kernel(tb):
    def fused_kernel(patch_ref, wbd_ref, bc_ref, w1_ref, b1_ref, w2_ref, b2_ref,
                     out_ref):
        # patch_ref: (8*tb, 512)   rows = (pin, view, sample), lane = sp*32 + k
        # wbd_ref:   (512, 512)    kron(I_16, conv_w[k, c])
        # bc_ref:    (1, 512)      conv bias tiled over the 16 pooled positions
        # w1_ref:    (1024, 1024)  fc1 weight, rows permuted to kernel feature order
        # b1_ref:    (1, 1024)
        # w2_ref:    (1024, NCP)   fc2 weight, output padded to multiple of 128
        # b2_ref:    (1, NCP)
        # out_ref:   (tb, NCP)
        patches = patch_ref[...]                                     # (8*tb, 512)

        # conv1 + ReLU: a single lane-dense MXU matmul.
        y = jnp.dot(patches, wbd_ref[...], preferred_element_type=jnp.float32)
        y = jnp.maximum(y + bc_ref[...], 0.0)                        # (8*tb, 512)

        # AdaptiveAvgPool2d((4,4)) on the 8x8 map == mean over the 4 in-window
        # positions (pin); rows are pin-major, so this is 3 contiguous,
        # sublane-aligned VPU adds.
        q = 2 * tb
        pooled = 0.25 * (y[0 * q:1 * q] + y[1 * q:2 * q]
                         + y[2 * q:3 * q] + y[3 * q:4 * q])          # (2*tb, 512)

        # cat(view_1, view_2) @ W1  ==  view_1 @ W1[:512] + view_2 @ W1[512:]
        w1 = w1_ref[...]
        h = (jnp.dot(pooled[:tb], w1[:FEAT], preferred_element_type=jnp.float32)
             + jnp.dot(pooled[tb:], w1[FEAT:], preferred_element_type=jnp.float32)
             + b1_ref[...])
        h = jnp.maximum(h, 0.0)                                      # ReLU(fc1)
        # dropout(p=0.5) is the identity in eval mode.

        out_ref[...] = (jnp.dot(h, w2_ref[...],
                                preferred_element_type=jnp.float32)
                        + b2_ref[...])
    return fused_kernel


def fused_forward(patches, w_bd, b_conv, w1, b1, w2, b2, tb):
    nb = patches.shape[0] // (8 * tb)
    ncp = w2.shape[1]
    return pl.pallas_call(
        make_fused_kernel(tb),
        out_shape=jax.ShapeDtypeStruct((nb * tb, ncp), jnp.float32),
        grid=(nb,),
        in_specs=[
            pl.BlockSpec((8 * tb, FEAT), lambda b: (b, 0)),         # patches
            pl.BlockSpec((FEAT, FEAT), lambda b: (0, 0)),           # conv block-diag
            pl.BlockSpec((1, FEAT), lambda b: (0, 0)),              # conv bias (tiled)
            pl.BlockSpec((2 * FEAT, 2 * FEAT), lambda b: (0, 0)),   # fc1 weight
            pl.BlockSpec((1, 2 * FEAT), lambda b: (0, 0)),          # fc1 bias
            pl.BlockSpec((2 * FEAT, ncp), lambda b: (0, 0)),        # fc2 weight (padded)
            pl.BlockSpec((1, ncp), lambda b: (0, 0)),               # fc2 bias (padded)
        ],
        out_specs=pl.BlockSpec((tb, ncp), lambda b: (b, 0)),
        compiler_params=pltpu.CompilerParams(
            dimension_semantics=("parallel",),
            vmem_limit_bytes=32 * 1024 * 1024),
    )(patches, w_bd, b_conv, w1, b1, w2, b2)


# -----------------------------------------------------------------------------
# Host-side layout plumbing (plain JAX): im2col + weight permutations.
# -----------------------------------------------------------------------------
def im2col_pinrows(x_nchw):
    """[N,3,16,16] -> [4, N, 512]: rows = pin (=hin*2+win), lane = sp*32 + k
    with sp = ph*4 + pw (pooled 4x4 position) and k = ci*9 + kh*3 + kw (27 -> 32)."""
    n = x_nchw.shape[0]
    xp = jnp.pad(x_nchw, ((0, 0), (0, 0), (1, 1), (1, 1)))
    cols = []
    for kh in range(3):
        for kw in range(3):
            cols.append(xp[:, :, kh:kh + 2 * HO:2, kw:kw + 2 * HO:2])  # (N,3,8,8)
    p = jnp.stack(cols, axis=2)                      # (N, 3, 9, 8, 8)
    p = p.reshape(n, 27, HO, HO)                     # k = ci*9 + kh*3 + kw
    p = p.reshape(n, 27, 4, 2, 4, 2)                 # (n, k, ph, hin, pw, win)
    p = jnp.transpose(p, (3, 5, 0, 2, 4, 1))         # (hin, win, n, ph, pw, k)
    p = p.reshape(4, n, 16, 27)                      # (pin, n, sp, k)
    p = jnp.pad(p, ((0, 0), (0, 0), (0, 0), (0, KPAD - 27)))
    return p.reshape(4, n, FEAT)                     # lane = sp*32 + k


def _pick_tb(n):
    """Batch tile: >=8, multiple of 8, capped at 64 (keeps per-step VMEM modest
    while giving the fc matmuls a reasonable M when the batch is large)."""
    return int(min(64, ((n + 7) // 8) * 8))


@jax.jit
def multiview_forward(view1, view2, params):
    n = view1.shape[0]
    n_classe = params["fc2_w"].shape[0]
    ncp = ((n_classe + 127) // 128) * 128            # lane-dense fc2 output
    tb = _pick_tb(n)
    n_pad = ((n + tb - 1) // tb) * tb
    nb = n_pad // tb

    # im2col patches, laid out so the kernel needs zero reshapes/transposes.
    p1 = im2col_pinrows(view1)
    p2 = im2col_pinrows(view2)
    pv = jnp.stack([p1, p2], axis=1)                 # (4, 2, n, 512)
    if n_pad > n:
        pv = jnp.pad(pv, ((0, 0), (0, 0), (0, n_pad - n), (0, 0)))
    pv = pv.reshape(4, 2, nb, tb, FEAT)
    patches = jnp.transpose(pv, (2, 0, 1, 3, 4)).reshape(nb * 8 * tb, FEAT)

    # conv weight [32,3,3,3] -> [27,32] -> pad K to 32 -> block-diag over the 16
    # pooled positions so the conv output lanes are (sp*32 + c).
    w_kc = jnp.pad(params["conv_w"].reshape(COUT, 27).T, ((0, KPAD - 27), (0, 0)))
    w_bd = jnp.kron(jnp.eye(16, dtype=jnp.float32), w_kc)        # (512, 512)
    b_conv = jnp.tile(params["conv_b"], 16).reshape(1, FEAT)

    # fc1: rows permuted from PyTorch order (view, c, ph, pw) to kernel order
    # (view, ph, pw, c) so no transpose is needed in-kernel.
    w1 = params["fc1_w"].T.reshape(2, COUT, 4, 4, 2 * FEAT)
    w1 = jnp.transpose(w1, (0, 2, 3, 1, 4)).reshape(2 * FEAT, 2 * FEAT)
    b1 = params["fc1_b"].reshape(1, 2 * FEAT)

    # fc2: pad output dim to a multiple of 128 (unmasked stores), slice outside.
    w2 = jnp.pad(params["fc2_w"].T, ((0, 0), (0, ncp - n_classe)))
    b2 = jnp.pad(params["fc2_b"], (0, ncp - n_classe)).reshape(1, ncp)

    out = fused_forward(patches, w_bd, b_conv, w1, b1, w2, b2, tb)
    return out[:n, :n_classe]


# -----------------------------------------------------------------------------
# Pure-JAX reference (for correctness validation only)
# -----------------------------------------------------------------------------
def reference_forward(view1, view2, params):
    def conv_relu(x):
        y = jax.lax.conv_general_dilated(
            x, params["conv_w"], window_strides=(2, 2), padding=((1, 1), (1, 1)),
            dimension_numbers=("NCHW", "OIHW", "NCHW"))
        return jnp.maximum(y + params["conv_b"][None, :, None, None], 0.0)

    def pool_flat(y):                                # AdaptiveAvgPool2d((4,4)) + flatten
        n = y.shape[0]
        p = y.reshape(n, COUT, 4, 2, 4, 2).mean(axis=(3, 5))
        return p.reshape(n, COUT * 16)

    f = jnp.concatenate([pool_flat(conv_relu(view1)),
                         pool_flat(conv_relu(view2))], axis=1)
    h = jnp.maximum(f @ params["fc1_w"].T + params["fc1_b"], 0.0)
    return h @ params["fc2_w"].T + params["fc2_b"]


def init_params(key, n_classe):
    ks = jax.random.split(key, 6)
    scale = 0.05
    return {
        "conv_w": scale * jax.random.normal(ks[0], (32, 3, 3, 3), jnp.float32),
        "conv_b": scale * jax.random.normal(ks[1], (32,), jnp.float32),
        "fc1_w": scale * jax.random.normal(ks[2], (1024, 1024), jnp.float32),  # [out, in]
        "fc1_b": scale * jax.random.normal(ks[3], (1024,), jnp.float32),
        "fc2_w": scale * jax.random.normal(ks[4], (n_classe, 1024), jnp.float32),
        "fc2_b": scale * jax.random.normal(ks[5], (n_classe,), jnp.float32),
    }


if __name__ == "__main__":
    n_classe = 10
    key = jax.random.PRNGKey(0)
    k1, k2, kp = jax.random.split(key, 3)

    batch = 2
    view1 = jax.random.normal(k1, (batch, 3, HW, HW), jnp.float32)   # NCHW
    view2 = jax.random.normal(k2, (batch, 3, HW, HW), jnp.float32)   # NCHW
    params = init_params(kp, n_classe)

    out = jax.block_until_ready(multiview_forward(view1, view2, params))
    assert out.shape == (batch, n_classe) and out.dtype == jnp.float32

    # Validate against the plain-JAX reference (loose tolerance: both paths use
    # the MXU's default f32 precision with different accumulation orders; a real
    # layout/permutation bug would produce O(0.1+) errors).
    ref = jax.block_until_ready(reference_forward(view1, view2, params))
    err = float(jnp.max(jnp.abs(out - ref)))
    assert err < 5e-2, f"kernel/reference mismatch: max abs err = {err}"

    print("KERNEL_OK")
</pallas_src>

<mosaic_0001>
module attributes {stable_mosaic.version = 11 : i64} {
  func.func @fused_kernel(%arg0: i32, %arg1: memref<64x512xf32, #tpu.memory_space<vmem>>, %arg2: memref<512x512xf32, #tpu.memory_space<vmem>>, %arg3: memref<1x512xf32, #tpu.memory_space<vmem>>, %arg4: memref<1024x1024xf32, #tpu.memory_space<vmem>>, %arg5: memref<1x1024xf32, #tpu.memory_space<vmem>>, %arg6: memref<1024x128xf32, #tpu.memory_space<vmem>>, %arg7: memref<1x128xf32, #tpu.memory_space<vmem>>, %arg8: memref<8x128xf32, #tpu.memory_space<vmem>>) attributes {dimension_semantics = [#tpu.dimension_semantics<parallel>], iteration_bounds = array<i64: 1>, scalar_prefetch = 0 : i64, scratch_operands = 0 : i64, tpu.core_type = #tpu.core_type<tc>, window_params = [{transform_indices = @transform_0, window_bounds = array<i64: 64, 512>}, {pipeline_mode = #tpu.pipeline_mode<synchronous>, transform_indices = @transform_1, window_bounds = array<i64: 512, 512>}, {pipeline_mode = #tpu.pipeline_mode<synchronous>, transform_indices = @transform_2, window_bounds = array<i64: 1, 512>}, {pipeline_mode = #tpu.pipeline_mode<synchronous>, transform_indices = @transform_3, window_bounds = array<i64: 1024, 1024>}, {pipeline_mode = #tpu.pipeline_mode<synchronous>, transform_indices = @transform_4, window_bounds = array<i64: 1, 1024>}, {pipeline_mode = #tpu.pipeline_mode<synchronous>, transform_indices = @transform_5, window_bounds = array<i64: 1024, 128>}, {pipeline_mode = #tpu.pipeline_mode<synchronous>, transform_indices = @transform_6, window_bounds = array<i64: 1, 128>}, {transform_indices = @transform_7, window_bounds = array<i64: 8, 128>}]} {
    %c0 = arith.constant 0 : index
    %c0_0 = arith.constant 0 : index
    %0 = vector.load %arg1[%c0, %c0_0] : memref<64x512xf32, #tpu.memory_space<vmem>>, vector<64x512xf32>
    %c0_1 = arith.constant 0 : index
    %c0_2 = arith.constant 0 : index
    %1 = vector.load %arg2[%c0_1, %c0_2] : memref<512x512xf32, #tpu.memory_space<vmem>>, vector<512x512xf32>
    %cst = arith.constant dense<0.000000e+00> : vector<64x512xf32>
    %2 = tpu.matmul %0, %1, %cst {dimension_numbers = #tpu.dot_dimension_numbers<[1], [0], [0], [1], [0, 0, 1, 1], [], []>} : vector<64x512xf32>, vector<512x512xf32>, vector<64x512xf32> -> vector<64x512xf32>
    %c0_3 = arith.constant 0 : index
    %c0_4 = arith.constant 0 : index
    %3 = vector.load %arg3[%c0_3, %c0_4] : memref<1x512xf32, #tpu.memory_space<vmem>>, vector<1x512xf32>
    %4 = vector.broadcast %3 : vector<1x512xf32> to vector<64x512xf32>
    %5 = arith.addf %2, %4 : vector<64x512xf32>
    %cst_5 = arith.constant 0.000000e+00 : f32
    %6 = vector.broadcast %cst_5 : f32 to vector<64x512xf32>
    %7 = arith.maximumf %5, %6 : vector<64x512xf32>
    %8 = vector.extract_strided_slice %7 {offsets = [0, 0], sizes = [16, 512], strides = [1, 1]} : vector<64x512xf32> to vector<16x512xf32>
    %9 = vector.extract_strided_slice %7 {offsets = [16, 0], sizes = [16, 512], strides = [1, 1]} : vector<64x512xf32> to vector<16x512xf32>
    %10 = arith.addf %8, %9 : vector<16x512xf32>
    %11 = vector.extract_strided_slice %7 {offsets = [32, 0], sizes = [16, 512], strides = [1, 1]} : vector<64x512xf32> to vector<16x512xf32>
    %12 = arith.addf %10, %11 : vector<16x512xf32>
    %13 = vector.extract_strided_slice %7 {offsets = [48, 0], sizes = [16, 512], strides = [1, 1]} : vector<64x512xf32> to vector<16x512xf32>
    %14 = arith.addf %12, %13 : vector<16x512xf32>
    %cst_6 = arith.constant 2.500000e-01 : f32
    %15 = vector.broadcast %cst_6 : f32 to vector<16x512xf32>
    %16 = arith.mulf %15, %14 : vector<16x512xf32>
    %c0_7 = arith.constant 0 : index
    %c0_8 = arith.constant 0 : index
    %17 = vector.load %arg4[%c0_7, %c0_8] : memref<1024x1024xf32, #tpu.memory_space<vmem>>, vector<1024x1024xf32>
    %18 = vector.extract_strided_slice %16 {offsets = [0, 0], sizes = [8, 512], strides = [1, 1]} : vector<16x512xf32> to vector<8x512xf32>
    %19 = vector.extract_strided_slice %17 {offsets = [0, 0], sizes = [512, 1024], strides = [1, 1]} : vector<1024x1024xf32> to vector<512x1024xf32>
    %cst_9 = arith.constant dense<0.000000e+00> : vector<8x1024xf32>
    %20 = tpu.matmul %18, %19, %cst_9 {dimension_numbers = #tpu.dot_dimension_numbers<[1], [0], [0], [1], [0, 0, 1, 1], [], []>} : vector<8x512xf32>, vector<512x1024xf32>, vector<8x1024xf32> -> vector<8x1024xf32>
    %21 = vector.extract_strided_slice %16 {offsets = [8, 0], sizes = [8, 512], strides = [1, 1]} : vector<16x512xf32> to vector<8x512xf32>
    %22 = vector.extract_strided_slice %17 {offsets = [512, 0], sizes = [512, 1024], strides = [1, 1]} : vector<1024x1024xf32> to vector<512x1024xf32>
    %cst_10 = arith.constant dense<0.000000e+00> : vector<8x1024xf32>
    %23 = tpu.matmul %21, %22, %cst_10 {dimension_numbers = #tpu.dot_dimension_numbers<[1], [0], [0], [1], [0, 0, 1, 1], [], []>} : vector<8x512xf32>, vector<512x1024xf32>, vector<8x1024xf32> -> vector<8x1024xf32>
    %24 = arith.addf %20, %23 : vector<8x1024xf32>
    %c0_11 = arith.constant 0 : index
    %c0_12 = arith.constant 0 : index
    %25 = vector.load %arg5[%c0_11, %c0_12] : memref<1x1024xf32, #tpu.memory_space<vmem>>, vector<1x1024xf32>
    %26 = vector.broadcast %25 : vector<1x1024xf32> to vector<8x1024xf32>
    %27 = arith.addf %24, %26 : vector<8x1024xf32>
    %cst_13 = arith.constant 0.000000e+00 : f32
    %28 = vector.broadcast %cst_13 : f32 to vector<8x1024xf32>
    %29 = arith.maximumf %27, %28 : vector<8x1024xf32>
    %c0_14 = arith.constant 0 : index
    %c0_15 = arith.constant 0 : index
    %30 = vector.load %arg6[%c0_14, %c0_15] : memref<1024x128xf32, #tpu.memory_space<vmem>>, vector<1024x128xf32>
    %cst_16 = arith.constant dense<0.000000e+00> : vector<8x128xf32>
    %31 = tpu.matmul %29, %30, %cst_16 {dimension_numbers = #tpu.dot_dimension_numbers<[1], [0], [0], [1], [0, 0, 1, 1], [], []>} : vector<8x1024xf32>, vector<1024x128xf32>, vector<8x128xf32> -> vector<8x128xf32>
    %c0_17 = arith.constant 0 : index
    %c0_18 = arith.constant 0 : index
    %32 = vector.load %arg7[%c0_17, %c0_18] : memref<1x128xf32, #tpu.memory_space<vmem>>, vector<1x128xf32>
    %33 = vector.broadcast %32 : vector<1x128xf32> to vector<8x128xf32>
    %34 = arith.addf %31, %33 : vector<8x128xf32>
    %c0_19 = arith.constant 0 : index
    %c0_20 = arith.constant 0 : index
    %35 = vector.load %arg8[%c0_19, %c0_20] : memref<8x128xf32, #tpu.memory_space<vmem>>, vector<8x128xf32>
    tpu.vector_store %arg8[%c0_19, %c0_20], %34 {strides = array<i32>} : memref<8x128xf32, #tpu.memory_space<vmem>>, vector<8x128xf32>,
    return
  }
  func.func @transform_0(%arg0: i32) -> (i32, i32) {
    %c0_i32 = arith.constant 0 : i32
    %c0_i32_0 = arith.constant 0 : i32
    return %arg0, %c0_i32 : i32, i32
  }
  func.func @transform_1(%arg0: i32) -> (i32, i32) {
    %c0_i32 = arith.constant 0 : i32
    %c0_i32_0 = arith.constant 0 : i32
    %c0_i32_1 = arith.constant 0 : i32
    return %c0_i32, %c0_i32_0 : i32, i32
  }
  func.func @transform_2(%arg0: i32) -> (i32, i32) {
    %c0_i32 = arith.constant 0 : i32
    %c0_i32_0 = arith.constant 0 : i32
    %c0_i32_1 = arith.constant 0 : i32
    return %c0_i32, %c0_i32_0 : i32, i32
  }
  func.func @transform_3(%arg0: i32) -> (i32, i32) {
    %c0_i32 = arith.constant 0 : i32
    %c0_i32_0 = arith.constant 0 : i32
    %c0_i32_1 = arith.constant 0 : i32
    return %c0_i32, %c0_i32_0 : i32, i32
  }
  func.func @transform_4(%arg0: i32) -> (i32, i32) {
    %c0_i32 = arith.constant 0 : i32
    %c0_i32_0 = arith.constant 0 : i32
    %c0_i32_1 = arith.constant 0 : i32
    return %c0_i32, %c0_i32_0 : i32, i32
  }
  func.func @transform_5(%arg0: i32) -> (i32, i32) {
    %c0_i32 = arith.constant 0 : i32
    %c0_i32_0 = arith.constant 0 : i32
    %c0_i32_1 = arith.constant 0 : i32
    return %c0_i32, %c0_i32_0 : i32, i32
  }
  func.func @transform_6(%arg0: i32) -> (i32, i32) {
    %c0_i32 = arith.constant 0 : i32
    %c0_i32_0 = arith.constant 0 : i32
    %c0_i32_1 = arith.constant 0 : i32
    return %c0_i32, %c0_i32_0 : i32, i32
  }
  func.func @transform_7(%arg0: i32) -> (i32, i32) {
    %c0_i32 = arith.constant 0 : i32
    %c0_i32_0 = arith.constant 0 : i32
    return %arg0, %c0_i32 : i32, i32
  }
}

</mosaic_0001>

<llo_original>
// kernel: tile.8
$region0: #{tile.8}
  #allocation0 [shape = 's32[1]{0}', space=sflag, size = 0x4, scoped, tag = 'scoped memory for tile.8']
  %s0 = inlined_call_operand.vmem [shape: f32[32], index: 0, kind: input, shape index: {}]
  %s1 = inlined_call_operand.vmem [shape: f32[16,32], index: 1, kind: output, shape index: {}]
  // Predicated region
  $region2: #{tile.8} parent=0 // pred_check
    _
  $region3: #{tile.8} parent=0 // pred_check_branch
    %3 = sbr.rel (0) target = $region5
  $region4: #{tile.8} parent=0 // pred_region
    _
  $region5: #{tile.8} parent=0 // pred_fallthru
    _
  %v4 = vld [vmem:[%s0] ss:$0 sm:$0xff]
  %5 = vst [vmem:[%s1] sm:$0xff] %v4
  %s6 = scalar_lea.vmem %s1, 8
  %7 = vst [vmem:[%s6] sm:$0xff] %v4

// kernel: tile.9
$region0: #{tile.9}
  %s0 = inlined_call_operand.vmem [shape: f32[16,32], index: 0, kind: input, shape index: {}]
  %s1 = inlined_call_operand.vmem [shape: f32[1,512], index: 1, kind: output, shape index: {}]
  $region1: #{tile.9} parent=0
    #allocation0 [shape = 'u8[16384]{0}', space=vmem, size = 0x4000, scoped, tag = 'scoped mem for output reshape']
    %v2 = vld [vmem:[%s0] ss:$4 sm:$0xf]
    %vm3 = vcmask 261120
    %4 = vst.msk [vmem:[#allocation0] ss:$8 sm:$0xf] %vm3, %v2
    %s5 = scalar_lea.vmem %s0, 3
    %v6 = vld [vmem:[%s5] ss:$4 sm:$0xf]
    %7 = vrot.lane.b32.xlu0 %v6, 96
    %v8 = vpop.permute.xlu0 %7
    %vm9 = vcmask 1048320
    %10 = vst.msk [vmem:[#allocation0] ss:$8 sm:$0xf] %vm9, %v8
    %s11 = scalar_lea.vmem %s0, 2
    %v12 = vld [vmem:[%s11] ss:$4 sm:$0xf]
    %13 = vrot.lane.b32.xlu0 %v12, 64
    %v14 = vpop.permute.xlu0 %13
    %vm15 = vcmask 785920
    %16 = vst.msk [vmem:[#allocation0] ss:$8 sm:$0xf] %vm15, %v14
    %s17 = scalar_lea.vmem %s0, 1
    %v18 = vld [vmem:[%s17] ss:$4 sm:$0xf]
    %19 = vrot.lane.b32.xlu0 %v18, 32
    %v20 = vpop.permute.xlu0 %19
    %vm21 = vcmask 523520
    %22 = vst.msk [vmem:[#allocation0] ss:$8 sm:$0xf] %vm21, %v20
    %s24 = sshll.u32 1, 1
    %s25 = ssub.s32 %s24, 1
    %v27 = vld [vmem:[#allocation0] sm:%s25]
    %s28 = sshll.u32 1, 1
    %s29 = ssub.s32 %s28, 1
    %30 = vst [vmem:[%s1] sm:%s29] %v27
    %s31 = scalar_lea.vmem [#allocation0], 8
    %v32 = vld [vmem:[%s31] sm:%s25]
    %s33 = sshll.u32 1, 1
    %s34 = ssub.s32 %s33, 1
    %s35 = scalar_lea.vmem %s1, 1
    %36 = vst [vmem:[%s35] sm:%s34] %v32
    %s37 = scalar_lea.vmem [#allocation0], 16
    %v38 = vld [vmem:[%s37] sm:%s25]
    %s39 = sshll.u32 1, 1
    %s40 = ssub.s32 %s39, 1
    %s41 = smul.addr 1, 2
    %s42 = scalar_lea.vmem %s1, %s41
    %43 = vst [vmem:[%s42] sm:%s40] %v38
    %s44 = scalar_lea.vmem [#allocation0], 24
    %v45 = vld [vmem:[%s44] sm:%s25]
    %s46 = sshll.u32 1, 1
    %s47 = ssub.s32 %s46, 1
    %s48 = smul.addr 1, 3
    %s49 = scalar_lea.vmem %s1, %s48
    %50 = vst [vmem:[%s49] sm:%s47] %v45

// kernel: multiview_forward.1
$region0: #{multiview_forward.1}
  #allocation0 [shape = 'u32[]', space=smem, size = 0x4, offset = 0x4, fixed_abs, tag = 'smem constant byte address 0x4 - core index']
  #allocation1 [shape = 'u32[144,128]{1,0:T(1,128)}', space=vmem, size = 0x12000, scoped, tag = 'internal scratch']
  %s0 = inlined_call_operand.vmem [shape: f32[64,512], index: 0, kind: input, shape index: {}]
  %s1 = inlined_call_operand.vmem [shape: f32[512,512], index: 1, kind: input, shape index: {}]
  %s2 = inlined_call_operand.vmem [shape: f32[1,512], index: 2, kind: input, shape index: {}]
  %s3 = inlined_call_operand.vmem [shape: f32[1024,1024], index: 3, kind: input, shape index: {}]
  %s4 = inlined_call_operand.vmem [shape: f32[1,1024], index: 4, kind: input, shape index: {}]
  %s5 = inlined_call_operand.vmem [shape: f32[1024,128], index: 5, kind: input, shape index: {}]
  %s6 = inlined_call_operand.vmem [shape: f32[1,128], index: 6, kind: input, shape index: {}]
  %s7 = inlined_call_operand.vmem [shape: f32[8,128], index: 7, kind: output, shape index: {}]
  %s8 = sld [smem:[#allocation0]]
  $region38: #{multiview_forward.1} parent=0
    _
  %s10 = ssub.s32 1, %s8
  %s11 = scalar_select 0, %s10, %s8
  // Predicated region
  $region2: #{multiview_forward.1} parent=0 // pred_check
    _
  $region3: #{multiview_forward.1} parent=0 // pred_check_branch
    %13 = sbr.rel (0) target = $region5
  $region4: #{multiview_forward.1} parent=0 // pred_region
    _
  $region5: #{multiview_forward.1} parent=0 // pred_fallthru
    _
  // Predicated region
  $region6: #{multiview_forward.1} parent=0 // pred_check
    _
  $region7: #{multiview_forward.1} parent=0 // pred_check_branch
    %15 = sbr.rel (0) target = $region9
  $region8: #{multiview_forward.1} parent=0 // pred_region
    _
  $region9: #{multiview_forward.1} parent=0 // pred_fallthru
    _
  // Predicated region
  $region10: #{multiview_forward.1} parent=0 // pred_check
    _
  $region11: #{multiview_forward.1} parent=0 // pred_check_branch
    %17 = sbr.rel (0) target = $region13
  $region12: #{multiview_forward.1} parent=0 // pred_region
    _
  $region13: #{multiview_forward.1} parent=0 // pred_fallthru
    _
  // Predicated region
  $region14: #{multiview_forward.1} parent=0 // pred_check
    _
  $region15: #{multiview_forward.1} parent=0 // pred_check_branch
    %19 = sbr.rel (0) target = $region17
  $region16: #{multiview_forward.1} parent=0 // pred_region
    _
  $region17: #{multiview_forward.1} parent=0 // pred_fallthru
    _
  // Predicated region
  $region18: #{multiview_forward.1} parent=0 // pred_check
    _
  $region19: #{multiview_forward.1} parent=0 // pred_check_branch
    %21 = sbr.rel (0) target = $region21
  $region20: #{multiview_forward.1} parent=0 // pred_region
    _
  $region21: #{multiview_forward.1} parent=0 // pred_fallthru
    _
  // Predicated region
  $region22: #{multiview_forward.1} parent=0 // pred_check
    _
  $region23: #{multiview_forward.1} parent=0 // pred_check_branch
    %23 = sbr.rel (0) target = $region25
  $region24: #{multiview_forward.1} parent=0 // pred_region
    _
  $region25: #{multiview_forward.1} parent=0 // pred_fallthru
    _
  // Predicated region
  $region26: #{multiview_forward.1} parent=0 // pred_check
    _
  $region27: #{multiview_forward.1} parent=0 // pred_check_branch
    %25 = sbr.rel (0) target = $region29
  $region28: #{multiview_forward.1} parent=0 // pred_region
    _
  $region29: #{multiview_forward.1} parent=0 // pred_fallthru
    _
  %v26 = vld [vmem:[%s0] sm:$0xff]
  %v27 = vld [vmem:[%s0 + $0x8] sm:$0xff]
  %v28 = vld [vmem:[%s0 + $0x10] sm:$0xff]
  %v29 = vld [vmem:[%s0 + $0x18] sm:$0xff]
  %v30 = vld [vmem:[%s0 + $0x20] sm:$0xff]
  %v31 = vld [vmem:[%s0 + $0x28] sm:$0xff]
  %v32 = vld [vmem:[%s0 + $0x30] sm:$0xff]
  %v33 = vld [vmem:[%s0 + $0x38] sm:$0xff]
  %v34 = vld [vmem:[%s0 + $0x40] sm:$0xff]
  %v35 = vld [vmem:[%s0 + $0x48] sm:$0xff]
  %v36 = vld [vmem:[%s0 + $0x50] sm:$0xff]
  %v37 = vld [vmem:[%s0 + $0x58] sm:$0xff]
  %v38 = vld [vmem:[%s0 + $0x60] sm:$0xff]
  %v39 = vld [vmem:[%s0 + $0x68] sm:$0xff]
  %v40 = vld [vmem:[%s0 + $0x70] sm:$0xff]
  %v41 = vld [vmem:[%s0 + $0x78] sm:$0xff]
  %v42 = vld [vmem:[%s0 + $0x80] sm:$0xff]
  %v43 = vld [vmem:[%s0 + $0x88] sm:$0xff]
  %v44 = vld [vmem:[%s0 + $0x90] sm:$0xff]
  %v45 = vld [vmem:[%s0 + $0x98] sm:$0xff]
  %v46 = vld [vmem:[%s0 + $0xa0] sm:$0xff]
  %v47 = vld [vmem:[%s0 + $0xa8] sm:$0xff]
  %v48 = vld [vmem:[%s0 + $0xb0] sm:$0xff]
  %v49 = vld [vmem:[%s0 + $0xb8] sm:$0xff]
  %v50 = vld [vmem:[%s0 + $0xc0] sm:$0xff]
  %v51 = vld [vmem:[%s0 + $0xc8] sm:$0xff]
  %v52 = vld [vmem:[%s0 + $0xd0] sm:$0xff]
  %v53 = vld [vmem:[%s0 + $0xd8] sm:$0xff]
  %v54 = vld [vmem:[%s0 + $0xe0] sm:$0xff]
  %v55 = vld [vmem:[%s0 + $0xe8] sm:$0xff]
  %v56 = vld [vmem:[%s0 + $0xf0] sm:$0xff]
  %v57 = vld [vmem:[%s0 + $0xf8] sm:$0xff]
  %v58 = vld [vmem:[%s1] sm:$0xff]
  %v59 = vld [vmem:[%s1 + $0x8] sm:$0xff]
  %v60 = vld [vmem:[%s1 + $0x10] sm:$0xff]
  %v61 = vld [vmem:[%s1 + $0x18] sm:$0xff]
  %v62 = vld [vmem:[%s1 + $0x20] sm:$0xff]
  %v63 = vld [vmem:[%s1 + $0x28] sm:$0xff]
  %v64 = vld [vmem:[%s1 + $0x30] sm:$0xff]
  %v65 = vld [vmem:[%s1 + $0x38] sm:$0xff]
  %v66 = vld [vmem:[%s1 + $0x40] sm:$0xff]
  %v67 = vld [vmem:[%s1 + $0x48] sm:$0xff]
  %v68 = vld [vmem:[%s1 + $0x50] sm:$0xff]
  %v69 = vld [vmem:[%s1 + $0x58] sm:$0xff]
  %v70 = vld [vmem:[%s1 + $0x60] sm:$0xff]
  %v71 = vld [vmem:[%s1 + $0x68] sm:$0xff]
  %v72 = vld [vmem:[%s1 + $0x70] sm:$0xff]
  %v73 = vld [vmem:[%s1 + $0x78] sm:$0xff]
  %v74 = vld [vmem:[%s1 + $0x80] sm:$0xff]
  %v75 = vld [vmem:[%s1 + $0x88] sm:$0xff]
  %v76 = vld [vmem:[%s1 + $0x90] sm:$0xff]
  %v77 = vld [vmem:[%s1 + $0x98] sm:$0xff]
  %v78 = vld [vmem:[%s1 + $0xa0] sm:$0xff]
  %v79 = vld [vmem:[%s1 + $0xa8] sm:$0xff]
  %v80 = vld [vmem:[%s1 + $0xb0] sm:$0xff]
  %v81 = vld [vmem:[%s1 + $0xb8] sm:$0xff]
  %v82 = vld [vmem:[%s1 + $0xc0] sm:$0xff]
  %v83 = vld [vmem:[%s1 + $0xc8] sm:$0xff]
  %v84 = vld [vmem:[%s1 + $0xd0] sm:$0xff]
  %v85 = vld [vmem:[%s1 + $0xd8] sm:$0xff]
  %v86 = vld [vmem:[%s1 + $0xe0] sm:$0xff]
  %v87 = vld [vmem:[%s1 + $0xe8] sm:$0xff]
  %v88 = vld [vmem:[%s1 + $0xf0] sm:$0xff]
  %v89 = vld [vmem:[%s1 + $0xf8] sm:$0xff]
  %v90 = vld [vmem:[%s1 + $0x100] sm:$0xff]
  %v91 = vld [vmem:[%s1 + $0x108] sm:$0xff]
  %v92 = vld [vmem:[%s1 + $0x110] sm:$0xff]
  %v93 = vld [vmem:[%s1 + $0x118] sm:$0xff]
  %v94 = vld [vmem:[%s1 + $0x120] sm:$0xff]
  %v95 = vld [vmem:[%s1 + $0x128] sm:$0xff]
  %v96 = vld [vmem:[%s1 + $0x130] sm:$0xff]
  %v97 = vld [vmem:[%s1 + $0x138] sm:$0xff]
  %v98 = vld [vmem:[%s1 + $0x140] sm:$0xff]
  %v99 = vld [vmem:[%s1 + $0x148] sm:$0xff]
  %v100 = vld [vmem:[%s1 + $0x150] sm:$0xff]
  %v101 = vld [vmem:[%s1 + $0x158] sm:$0xff]
  %v102 = vld [vmem:[%s1 + $0x160] sm:$0xff]
  %v103 = vld [vmem:[%s1 + $0x168] sm:$0xff]
  %v104 = vld [vmem:[%s1 + $0x170] sm:$0xff]
  %v105 = vld [vmem:[%s1 + $0x178] sm:$0xff]
  %v106 = vld [vmem:[%s1 + $0x180] sm:$0xff]
  %v107 = vld [vmem:[%s1 + $0x188] sm:$0xff]
  %v108 = vld [vmem:[%s1 + $0x190] sm:$0xff]
  %v109 = vld [vmem:[%s1 + $0x198] sm:$0xff]
  %v110 = vld [vmem:[%s1 + $0x1a0] sm:$0xff]
  %v111 = vld [vmem:[%s1 + $0x1a8] sm:$0xff]
  %v112 = vld [vmem:[%s1 + $0x1b0] sm:$0xff]
  %v113 = vld [vmem:[%s1 + $0x1b8] sm:$0xff]
  %v114 = vld [vmem:[%s1 + $0x1c0] sm:$0xff]
  %v115 = vld [vmem:[%s1 + $0x1c8] sm:$0xff]
  %v116 = vld [vmem:[%s1 + $0x1d0] sm:$0xff]
  %v117 = vld [vmem:[%s1 + $0x1d8] sm:$0xff]
  %v118 = vld [vmem:[%s1 + $0x1e0] sm:$0xff]
  %v119 = vld [vmem:[%s1 + $0x1e8] sm:$0xff]
  %v120 = vld [vmem:[%s1 + $0x1f0] sm:$0xff]
  %v121 = vld [vmem:[%s1 + $0x1f8] sm:$0xff]
  %v122 = vld [vmem:[%s1 + $0x200] sm:$0xff]
  %v123 = vld [vmem:[%s1 + $0x208] sm:$0xff]
  %v124 = vld [vmem:[%s1 + $0x210] sm:$0xff]
  %v125 = vld [vmem:[%s1 + $0x218] sm:$0xff]
  %v126 = vld [vmem:[%s1 + $0x220] sm:$0xff]
  %v127 = vld [vmem:[%s1 + $0x228] sm:$0xff]
  %v128 = vld [vmem:[%s1 + $0x230] sm:$0xff]
  %v129 = vld [vmem:[%s1 + $0x238] sm:$0xff]
  %v130 = vld [vmem:[%s1 + $0x240] sm:$0xff]
  %v131 = vld [vmem:[%s1 + $0x248] sm:$0xff]
  %v132 = vld [vmem:[%s1 + $0x250] sm:$0xff]
  %v133 = vld [vmem:[%s1 + $0x258] sm:$0xff]
  %v134 = vld [vmem:[%s1 + $0x260] sm:$0xff]
  %v135 = vld [vmem:[%s1 + $0x268] sm:$0xff]
  %v136 = vld [vmem:[%s1 + $0x270] sm:$0xff]
  %v137 = vld [vmem:[%s1 + $0x278] sm:$0xff]
  %v138 = vld [vmem:[%s1 + $0x280] sm:$0xff]
  %v139 = vld [vmem:[%s1 + $0x288] sm:$0xff]
  %v140 = vld [vmem:[%s1 + $0x290] sm:$0xff]
  %v141 = vld [vmem:[%s1 + $0x298] sm:$0xff]
  %v142 = vld [vmem:[%s1 + $0x2a0] sm:$0xff]
  %v143 = vld [vmem:[%s1 + $0x2a8] sm:$0xff]
  %v144 = vld [vmem:[%s1 + $0x2b0] sm:$0xff]
  %v145 = vld [vmem:[%s1 + $0x2b8] sm:$0xff]
  %v146 = vld [vmem:[%s1 + $0x2c0] sm:$0xff]
  %v147 = vld [vmem:[%s1 + $0x2c8] sm:$0xff]
  %v148 = vld [vmem:[%s1 + $0x2d0] sm:$0xff]
  %v149 = vld [vmem:[%s1 + $0x2d8] sm:$0xff]
  %v150 = vld [vmem:[%s1 + $0x2e0] sm:$0xff]
  %v151 = vld [vmem:[%s1 + $0x2e8] sm:$0xff]
  %v152 = vld [vmem:[%s1 + $0x2f0] sm:$0xff]
  %v153 = vld [vmem:[%s1 + $0x2f8] sm:$0xff]
  %v154 = vld [vmem:[%s1 + $0x300] sm:$0xff]
  %v155 = vld [vmem:[%s1 + $0x308] sm:$0xff]
  %v156 = vld [vmem:[%s1 + $0x310] sm:$0xff]
  %v157 = vld [vmem:[%s1 + $0x318] sm:$0xff]
  %v158 = vld [vmem:[%s1 + $0x320] sm:$0xff]
  %v159 = vld [vmem:[%s1 + $0x328] sm:$0xff]
  %v160 = vld [vmem:[%s1 + $0x330] sm:$0xff]
  %v161 = vld [vmem:[%s1 + $0x338] sm:$0xff]
  %v162 = vld [vmem:[%s1 + $0x340] sm:$0xff]
  %v163 = vld [vmem:[%s1 + $0x348] sm:$0xff]
  %v164 = vld [vmem:[%s1 + $0x350] sm:$0xff]
  %v165 = vld [vmem:[%s1 + $0x358] sm:$0xff]
  %v166 = vld [vmem:[%s1 + $0x360] sm:$0xff]
  %v167 = vld [vmem:[%s1 + $0x368] sm:$0xff]
  %v168 = vld [vmem:[%s1 + $0x370] sm:$0xff]
  %v169 = vld [vmem:[%s1 + $0x378] sm:$0xff]
  %v170 = vld [vmem:[%s1 + $0x380] sm:$0xff]
  %v171 = vld [vmem:[%s1 + $0x388] sm:$0xff]
  %v172 = vld [vmem:[%s1 + $0x390] sm:$0xff]
  %v173 = vld [vmem:[%s1 + $0x398] sm:$0xff]
  %v174 = vld [vmem:[%s1 + $0x3a0] sm:$0xff]
  %v175 = vld [vmem:[%s1 + $0x3a8] sm:$0xff]
  %v176 = vld [vmem:[%s1 + $0x3b0] sm:$0xff]
  %v177 = vld [vmem:[%s1 + $0x3b8] sm:$0xff]
  %v178 = vld [vmem:[%s1 + $0x3c0] sm:$0xff]
  %v179 = vld [vmem:[%s1 + $0x3c8] sm:$0xff]
  %v180 = vld [vmem:[%s1 + $0x3d0] sm:$0xff]
  %v181 = vld [vmem:[%s1 + $0x3d8] sm:$0xff]
  %v182 = vld [vmem:[%s1 + $0x3e0] sm:$0xff]
  %v183 = vld [vmem:[%s1 + $0x3e8] sm:$0xff]
  %v184 = vld [vmem:[%s1 + $0x3f0] sm:$0xff]
  %v185 = vld [vmem:[%s1 + $0x3f8] sm:$0xff]
  %v186 = vld [vmem:[%s1 + $0x400] sm:$0xff]
  %v187 = vld [vmem:[%s1 + $0x408] sm:$0xff]
  %v188 = vld [vmem:[%s1 + $0x410] sm:$0xff]
  %v189 = vld [vmem:[%s1 + $0x418] sm:$0xff]
  %v190 = vld [vmem:[%s1 + $0x420] sm:$0xff]
  %v191 = vld [vmem:[%s1 + $0x428] sm:$0xff]
  %v192 = vld [vmem:[%s1 + $0x430] sm:$0xff]
  %v193 = vld [vmem:[%s1 + $0x438] sm:$0xff]
  %v194 = vld [vmem:[%s1 + $0x440] sm:$0xff]
  %v195 = vld [vmem:[%s1 + $0x448] sm:$0xff]
  %v196 = vld [vmem:[%s1 + $0x450] sm:$0xff]
  %v197 = vld [vmem:[%s1 + $0x458] sm:$0xff]
  %v198 = vld [vmem:[%s1 + $0x460] sm:$0xff]
  %v199 = vld [vmem:[%s1 + $0x468] sm:$0xff]
  %v200 = vld [vmem:[%s1 + $0x470] sm:$0xff]
  %v201 = vld [vmem:[%s1 + $0x478] sm:$0xff]
  %v202 = vld [vmem:[%s1 + $0x480] sm:$0xff]
  %v203 = vld [vmem:[%s1 + $0x488] sm:$0xff]
  %v204 = vld [vmem:[%s1 + $0x490] sm:$0xff]
  %v205 = vld [vmem:[%s1 + $0x498] sm:$0xff]
  %v206 = vld [vmem:[%s1 + $0x4a0] sm:$0xff]
  %v207 = vld [vmem:[%s1 + $0x4a8] sm:$0xff]
  %v208 = vld [vmem:[%s1 + $0x4b0] sm:$0xff]
  %v209 = vld [vmem:[%s1 + $0x4b8] sm:$0xff]
  %v210 = vld [vmem:[%s1 + $0x4c0] sm:$0xff]
  %v211 = vld [vmem:[%s1 + $0x4c8] sm:$0xff]
  %v212 = vld [vmem:[%s1 + $0x4d0] sm:$0xff]
  %v213 = vld [vmem:[%s1 + $0x4d8] sm:$0xff]
  %v214 = vld [vmem:[%s1 + $0x4e0] sm:$0xff]
  %v215 = vld [vmem:[%s1 + $0x4e8] sm:$0xff]
  %v216 = vld [vmem:[%s1 + $0x4f0] sm:$0xff]
  %v217 = vld [vmem:[%s1 + $0x4f8] sm:$0xff]
  %v218 = vld [vmem:[%s1 + $0x500] sm:$0xff]
  %v219 = vld [vmem:[%s1 + $0x508] sm:$0xff]
  %v220 = vld [vmem:[%s1 + $0x510] sm:$0xff]
  %v221 = vld [vmem:[%s1 + $0x518] sm:$0xff]
  %v222 = vld [vmem:[%s1 + $0x520] sm:$0xff]
  %v223 = vld [vmem:[%s1 + $0x528] sm:$0xff]
  %v224 = vld [vmem:[%s1 + $0x530] sm:$0xff]
  %v225 = vld [vmem:[%s1 + $0x538] sm:$0xff]
  %v226 = vld [vmem:[%s1 + $0x540] sm:$0xff]
  %v227 = vld [vmem:[%s1 + $0x548] sm:$0xff]
  %v228 = vld [vmem:[%s1 + $0x550] sm:$0xff]
  %v229 = vld [vmem:[%s1 + $0x558] sm:$0xff]
  %v230 = vld [vmem:[%s1 + $0x560] sm:$0xff]
  %v231 = vld [vmem:[%s1 + $0x568] sm:$0xff]
  %v232 = vld [vmem:[%s1 + $0x570] sm:$0xff]
  %v233 = vld [vmem:[%s1 + $0x578] sm:$0xff]
  %v234 = vld [vmem:[%s1 + $0x580] sm:$0xff]
  %v235 = vld [vmem:[%s1 + $0x588] sm:$0xff]
  %v236 = vld [vmem:[%s1 + $0x590] sm:$0xff]
  %v237 = vld [vmem:[%s1 + $0x598] sm:$0xff]
  %v238 = vld [vmem:[%s1 + $0x5a0] sm:$0xff]
  %v239 = vld [vmem:[%s1 + $0x5a8] sm:$0xff]
  %v240 = vld [vmem:[%s1 + $0x5b0] sm:$0xff]
  %v241 = vld [vmem:[%s1 + $0x5b8] sm:$0xff]
  %v242 = vld [vmem:[%s1 + $0x5c0] sm:$0xff]
  %v243 = vld [vmem:[%s1 + $0x5c8] sm:$0xff]
  %v244 = vld [vmem:[%s1 + $0x5d0] sm:$0xff]
  %v245 = vld [vmem:[%s1 + $0x5d8] sm:$0xff]
  %v246 = vld [vmem:[%s1 + $0x5e0] sm:$0xff]
  %v247 = vld [vmem:[%s1 + $0x5e8] sm:$0xff]
  %v248 = vld [vmem:[%s1 + $0x5f0] sm:$0xff]
  %v249 = vld [vmem:[%s1 + $0x5f8] sm:$0xff]
  %v250 = vld [vmem:[%s1 + $0x600] sm:$0xff]
  %v251 = vld [vmem:[%s1 + $0x608] sm:$0xff]
  %v252 = vld [vmem:[%s1 + $0x610] sm:$0xff]
  %v253 = vld [vmem:[%s1 + $0x618] sm:$0xff]
  %v254 = vld [vmem:[%s1 + $0x620] sm:$0xff]
  %v255 = vld [vmem:[%s1 + $0x628] sm:$0xff]
  %v256 = vld [vmem:[%s1 + $0x630] sm:$0xff]
  %v257 = vld [vmem:[%s1 + $0x638] sm:$0xff]
  %v258 = vld [vmem:[%s1 + $0x640] sm:$0xff]
  %v259 = vld [vmem:[%s1 + $0x648] sm:$0xff]
  %v260 = vld [vmem:[%s1 + $0x650] sm:$0xff]
  %v261 = vld [vmem:[%s1 + $0x658] sm:$0xff]
  %v262 = vld [vmem:[%s1 + $0x660] sm:$0xff]
  %v263 = vld [vmem:[%s1 + $0x668] sm:$0xff]
  %v264 = vld [vmem:[%s1 + $0x670] sm:$0xff]
  %v265 = vld [vmem:[%s1 + $0x678] sm:$0xff]
  %v266 = vld [vmem:[%s1 + $0x680] sm:$0xff]
  %v267 = vld [vmem:[%s1 + $0x688] sm:$0xff]
  %v268 = vld [vmem:[%s1 + $0x690] sm:$0xff]
  %v269 = vld [vmem:[%s1 + $0x698] sm:$0xff]
  %v270 = vld [vmem:[%s1 + $0x6a0] sm:$0xff]
  %v271 = vld [vmem:[%s1 + $0x6a8] sm:$0xff]
  %v272 = vld [vmem:[%s1 + $0x6b0] sm:$0xff]
  %v273 = vld [vmem:[%s1 + $0x6b8] sm:$0xff]
  %v274 = vld [vmem:[%s1 + $0x6c0] sm:$0xff]
  %v275 = vld [vmem:[%s1 + $0x6c8] sm:$0xff]
  %v276 = vld [vmem:[%s1 + $0x6d0] sm:$0xff]
  %v277 = vld [vmem:[%s1 + $0x6d8] sm:$0xff]
  %v278 = vld [vmem:[%s1 + $0x6e0] sm:$0xff]
  %v279 = vld [vmem:[%s1 + $0x6e8] sm:$0xff]
  %v280 = vld [vmem:[%s1 + $0x6f0] sm:$0xff]
  %v281 = vld [vmem:[%s1 + $0x6f8] sm:$0xff]
  %v282 = vld [vmem:[%s1 + $0x700] sm:$0xff]
  %v283 = vld [vmem:[%s1 + $0x708] sm:$0xff]
  %v284 = vld [vmem:[%s1 + $0x710] sm:$0xff]
  %v285 = vld [vmem:[%s1 + $0x718] sm:$0xff]
  %v286 = vld [vmem:[%s1 + $0x720] sm:$0xff]
  %v287 = vld [vmem:[%s1 + $0x728] sm:$0xff]
  %v288 = vld [vmem:[%s1 + $0x730] sm:$0xff]
  %v289 = vld [vmem:[%s1 + $0x738] sm:$0xff]
  %v290 = vld [vmem:[%s1 + $0x740] sm:$0xff]
  %v291 = vld [vmem:[%s1 + $0x748] sm:$0xff]
  %v292 = vld [vmem:[%s1 + $0x750] sm:$0xff]
  %v293 = vld [vmem:[%s1 + $0x758] sm:$0xff]
  %v294 = vld [vmem:[%s1 + $0x760] sm:$0xff]
  %v295 = vld [vmem:[%s1 + $0x768] sm:$0xff]
  %v296 = vld [vmem:[%s1 + $0x770] sm:$0xff]
  %v297 = vld [vmem:[%s1 + $0x778] sm:$0xff]
  %v298 = vld [vmem:[%s1 + $0x780] sm:$0xff]
  %v299 = vld [vmem:[%s1 + $0x788] sm:$0xff]
  %v300 = vld [vmem:[%s1 + $0x790] sm:$0xff]
  %v301 = vld [vmem:[%s1 + $0x798] sm:$0xff]
  %v302 = vld [vmem:[%s1 + $0x7a0] sm:$0xff]
  %v303 = vld [vmem:[%s1 + $0x7a8] sm:$0xff]
  %v304 = vld [vmem:[%s1 + $0x7b0] sm:$0xff]
  %v305 = vld [vmem:[%s1 + $0x7b8] sm:$0xff]
  %v306 = vld [vmem:[%s1 + $0x7c0] sm:$0xff]
  %v307 = vld [vmem:[%s1 + $0x7c8] sm:$0xff]
  %v308 = vld [vmem:[%s1 + $0x7d0] sm:$0xff]
  %v309 = vld [vmem:[%s1 + $0x7d8] sm:$0xff]
  %v310 = vld [vmem:[%s1 + $0x7e0] sm:$0xff]
  %v311 = vld [vmem:[%s1 + $0x7e8] sm:$0xff]
  %v312 = vld [vmem:[%s1 + $0x7f0] sm:$0xff]
  %v313 = vld [vmem:[%s1 + $0x7f8] sm:$0xff]
  %v314 = vld [vmem:[%s2] sm:$0xf]
  %v316 = vlaneseq
  %v317 = vshrl.u32 %v316, 7
  %v318 = vsub.s32 0, %v317
  %v319 = vrot.slane %v314, %v318
  %v320 = vlaneseq
  %v321 = vshrl.u32 %v320, 7
  %v322 = vsub.s32 1, %v321
  %v323 = vrot.slane %v314, %v322
  %v324 = vlaneseq
  %v325 = vshrl.u32 %v324, 7
  %v326 = vsub.s32 2, %v325
  %v327 = vrot.slane %v314, %v326
  %v328 = vlaneseq
  %v329 = vshrl.u32 %v328, 7
  %v330 = vsub.s32 3, %v329
  %v331 = vrot.slane %v314, %v330
  %336 = vmatprep.subr.mxu0 %v119
  %337 = vmatpush1.msra.mxu0 %v118
  %338 = vmatprep.subr.mxu0 %v115
  %339 = vmatpush1.msra.mxu0 %v114
  %340 = vmatprep.subr.mxu0 %v111
  %341 = vmatpush1.msra.mxu0 %v110
  %342 = vmatprep.subr.mxu0 %v107
  %343 = vmatpush1.msra.mxu0 %v106
  %344 = vmatprep.subr.mxu0 %v103
  %345 = vmatpush1.msra.mxu0 %v102
  %346 = vmatprep.subr.mxu0 %v99
  %347 = vmatpush1.msra.mxu0 %v98
  %348 = vmatprep.subr.mxu0 %v95
  %349 = vmatpush1.msra.mxu0 %v94
  %350 = vmatprep.subr.mxu0 %v91
  %351 = vmatpush1.msra.mxu0 %v90
  %352 = vmatprep.subr.mxu0 %v87
  %353 = vmatpush1.msra.mxu0 %v86
  %354 = vmatprep.subr.mxu0 %v83
  %355 = vmatpush1.msra.mxu0 %v82
  %356 = vmatprep.subr.mxu0 %v79
  %357 = vmatpush1.msra.mxu0 %v78
  %358 = vmatprep.subr.mxu0 %v75
  %359 = vmatpush1.msra.mxu0 %v74
  %360 = vmatprep.subr.mxu0 %v71
  %361 = vmatpush1.msra.mxu0 %v70
  %362 = vmatprep.subr.mxu0 %v67
  %363 = vmatpush1.msra.mxu0 %v66
  %364 = vmatprep.subr.mxu0 %v63
  %365 = vmatpush1.msra.mxu0 %v62
  %366 = vmatprep.subr.mxu0 %v59
  %367 = vmatpush1.msra.mxu0 %v58
  %368 = vmatprep.subr.mxu0 %v183
  %369 = vmatpush2.msra.mxu0 %v182
  %370 = vmatprep.subr.mxu0 %v179
  %371 = vmatpush2.msra.mxu0 %v178
  %372 = vmatprep.subr.mxu0 %v175
  %373 = vmatpush2.msra.mxu0 %v174
  %374 = vmatprep.subr.mxu0 %v171
  %375 = vmatpush2.msra.mxu0 %v170
  %376 = vmatprep.subr.mxu0 %v167
  %377 = vmatpush2.msra.mxu0 %v166
  %378 = vmatprep.subr.mxu0 %v163
  %379 = vmatpush2.msra.mxu0 %v162
  %380 = vmatprep.subr.mxu0 %v159
  %381 = vmatpush2.msra.mxu0 %v158
  %382 = vmatprep.subr.mxu0 %v155
  %383 = vmatpush2.msra.mxu0 %v154
  %384 = vmatprep.subr.mxu0 %v151
  %385 = vmatpush2.msra.mxu0 %v150
  %386 = vmatprep.subr.mxu0 %v147
  %387 = vmatpush2.msra.mxu0 %v146
  %388 = vmatprep.subr.mxu0 %v143
  %389 = vmatpush2.msra.mxu0 %v142
  %390 = vmatprep.subr.mxu0 %v139
  %391 = vmatpush2.msra.mxu0 %v138
  %392 = vmatprep.subr.mxu0 %v135
  %393 = vmatpush2.msra.mxu0 %v134
  %394 = vmatprep.subr.mxu0 %v131
  %395 = vmatpush2.msra.mxu0 %v130
  %396 = vmatprep.subr.mxu0 %v127
  %397 = vmatpush2.msra.mxu0 %v126
  %398 = vmatprep.subr.mxu0 %v123
  %399 = vmatpush2.msra.mxu0 %v122
  %400 = vmatprep.mubr.f32.mxu0 %v27
  %401 = vmatmul.mubr.f32.gmra.mxu0 %v26
  %v402 = vpop.f32.mrf.mxu0
  %v403 = vadd.f32 %v319, %v402
  %v404 = vpop.f32.mrf.mxu0
  %v405 = vadd.f32 %v323, %v404
  %406 = vmatprep.mubr.f32.mxu0 %v31
  %407 = vmatmul.mubr.f32.gmra.mxu0 %v30
  %v408 = vpop.f32.mrf.mxu0
  %v409 = vadd.f32 %v319, %v408
  %v410 = vpop.f32.mrf.mxu0
  %v411 = vadd.f32 %v323, %v410
  %412 = vmatprep.mubr.f32.mxu0 %v35
  %413 = vmatmul.mubr.f32.gmra.mxu0 %v34
  %v414 = vpop.f32.mrf.mxu0
  %v415 = vadd.f32 %v319, %v414
  %v416 = vpop.f32.mrf.mxu0
  %v417 = vadd.f32 %v323, %v416
  %418 = vmatprep.mubr.f32.mxu0 %v39
  %419 = vmatmul.mubr.f32.gmra.mxu0 %v38
  %v420 = vpop.f32.mrf.mxu0
  %v421 = vadd.f32 %v319, %v420
  %v422 = vpop.f32.mrf.mxu0
  %v423 = vadd.f32 %v323, %v422
  %424 = vmatprep.mubr.f32.mxu0 %v43
  %425 = vmatmul.mubr.f32.gmra.mxu0 %v42
  %v426 = vpop.f32.mrf.mxu0
  %v427 = vadd.f32 %v319, %v426
  %v428 = vpop.f32.mrf.mxu0
  %v429 = vadd.f32 %v323, %v428
  %430 = vmatprep.mubr.f32.mxu0 %v47
  %431 = vmatmul.mubr.f32.gmra.mxu0 %v46
  %v432 = vpop.f32.mrf.mxu0
  %v433 = vadd.f32 %v319, %v432
  %v434 = vpop.f32.mrf.mxu0
  %v435 = vadd.f32 %v323, %v434
  %436 = vmatprep.mubr.f32.mxu0 %v51
  %437 = vmatmul.mubr.f32.gmra.mxu0 %v50
  %v438 = vpop.f32.mrf.mxu0
  %v439 = vadd.f32 %v319, %v438
  %v440 = vpop.f32.mrf.mxu0
  %v441 = vadd.f32 %v323, %v440
  %442 = vmatprep.mubr.f32.mxu0 %v55
  %443 = vmatmul.mubr.f32.gmra.mxu0 %v54
  %v444 = vpop.f32.mrf.mxu0
  %v445 = vadd.f32 %v319, %v444
  %v446 = vpop.f32.mrf.mxu0
  %v447 = vadd.f32 %v323, %v446
  %448 = vdwg.mxu0
  %449 = vmatprep.subr.mxu0 %v247
  %450 = vmatpush1.msra.mxu0 %v246
  %451 = vmatprep.subr.mxu0 %v243
  %452 = vmatpush1.msra.mxu0 %v242
  %453 = vmatprep.subr.mxu0 %v239
  %454 = vmatpush1.msra.mxu0 %v238
  %455 = vmatprep.subr.mxu0 %v235
  %456 = vmatpush1.msra.mxu0 %v234
  %457 = vmatprep.subr.mxu0 %v231
  %458 = vmatpush1.msra.mxu0 %v230
  %459 = vmatprep.subr.mxu0 %v227
  %460 = vmatpush1.msra.mxu0 %v226
  %461 = vmatprep.subr.mxu0 %v223
  %462 = vmatpush1.msra.mxu0 %v222
  %463 = vmatprep.subr.mxu0 %v219
  %464 = vmatpush1.msra.mxu0 %v218
  %465 = vmatprep.subr.mxu0 %v215
  %466 = vmatpush1.msra.mxu0 %v214
  %467 = vmatprep.subr.mxu0 %v211
  %468 = vmatpush1.msra.mxu0 %v210
  %469 = vmatprep.subr.mxu0 %v207
  %470 = vmatpush1.msra.mxu0 %v206
  %471 = vmatprep.subr.mxu0 %v203
  %472 = vmatpush1.msra.mxu0 %v202
  %473 = vmatprep.subr.mxu0 %v199
  %474 = vmatpush1.msra.mxu0 %v198
  %475 = vmatprep.subr.mxu0 %v195
  %476 = vmatpush1.msra.mxu0 %v194
  %477 = vmatprep.subr.mxu0 %v191
  %478 = vmatpush1.msra.mxu0 %v190
  %479 = vmatprep.subr.mxu0 %v187
  %480 = vmatpush1.msra.mxu0 %v186
  %481 = vmatprep.subr.mxu0 %v311
  %482 = vmatpush2.msra.mxu0 %v310
  %483 = vmatprep.subr.mxu0 %v307
  %484 = vmatpush2.msra.mxu0 %v306
  %485 = vmatprep.subr.mxu0 %v303
  %486 = vmatpush2.msra.mxu0 %v302
  %487 = vmatprep.subr.mxu0 %v299
  %488 = vmatpush2.msra.mxu0 %v298
  %489 = vmatprep.subr.mxu0 %v295
  %490 = vmatpush2.msra.mxu0 %v294
  %491 = vmatprep.subr.mxu0 %v291
  %492 = vmatpush2.msra.mxu0 %v290
  %493 = vmatprep.subr.mxu0 %v287
  %494 = vmatpush2.msra.mxu0 %v286
  %495 = vmatprep.subr.mxu0 %v283
  %496 = vmatpush2.msra.mxu0 %v282
  %497 = vmatprep.subr.mxu0 %v279
  %498 = vmatpush2.msra.mxu0 %v278
  %499 = vmatprep.subr.mxu0 %v275
  %500 = vmatpush2.msra.mxu0 %v274
  %501 = vmatprep.subr.mxu0 %v271
  %502 = vmatpush2.msra.mxu0 %v270
  %503 = vmatprep.subr.mxu0 %v267
  %504 = vmatpush2.msra.mxu0 %v266
  %505 = vmatprep.subr.mxu0 %v263
  %506 = vmatpush2.msra.mxu0 %v262
  %507 = vmatprep.subr.mxu0 %v259
  %508 = vmatpush2.msra.mxu0 %v258
  %509 = vmatprep.subr.mxu0 %v255
  %510 = vmatpush2.msra.mxu0 %v254
  %511 = vmatprep.subr.mxu0 %v251
  %512 = vmatpush2.msra.mxu0 %v250
  %513 = vmatprep.mubr.f32.mxu0 %v29
  %514 = vmatmul.mubr.f32.gmra.mxu0 %v28
  %v515 = vpop.f32.mrf.mxu0
  %v516 = vadd.f32 %v403, %v515
  %v517 = vpop.f32.mrf.mxu0
  %v518 = vadd.f32 %v405, %v517
  %519 = vmatprep.mubr.f32.mxu0 %v33
  %520 = vmatmul.mubr.f32.gmra.mxu0 %v32
  %v521 = vpop.f32.mrf.mxu0
  %v522 = vadd.f32 %v409, %v521
  %v523 = vpop.f32.mrf.mxu0
  %v524 = vadd.f32 %v411, %v523
  %525 = vmatprep.mubr.f32.mxu0 %v37
  %526 = vmatmul.mubr.f32.gmra.mxu0 %v36
  %v527 = vpop.f32.mrf.mxu0
  %v528 = vadd.f32 %v415, %v527
  %v529 = vpop.f32.mrf.mxu0
  %v530 = vadd.f32 %v417, %v529
  %531 = vmatprep.mubr.f32.mxu0 %v41
  %532 = vmatmul.mubr.f32.gmra.mxu0 %v40
  %v533 = vpop.f32.mrf.mxu0
  %v534 = vadd.f32 %v421, %v533
  %v535 = vpop.f32.mrf.mxu0
  %v536 = vadd.f32 %v423, %v535
  %537 = vmatprep.mubr.f32.mxu0 %v45
  %538 = vmatmul.mubr.f32.gmra.mxu0 %v44
  %v539 = vpop.f32.mrf.mxu0
  %v540 = vadd.f32 %v427, %v539
  %v541 = vpop.f32.mrf.mxu0
  %v542 = vadd.f32 %v429, %v541
  %543 = vmatprep.mubr.f32.mxu0 %v49
  %544 = vmatmul.mubr.f32.gmra.mxu0 %v48
  %v545 = vpop.f32.mrf.mxu0
  %v546 = vadd.f32 %v433, %v545
  %v547 = vpop.f32.mrf.mxu0
  %v548 = vadd.f32 %v435, %v547
  %549 = vmatprep.mubr.f32.mxu0 %v53
  %550 = vmatmul.mubr.f32.gmra.mxu0 %v52
  %v551 = vpop.f32.mrf.mxu0
  %v552 = vadd.f32 %v439, %v551
  %v553 = vpop.f32.mrf.mxu0
  %v554 = vadd.f32 %v441, %v553
  %555 = vmatprep.mubr.f32.mxu0 %v57
  %556 = vmatmul.mubr.f32.gmra.mxu0 %v56
  %v557 = vpop.f32.mrf.mxu0
  %v558 = vadd.f32 %v445, %v557
  %v559 = vpop.f32.mrf.mxu0
  %v560 = vadd.f32 %v447, %v559
  %561 = vdwg.mxu0
  %562 = vmatprep.subr.mxu0 %v121
  %563 = vmatpush1.msra.mxu0 %v120
  %564 = vmatprep.subr.mxu0 %v117
  %565 = vmatpush1.msra.mxu0 %v116
  %566 = vmatprep.subr.mxu0 %v113
  %567 = vmatpush1.msra.mxu0 %v112
  %568 = vmatprep.subr.mxu0 %v109
  %569 = vmatpush1.msra.mxu0 %v108
  %570 = vmatprep.subr.mxu0 %v105
  %571 = vmatpush1.msra.mxu0 %v104
  %572 = vmatprep.subr.mxu0 %v101
  %573 = vmatpush1.msra.mxu0 %v100
  %574 = vmatprep.subr.mxu0 %v97
  %575 = vmatpush1.msra.mxu0 %v96
  %576 = vmatprep.subr.mxu0 %v93
  %577 = vmatpush1.msra.mxu0 %v92
  %578 = vmatprep.subr.mxu0 %v89
  %579 = vmatpush1.msra.mxu0 %v88
  %580 = vmatprep.subr.mxu0 %v85
  %581 = vmatpush1.msra.mxu0 %v84
  %582 = vmatprep.subr.mxu0 %v81
  %583 = vmatpush1.msra.mxu0 %v80
  %584 = vmatprep.subr.mxu0 %v77
  %585 = vmatpush1.msra.mxu0 %v76
  %586 = vmatprep.subr.mxu0 %v73
  %587 = vmatpush1.msra.mxu0 %v72
  %588 = vmatprep.subr.mxu0 %v69
  %589 = vmatpush1.msra.mxu0 %v68
  %590 = vmatprep.subr.mxu0 %v65
  %591 = vmatpush1.msra.mxu0 %v64
  %592 = vmatprep.subr.mxu0 %v61
  %593 = vmatpush1.msra.mxu0 %v60
  %594 = vmatprep.subr.mxu0 %v185
  %595 = vmatpush2.msra.mxu0 %v184
  %596 = vmatprep.subr.mxu0 %v181
  %597 = vmatpush2.msra.mxu0 %v180
  %598 = vmatprep.subr.mxu0 %v177
  %599 = vmatpush2.msra.mxu0 %v176
  %600 = vmatprep.subr.mxu0 %v173
  %601 = vmatpush2.msra.mxu0 %v172
  %602 = vmatprep.subr.mxu0 %v169
  %603 = vmatpush2.msra.mxu0 %v168
  %604 = vmatprep.subr.mxu0 %v165
  %605 = vmatpush2.msra.mxu0 %v164
  %606 = vmatprep.subr.mxu0 %v161
  %607 = vmatpush2.msra.mxu0 %v160
  %608 = vmatprep.subr.mxu0 %v157
  %609 = vmatpush2.msra.mxu0 %v156
  %610 = vmatprep.subr.mxu0 %v153
  %611 = vmatpush2.msra.mxu0 %v152
  %612 = vmatprep.subr.mxu0 %v149
  %613 = vmatpush2.msra.mxu0 %v148
  %614 = vmatprep.subr.mxu0 %v145
  %615 = vmatpush2.msra.mxu0 %v144
  %616 = vmatprep.subr.mxu0 %v141
  %617 = vmatpush2.msra.mxu0 %v140
  %618 = vmatprep.subr.mxu0 %v137
  %619 = vmatpush2.msra.mxu0 %v136
  %620 = vmatprep.subr.mxu0 %v133
  %621 = vmatpush2.msra.mxu0 %v132
  %622 = vmatprep.subr.mxu0 %v129
  %623 = vmatpush2.msra.mxu0 %v128
  %624 = vmatprep.subr.mxu0 %v125
  %625 = vmatpush2.msra.mxu0 %v124
  %626 = vmatprep.mubr.f32.mxu0 %v27
  %627 = vmatmul.mubr.f32.gmra.mxu0 %v26
  %v628 = vpop.f32.mrf.mxu0
  %v629 = vadd.f32 %v327, %v628
  %v630 = vpop.f32.mrf.mxu0
  %v631 = vadd.f32 %v331, %v630
  %632 = vmatprep.mubr.f32.mxu0 %v31
  %633 = vmatmul.mubr.f32.gmra.mxu0 %v30
  %v634 = vpop.f32.mrf.mxu0
  %v635 = vadd.f32 %v327, %v634
  %v636 = vpop.f32.mrf.mxu0
  %v637 = vadd.f32 %v331, %v636
  %638 = vmatprep.mubr.f32.mxu0 %v35
  %639 = vmatmul.mubr.f32.gmra.mxu0 %v34
  %v640 = vpop.f32.mrf.mxu0
  %v641 = vadd.f32 %v327, %v640
  %v642 = vpop.f32.mrf.mxu0
  %v643 = vadd.f32 %v331, %v642
  %644 = vmatprep.mubr.f32.mxu0 %v39
  %645 = vmatmul.mubr.f32.gmra.mxu0 %v38
  %v646 = vpop.f32.mrf.mxu0
  %v647 = vadd.f32 %v327, %v646
  %v648 = vpop.f32.mrf.mxu0
  %v649 = vadd.f32 %v331, %v648
  %650 = vmatprep.mubr.f32.mxu0 %v43
  %651 = vmatmul.mubr.f32.gmra.mxu0 %v42
  %v652 = vpop.f32.mrf.mxu0
  %v653 = vadd.f32 %v327, %v652
  %v654 = vpop.f32.mrf.mxu0
  %v655 = vadd.f32 %v331, %v654
  %656 = vmatprep.mubr.f32.mxu0 %v47
  %657 = vmatmul.mubr.f32.gmra.mxu0 %v46
  %v658 = vpop.f32.mrf.mxu0
  %v659 = vadd.f32 %v327, %v658
  %v660 = vpop.f32.mrf.mxu0
  %v661 = vadd.f32 %v331, %v660
  %662 = vmatprep.mubr.f32.mxu0 %v51
  %663 = vmatmul.mubr.f32.gmra.mxu0 %v50
  %v664 = vpop.f32.mrf.mxu0
  %v665 = vadd.f32 %v327, %v664
  %v666 = vpop.f32.mrf.mxu0
  %v667 = vadd.f32 %v331, %v666
  %668 = vmatprep.mubr.f32.mxu0 %v55
  %669 = vmatmul.mubr.f32.gmra.mxu0 %v54
  %v670 = vpop.f32.mrf.mxu0
  %v671 = vadd.f32 %v327, %v670
  %v672 = vpop.f32.mrf.mxu0
  %v673 = vadd.f32 %v331, %v672
  %674 = vdwg.mxu0
  %675 = vmatprep.subr.mxu0 %v249
  %676 = vmatpush1.msra.mxu0 %v248
  %677 = vmatprep.subr.mxu0 %v245
  %678 = vmatpush1.msra.mxu0 %v244
  %679 = vmatprep.subr.mxu0 %v241
  %680 = vmatpush1.msra.mxu0 %v240
  %681 = vmatprep.subr.mxu0 %v237
  %682 = vmatpush1.msra.mxu0 %v236
  %683 = vmatprep.subr.mxu0 %v233
  %684 = vmatpush1.msra.mxu0 %v232
  %685 = vmatprep.subr.mxu0 %v229
  %686 = vmatpush1.msra.mxu0 %v228
  %687 = vmatprep.subr.mxu0 %v225
  %688 = vmatpush1.msra.mxu0 %v224
  %689 = vmatprep.subr.mxu0 %v221
  %690 = vmatpush1.msra.mxu0 %v220
  %691 = vmatprep.subr.mxu0 %v217
  %692 = vmatpush1.msra.mxu0 %v216
  %693 = vmatprep.subr.mxu0 %v213
  %694 = vmatpush1.msra.mxu0 %v212
  %695 = vmatprep.subr.mxu0 %v209
  %696 = vmatpush1.msra.mxu0 %v208
  %697 = vmatprep.subr.mxu0 %v205
  %698 = vmatpush1.msra.mxu0 %v204
  %699 = vmatprep.subr.mxu0 %v201
  %700 = vmatpush1.msra.mxu0 %v200
  %701 = vmatprep.subr.mxu0 %v197
  %702 = vmatpush1.msra.mxu0 %v196
  %703 = vmatprep.subr.mxu0 %v193
  %704 = vmatpush1.msra.mxu0 %v192
  %705 = vmatprep.subr.mxu0 %v189
  %706 = vmatpush1.msra.mxu0 %v188
  %707 = vmatprep.subr.mxu0 %v313
  %708 = vmatpush2.msra.mxu0 %v312
  %709 = vmatprep.subr.mxu0 %v309
  %710 = vmatpush2.msra.mxu0 %v308
  %711 = vmatprep.subr.mxu0 %v305
  %712 = vmatpush2.msra.mxu0 %v304
  %713 = vmatprep.subr.mxu0 %v301
  %714 = vmatpush2.msra.mxu0 %v300
  %715 = vmatprep.subr.mxu0 %v297
  %716 = vmatpush2.msra.mxu0 %v296
  %717 = vmatprep.subr.mxu0 %v293
  %718 = vmatpush2.msra.mxu0 %v292
  %719 = vmatprep.subr.mxu0 %v289
  %720 = vmatpush2.msra.mxu0 %v288
  %721 = vmatprep.subr.mxu0 %v285
  %722 = vmatpush2.msra.mxu0 %v284
  %723 = vmatprep.subr.mxu0 %v281
  %724 = vmatpush2.msra.mxu0 %v280
  %725 = vmatprep.subr.mxu0 %v277
  %726 = vmatpush2.msra.mxu0 %v276
  %727 = vmatprep.subr.mxu0 %v273
  %728 = vmatpush2.msra.mxu0 %v272
  %729 = vmatprep.subr.mxu0 %v269
  %730 = vmatpush2.msra.mxu0 %v268
  %731 = vmatprep.subr.mxu0 %v265
  %732 = vmatpush2.msra.mxu0 %v264
  %733 = vmatprep.subr.mxu0 %v261
  %734 = vmatpush2.msra.mxu0 %v260
  %735 = vmatprep.subr.mxu0 %v257
  %736 = vmatpush2.msra.mxu0 %v256
  %737 = vmatprep.subr.mxu0 %v253
  %738 = vmatpush2.msra.mxu0 %v252
  %739 = vmatprep.mubr.f32.mxu0 %v29
  %740 = vmatmul.mubr.f32.gmra.mxu0 %v28
  %v741 = vpop.f32.mrf.mxu0
  %v742 = vadd.f32 %v629, %v741
  %v743 = vpop.f32.mrf.mxu0
  %v744 = vadd.f32 %v631, %v743
  %745 = vmatprep.mubr.f32.mxu0 %v33
  %746 = vmatmul.mubr.f32.gmra.mxu0 %v32
  %v747 = vpop.f32.mrf.mxu0
  %v748 = vadd.f32 %v635, %v747
  %v749 = vpop.f32.mrf.mxu0
  %v750 = vadd.f32 %v637, %v749
  %751 = vmatprep.mubr.f32.mxu0 %v37
  %752 = vmatmul.mubr.f32.gmra.mxu0 %v36
  %v753 = vpop.f32.mrf.mxu0
  %v754 = vadd.f32 %v641, %v753
  %v755 = vpop.f32.mrf.mxu0
  %v756 = vadd.f32 %v643, %v755
  %757 = vmatprep.mubr.f32.mxu0 %v41
  %758 = vmatmul.mubr.f32.gmra.mxu0 %v40
  %v759 = vpop.f32.mrf.mxu0
  %v760 = vadd.f32 %v647, %v759
  %v761 = vpop.f32.mrf.mxu0
  %v762 = vadd.f32 %v649, %v761
  %763 = vmatprep.mubr.f32.mxu0 %v45
  %764 = vmatmul.mubr.f32.gmra.mxu0 %v44
  %v765 = vpop.f32.mrf.mxu0
  %v766 = vadd.f32 %v653, %v765
  %v767 = vpop.f32.mrf.mxu0
  %v768 = vadd.f32 %v655, %v767
  %769 = vmatprep.mubr.f32.mxu0 %v49
  %770 = vmatmul.mubr.f32.gmra.mxu0 %v48
  %v771 = vpop.f32.mrf.mxu0
  %v772 = vadd.f32 %v659, %v771
  %v773 = vpop.f32.mrf.mxu0
  %v774 = vadd.f32 %v661, %v773
  %775 = vmatprep.mubr.f32.mxu0 %v53
  %776 = vmatmul.mubr.f32.gmra.mxu0 %v52
  %v777 = vpop.f32.mrf.mxu0
  %v778 = vadd.f32 %v665, %v777
  %v779 = vpop.f32.mrf.mxu0
  %v780 = vadd.f32 %v667, %v779
  %781 = vmatprep.mubr.f32.mxu0 %v57
  %782 = vmatmul.mubr.f32.gmra.mxu0 %v56
  %v783 = vpop.f32.mrf.mxu0
  %v784 = vadd.f32 %v671, %v783
  %v785 = vpop.f32.mrf.mxu0
  %v786 = vadd.f32 %v673, %v785
  %787 = vdwg.mxu0
  %v788 = vmax.f32 %v516, 0.0
  %v789 = vmax.f32 %v518, 0.0
  %v790 = vmax.f32 %v742, 0.0
  %v791 = vmax.f32 %v744, 0.0
  %v792 = vmax.f32 %v522, 0.0
  %v793 = vmax.f32 %v524, 0.0
  %v794 = vmax.f32 %v748, 0.0
  %v795 = vmax.f32 %v750, 0.0
  %v796 = vmax.f32 %v528, 0.0
  %v797 = vmax.f32 %v530, 0.0
  %v798 = vmax.f32 %v754, 0.0
  %v799 = vmax.f32 %v756, 0.0
  %v800 = vmax.f32 %v534, 0.0
  %v801 = vmax.f32 %v536, 0.0
  %v802 = vmax.f32 %v760, 0.0
  %v803 = vmax.f32 %v762, 0.0
  %v804 = vmax.f32 %v540, 0.0
  %v805 = vmax.f32 %v542, 0.0
  %v806 = vmax.f32 %v766, 0.0
  %v807 = vmax.f32 %v768, 0.0
  %v808 = vmax.f32 %v546, 0.0
  %v809 = vmax.f32 %v548, 0.0
  %v810 = vmax.f32 %v772, 0.0
  %v811 = vmax.f32 %v774, 0.0
  %v812 = vmax.f32 %v552, 0.0
  %v813 = vmax.f32 %v554, 0.0
  %v814 = vmax.f32 %v778, 0.0
  %v815 = vmax.f32 %v780, 0.0
  %v816 = vmax.f32 %v558, 0.0
  %v817 = vmax.f32 %v560, 0.0
  %v818 = vmax.f32 %v784, 0.0
  %v819 = vmax.f32 %v786, 0.0
  %v820 = vadd.f32 %v788, %v796
  %v821 = vadd.f32 %v789, %v797
  %v822 = vadd.f32 %v790, %v798
  %v823 = vadd.f32 %v791, %v799
  %v824 = vadd.f32 %v792, %v800
  %v825 = vadd.f32 %v793, %v801
  %v826 = vadd.f32 %v794, %v802
  %v827 = vadd.f32 %v795, %v803
  %v828 = vadd.f32 %v820, %v804
  %v829 = vadd.f32 %v821, %v805
  %v830 = vadd.f32 %v822, %v806
  %v831 = vadd.f32 %v823, %v807
  %v832 = vadd.f32 %v824, %v808
  %v833 = vadd.f32 %v825, %v809
  %v834 = vadd.f32 %v826, %v810
  %v835 = vadd.f32 %v827, %v811
  %v836 = vadd.f32 %v828, %v812
  %v837 = vadd.f32 %v829, %v813
  %v838 = vadd.f32 %v830, %v814
  %v839 = vadd.f32 %v831, %v815
  %v840 = vadd.f32 %v832, %v816
  %v841 = vadd.f32 %v833, %v817
  %v842 = vadd.f32 %v834, %v818
  %v843 = vadd.f32 %v835, %v819
  %v844 = vmul.f32 %v836, 0.25
  %v845 = vmul.f32 %v837, 0.25
  %v846 = vmul.f32 %v838, 0.25
  %v847 = vmul.f32 %v839, 0.25
  %v848 = vmul.f32 %v840, 0.25
  %v849 = vmul.f32 %v841, 0.25
  %v850 = vmul.f32 %v842, 0.25
  %v851 = vmul.f32 %v843, 0.25
  %v852 = vld [vmem:[%s3] sm:$0xff]
  %v853 = vld [vmem:[%s3 + $0x8] sm:$0xff]
  %v854 = vld [vmem:[%s3 + $0x10] sm:$0xff]
  %v855 = vld [vmem:[%s3 + $0x18] sm:$0xff]
  %v856 = vld [vmem:[%s3 + $0x20] sm:$0xff]
  %v857 = vld [vmem:[%s3 + $0x28] sm:$0xff]
  %v858 = vld [vmem:[%s3 + $0x30] sm:$0xff]
  %v859 = vld [vmem:[%s3 + $0x38] sm:$0xff]
  %v860 = vld [vmem:[%s3 + $0x40] sm:$0xff]
  %v861 = vld [vmem:[%s3 + $0x48] sm:$0xff]
  %v862 = vld [vmem:[%s3 + $0x50] sm:$0xff]
  %v863 = vld [vmem:[%s3 + $0x58] sm:$0xff]
  %v864 = vld [vmem:[%s3 + $0x60] sm:$0xff]
  %v865 = vld [vmem:[%s3 + $0x68] sm:$0xff]
  %v866 = vld [vmem:[%s3 + $0x70] sm:$0xff]
  %v867 = vld [vmem:[%s3 + $0x78] sm:$0xff]
  %v868 = vld [vmem:[%s3 + $0x80] sm:$0xff]
  %v869 = vld [vmem:[%s3 + $0x88] sm:$0xff]
  %v870 = vld [vmem:[%s3 + $0x90] sm:$0xff]
  %v871 = vld [vmem:[%s3 + $0x98] sm:$0xff]
  %v872 = vld [vmem:[%s3 + $0xa0] sm:$0xff]
  %v873 = vld [vmem:[%s3 + $0xa8] sm:$0xff]
  %v874 = vld [vmem:[%s3 + $0xb0] sm:$0xff]
  %v875 = vld [vmem:[%s3 + $0xb8] sm:$0xff]
  %v876 = vld [vmem:[%s3 + $0xc0] sm:$0xff]
  %v877 = vld [vmem:[%s3 + $0xc8] sm:$0xff]
  %v878 = vld [vmem:[%s3 + $0xd0] sm:$0xff]
  %v879 = vld [vmem:[%s3 + $0xd8] sm:$0xff]
  %v880 = vld [vmem:[%s3 + $0xe0] sm:$0xff]
  %v881 = vld [vmem:[%s3 + $0xe8] sm:$0xff]
  %v882 = vld [vmem:[%s3 + $0xf0] sm:$0xff]
  %v883 = vld [vmem:[%s3 + $0xf8] sm:$0xff]
  %v884 = vld [vmem:[%s3 + $0x100] sm:$0xff]
  %v885 = vld [vmem:[%s3 + $0x108] sm:$0xff]
  %v886 = vld [vmem:[%s3 + $0x110] sm:$0xff]
  %v887 = vld [vmem:[%s3 + $0x118] sm:$0xff]
  %v888 = vld [vmem:[%s3 + $0x120] sm:$0xff]
  %v889 = vld [vmem:[%s3 + $0x128] sm:$0xff]
  %v890 = vld [vmem:[%s3 + $0x130] sm:$0xff]
  %v891 = vld [vmem:[%s3 + $0x138] sm:$0xff]
  %v892 = vld [vmem:[%s3 + $0x140] sm:$0xff]
  %v893 = vld [vmem:[%s3 + $0x148] sm:$0xff]
  %v894 = vld [vmem:[%s3 + $0x150] sm:$0xff]
  %v895 = vld [vmem:[%s3 + $0x158] sm:$0xff]
  %v896 = vld [vmem:[%s3 + $0x160] sm:$0xff]
  %v897 = vld [vmem:[%s3 + $0x168] sm:$0xff]
  %v898 = vld [vmem:[%s3 + $0x170] sm:$0xff]
  %v899 = vld [vmem:[%s3 + $0x178] sm:$0xff]
  %v900 = vld [vmem:[%s3 + $0x180] sm:$0xff]
  %v901 = vld [vmem:[%s3 + $0x188] sm:$0xff]
  %v902 = vld [vmem:[%s3 + $0x190] sm:$0xff]
  %v903 = vld [vmem:[%s3 + $0x198] sm:$0xff]
  %v904 = vld [vmem:[%s3 + $0x1a0] sm:$0xff]
  %v905 = vld [vmem:[%s3 + $0x1a8] sm:$0xff]
  %v906 = vld [vmem:[%s3 + $0x1b0] sm:$0xff]
  %v907 = vld [vmem:[%s3 + $0x1b8] sm:$0xff]
  %v908 = vld [vmem:[%s3 + $0x1c0] sm:$0xff]
  %v909 = vld [vmem:[%s3 + $0x1c8] sm:$0xff]
  %v910 = vld [vmem:[%s3 + $0x1d0] sm:$0xff]
  %v911 = vld [vmem:[%s3 + $0x1d8] sm:$0xff]
  %v912 = vld [vmem:[%s3 + $0x1e0] sm:$0xff]
  %v913 = vld [vmem:[%s3 + $0x1e8] sm:$0xff]
  %v914 = vld [vmem:[%s3 + $0x1f0] sm:$0xff]
  %v915 = vld [vmem:[%s3 + $0x1f8] sm:$0xff]
  %v916 = vld [vmem:[%s3 + $0x200] sm:$0xff]
  %v917 = vld [vmem:[%s3 + $0x208] sm:$0xff]
  %v918 = vld [vmem:[%s3 + $0x210] sm:$0xff]
  %v919 = vld [vmem:[%s3 + $0x218] sm:$0xff]
  %v920 = vld [vmem:[%s3 + $0x220] sm:$0xff]
  %v921 = vld [vmem:[%s3 + $0x228] sm:$0xff]
  %v922 = vld [vmem:[%s3 + $0x230] sm:$0xff]
  %v923 = vld [vmem:[%s3 + $0x238] sm:$0xff]
  %v924 = vld [vmem:[%s3 + $0x240] sm:$0xff]
  %v925 = vld [vmem:[%s3 + $0x248] sm:$0xff]
  %v926 = vld [vmem:[%s3 + $0x250] sm:$0xff]
  %v927 = vld [vmem:[%s3 + $0x258] sm:$0xff]
  %v928 = vld [vmem:[%s3 + $0x260] sm:$0xff]
  %v929 = vld [vmem:[%s3 + $0x268] sm:$0xff]
  %v930 = vld [vmem:[%s3 + $0x270] sm:$0xff]
  %v931 = vld [vmem:[%s3 + $0x278] sm:$0xff]
  %v932 = vld [vmem:[%s3 + $0x280] sm:$0xff]
  %v933 = vld [vmem:[%s3 + $0x288] sm:$0xff]
  %v934 = vld [vmem:[%s3 + $0x290] sm:$0xff]
  %v935 = vld [vmem:[%s3 + $0x298] sm:$0xff]
  %v936 = vld [vmem:[%s3 + $0x2a0] sm:$0xff]
  %v937 = vld [vmem:[%s3 + $0x2a8] sm:$0xff]
  %v938 = vld [vmem:[%s3 + $0x2b0] sm:$0xff]
  %v939 = vld [vmem:[%s3 + $0x2b8] sm:$0xff]
  %v940 = vld [vmem:[%s3 + $0x2c0] sm:$0xff]
  %v941 = vld [vmem:[%s3 + $0x2c8] sm:$0xff]
  %v942 = vld [vmem:[%s3 + $0x2d0] sm:$0xff]
  %v943 = vld [vmem:[%s3 + $0x2d8] sm:$0xff]
  %v944 = vld [vmem:[%s3 + $0x2e0] sm:$0xff]
  %v945 = vld [vmem:[%s3 + $0x2e8] sm:$0xff]
  %v946 = vld [vmem:[%s3 + $0x2f0] sm:$0xff]
  %v947 = vld [vmem:[%s3 + $0x2f8] sm:$0xff]
  %v948 = vld [vmem:[%s3 + $0x300] sm:$0xff]
  %v949 = vld [vmem:[%s3 + $0x308] sm:$0xff]
  %v950 = vld [vmem:[%s3 + $0x310] sm:$0xff]
  %v951 = vld [vmem:[%s3 + $0x318] sm:$0xff]
  %v952 = vld [vmem:[%s3 + $0x320] sm:$0xff]
  %v953 = vld [vmem:[%s3 + $0x328] sm:$0xff]
  %v954 = vld [vmem:[%s3 + $0x330] sm:$0xff]
  %v955 = vld [vmem:[%s3 + $0x338] sm:$0xff]
  %v956 = vld [vmem:[%s3 + $0x340] sm:$0xff]
  %v957 = vld [vmem:[%s3 + $0x348] sm:$0xff]
  %v958 = vld [vmem:[%s3 + $0x350] sm:$0xff]
  %v959 = vld [vmem:[%s3 + $0x358] sm:$0xff]
  %v960 = vld [vmem:[%s3 + $0x360] sm:$0xff]
  %v961 = vld [vmem:[%s3 + $0x368] sm:$0xff]
  %v962 = vld [vmem:[%s3 + $0x370] sm:$0xff]
  %v963 = vld [vmem:[%s3 + $0x378] sm:$0xff]
  %v964 = vld [vmem:[%s3 + $0x380] sm:$0xff]
  %v965 = vld [vmem:[%s3 + $0x388] sm:$0xff]
  %v966 = vld [vmem:[%s3 + $0x390] sm:$0xff]
  %v967 = vld [vmem:[%s3 + $0x398] sm:$0xff]
  %v968 = vld [vmem:[%s3 + $0x3a0] sm:$0xff]
  %v969 = vld [vmem:[%s3 + $0x3a8] sm:$0xff]
  %v970 = vld [vmem:[%s3 + $0x3b0] sm:$0xff]
  %v971 = vld [vmem:[%s3 + $0x3b8] sm:$0xff]
  %v972 = vld [vmem:[%s3 + $0x3c0] sm:$0xff]
  %v973 = vld [vmem:[%s3 + $0x3c8] sm:$0xff]
  %v974 = vld [vmem:[%s3 + $0x3d0] sm:$0xff]
  %v975 = vld [vmem:[%s3 + $0x3d8] sm:$0xff]
  %v976 = vld [vmem:[%s3 + $0x3e0] sm:$0xff]
  %v977 = vld [vmem:[%s3 + $0x3e8] sm:$0xff]
  %v978 = vld [vmem:[%s3 + $0x3f0] sm:$0xff]
  %v979 = vld [vmem:[%s3 + $0x3f8] sm:$0xff]
  %v980 = vld [vmem:[%s3 + $0x400] sm:$0xff]
  %v981 = vld [vmem:[%s3 + $0x408] sm:$0xff]
  %v982 = vld [vmem:[%s3 + $0x410] sm:$0xff]
  %v983 = vld [vmem:[%s3 + $0x418] sm:$0xff]
  %v984 = vld [vmem:[%s3 + $0x420] sm:$0xff]
  %v985 = vld [vmem:[%s3 + $0x428] sm:$0xff]
  %v986 = vld [vmem:[%s3 + $0x430] sm:$0xff]
  %v987 = vld [vmem:[%s3 + $0x438] sm:$0xff]
  %v988 = vld [vmem:[%s3 + $0x440] sm:$0xff]
  %v989 = vld [vmem:[%s3 + $0x448] sm:$0xff]
  %v990 = vld [vmem:[%s3 + $0x450] sm:$0xff]
  %v991 = vld [vmem:[%s3 + $0x458] sm:$0xff]
  %v992 = vld [vmem:[%s3 + $0x460] sm:$0xff]
  %v993 = vld [vmem:[%s3 + $0x468] sm:$0xff]
  %v994 = vld [vmem:[%s3 + $0x470] sm:$0xff]
  %v995 = vld [vmem:[%s3 + $0x478] sm:$0xff]
  %v996 = vld [vmem:[%s3 + $0x480] sm:$0xff]
  %v997 = vld [vmem:[%s3 + $0x488] sm:$0xff]
  %v998 = vld [vmem:[%s3 + $0x490] sm:$0xff]
  %v999 = vld [vmem:[%s3 + $0x498] sm:$0xff]
  %v1000 = vld [vmem:[%s3 + $0x4a0] sm:$0xff]
  %v1001 = vld [vmem:[%s3 + $0x4a8] sm:$0xff]
  %v1002 = vld [vmem:[%s3 + $0x4b0] sm:$0xff]
  %v1003 = vld [vmem:[%s3 + $0x4b8] sm:$0xff]
  %v1004 = vld [vmem:[%s3 + $0x4c0] sm:$0xff]
  %v1005 = vld [vmem:[%s3 + $0x4c8] sm:$0xff]
  %v1006 = vld [vmem:[%s3 + $0x4d0] sm:$0xff]
  %v1007 = vld [vmem:[%s3 + $0x4d8] sm:$0xff]
  %v1008 = vld [vmem:[%s3 + $0x4e0] sm:$0xff]
  %v1009 = vld [vmem:[%s3 + $0x4e8] sm:$0xff]
  %v1010 = vld [vmem:[%s3 + $0x4f0] sm:$0xff]
  %v1011 = vld [vmem:[%s3 + $0x4f8] sm:$0xff]
  %v1012 = vld [vmem:[%s3 + $0x500] sm:$0xff]
  %v1013 = vld [vmem:[%s3 + $0x508] sm:$0xff]
  %v1014 = vld [vmem:[%s3 + $0x510] sm:$0xff]
  %v1015 = vld [vmem:[%s3 + $0x518] sm:$0xff]
  %v1016 = vld [vmem:[%s3 + $0x520] sm:$0xff]
  %v1017 = vld [vmem:[%s3 + $0x528] sm:$0xff]
  %v1018 = vld [vmem:[%s3 + $0x530] sm:$0xff]
  %v1019 = vld [vmem:[%s3 + $0x538] sm:$0xff]
  %v1020 = vld [vmem:[%s3 + $0x540] sm:$0xff]
  %v1021 = vld [vmem:[%s3 + $0x548] sm:$0xff]
  %v1022 = vld [vmem:[%s3 + $0x550] sm:$0xff]
  %v1023 = vld [vmem:[%s3 + $0x558] sm:$0xff]
  %v1024 = vld [vmem:[%s3 + $0x560] sm:$0xff]
  %v1025 = vld [vmem:[%s3 + $0x568] sm:$0xff]
  %v1026 = vld [vmem:[%s3 + $0x570] sm:$0xff]
  %v1027 = vld [vmem:[%s3 + $0x578] sm:$0xff]
  %v1028 = vld [vmem:[%s3 + $0x580] sm:$0xff]
  %v1029 = vld [vmem:[%s3 + $0x588] sm:$0xff]
  %v1030 = vld [vmem:[%s3 + $0x590] sm:$0xff]
  %v1031 = vld [vmem:[%s3 + $0x598] sm:$0xff]
  %v1032 = vld [vmem:[%s3 + $0x5a0] sm:$0xff]
  %v1033 = vld [vmem:[%s3 + $0x5a8] sm:$0xff]
  %v1034 = vld [vmem:[%s3 + $0x5b0] sm:$0xff]
  %v1035 = vld [vmem:[%s3 + $0x5b8] sm:$0xff]
  %v1036 = vld [vmem:[%s3 + $0x5c0] sm:$0xff]
  %v1037 = vld [vmem:[%s3 + $0x5c8] sm:$0xff]
  %v1038 = vld [vmem:[%s3 + $0x5d0] sm:$0xff]
  %v1039 = vld [vmem:[%s3 + $0x5d8] sm:$0xff]
  %v1040 = vld [vmem:[%s3 + $0x5e0] sm:$0xff]
  %v1041 = vld [vmem:[%s3 + $0x5e8] sm:$0xff]
  %v1042 = vld [vmem:[%s3 + $0x5f0] sm:$0xff]
  %v1043 = vld [vmem:[%s3 + $0x5f8] sm:$0xff]
  %v1044 = vld [vmem:[%s3 + $0x600] sm:$0xff]
  %v1045 = vld [vmem:[%s3 + $0x608] sm:$0xff]
  %v1046 = vld [vmem:[%s3 + $0x610] sm:$0xff]
  %v1047 = vld [vmem:[%s3 + $0x618] sm:$0xff]
  %v1048 = vld [vmem:[%s3 + $0x620] sm:$0xff]
  %v1049 = vld [vmem:[%s3 + $0x628] sm:$0xff]
  %v1050 = vld [vmem:[%s3 + $0x630] sm:$0xff]
  %v1051 = vld [vmem:[%s3 + $0x638] sm:$0xff]
  %v1052 = vld [vmem:[%s3 + $0x640] sm:$0xff]
  %v1053 = vld [vmem:[%s3 + $0x648] sm:$0xff]
  %v1054 = vld [vmem:[%s3 + $0x650] sm:$0xff]
  %v1055 = vld [vmem:[%s3 + $0x658] sm:$0xff]
  %v1056 = vld [vmem:[%s3 + $0x660] sm:$0xff]
  %v1057 = vld [vmem:[%s3 + $0x668] sm:$0xff]
  %v1058 = vld [vmem:[%s3 + $0x670] sm:$0xff]
  %v1059 = vld [vmem:[%s3 + $0x678] sm:$0xff]
  %v1060 = vld [vmem:[%s3 + $0x680] sm:$0xff]
  %v1061 = vld [vmem:[%s3 + $0x688] sm:$0xff]
  %v1062 = vld [vmem:[%s3 + $0x690] sm:$0xff]
  %v1063 = vld [vmem:[%s3 + $0x698] sm:$0xff]
  %v1064 = vld [vmem:[%s3 + $0x6a0] sm:$0xff]
  %v1065 = vld [vmem:[%s3 + $0x6a8] sm:$0xff]
  %v1066 = vld [vmem:[%s3 + $0x6b0] sm:$0xff]
  %v1067 = vld [vmem:[%s3 + $0x6b8] sm:$0xff]
  %v1068 = vld [vmem:[%s3 + $0x6c0] sm:$0xff]
  %v1069 = vld [vmem:[%s3 + $0x6c8] sm:$0xff]
  %v1070 = vld [vmem:[%s3 + $0x6d0] sm:$0xff]
  %v1071 = vld [vmem:[%s3 + $0x6d8] sm:$0xff]
  %v1072 = vld [vmem:[%s3 + $0x6e0] sm:$0xff]
  %v1073 = vld [vmem:[%s3 + $0x6e8] sm:$0xff]
  %v1074 = vld [vmem:[%s3 + $0x6f0] sm:$0xff]
  %v1075 = vld [vmem:[%s3 + $0x6f8] sm:$0xff]
  %v1076 = vld [vmem:[%s3 + $0x700] sm:$0xff]
  %v1077 = vld [vmem:[%s3 + $0x708] sm:$0xff]
  %v1078 = vld [vmem:[%s3 + $0x710] sm:$0xff]
  %v1079 = vld [vmem:[%s3 + $0x718] sm:$0xff]
  %v1080 = vld [vmem:[%s3 + $0x720] sm:$0xff]
  %v1081 = vld [vmem:[%s3 + $0x728] sm:$0xff]
  %v1082 = vld [vmem:[%s3 + $0x730] sm:$0xff]
  %v1083 = vld [vmem:[%s3 + $0x738] sm:$0xff]
  %v1084 = vld [vmem:[%s3 + $0x740] sm:$0xff]
  %v1085 = vld [vmem:[%s3 + $0x748] sm:$0xff]
  %v1086 = vld [vmem:[%s3 + $0x750] sm:$0xff]
  %v1087 = vld [vmem:[%s3 + $0x758] sm:$0xff]
  %v1088 = vld [vmem:[%s3 + $0x760] sm:$0xff]
  %v1089 = vld [vmem:[%s3 + $0x768] sm:$0xff]
  %v1090 = vld [vmem:[%s3 + $0x770] sm:$0xff]
  %v1091 = vld [vmem:[%s3 + $0x778] sm:$0xff]
  %v1092 = vld [vmem:[%s3 + $0x780] sm:$0xff]
  %v1093 = vld [vmem:[%s3 + $0x788] sm:$0xff]
  %v1094 = vld [vmem:[%s3 + $0x790] sm:$0xff]
  %v1095 = vld [vmem:[%s3 + $0x798] sm:$0xff]
  %v1096 = vld [vmem:[%s3 + $0x7a0] sm:$0xff]
  %v1097 = vld [vmem:[%s3 + $0x7a8] sm:$0xff]
  %v1098 = vld [vmem:[%s3 + $0x7b0] sm:$0xff]
  %v1099 = vld [vmem:[%s3 + $0x7b8] sm:$0xff]
  %v1100 = vld [vmem:[%s3 + $0x7c0] sm:$0xff]
  %v1101 = vld [vmem:[%s3 + $0x7c8] sm:$0xff]
  %v1102 = vld [vmem:[%s3 + $0x7d0] sm:$0xff]
  %v1103 = vld [vmem:[%s3 + $0x7d8] sm:$0xff]
  %v1104 = vld [vmem:[%s3 + $0x7e0] sm:$0xff]
  %v1105 = vld [vmem:[%s3 + $0x7e8] sm:$0xff]
  %v1106 = vld [vmem:[%s3 + $0x7f0] sm:$0xff]
  %v1107 = vld [vmem:[%s3 + $0x7f8] sm:$0xff]
  %v1108 = vld [vmem:[%s3 + $0x800] sm:$0xff]
  %v1109 = vld [vmem:[%s3 + $0x808] sm:$0xff]
  %v1110 = vld [vmem:[%s3 + $0x810] sm:$0xff]
  %v1111 = vld [vmem:[%s3 + $0x818] sm:$0xff]
  %v1112 = vld [vmem:[%s3 + $0x820] sm:$0xff]
  %v1113 = vld [vmem:[%s3 + $0x828] sm:$0xff]
  %v1114 = vld [vmem:[%s3 + $0x830] sm:$0xff]
  %v1115 = vld [vmem:[%s3 + $0x838] sm:$0xff]
  %v1116 = vld [vmem:[%s3 + $0x840] sm:$0xff]
  %v1117 = vld [vmem:[%s3 + $0x848] sm:$0xff]
  %v1118 = vld [vmem:[%s3 + $0x850] sm:$0xff]
  %v1119 = vld [vmem:[%s3 + $0x858] sm:$0xff]
  %v1120 = vld [vmem:[%s3 + $0x860] sm:$0xff]
  %v1121 = vld [vmem:[%s3 + $0x868] sm:$0xff]
  %v1122 = vld [vmem:[%s3 + $0x870] sm:$0xff]
  %v1123 = vld [vmem:[%s3 + $0x878] sm:$0xff]
  %v1124 = vld [vmem:[%s3 + $0x880] sm:$0xff]
  %v1125 = vld [vmem:[%s3 + $0x888] sm:$0xff]
  %v1126 = vld [vmem:[%s3 + $0x890] sm:$0xff]
  %v1127 = vld [vmem:[%s3 + $0x898] sm:$0xff]
  %v1128 = vld [vmem:[%s3 + $0x8a0] sm:$0xff]
  %v1129 = vld [vmem:[%s3 + $0x8a8] sm:$0xff]
  %v1130 = vld [vmem:[%s3 + $0x8b0] sm:$0xff]
  %v1131 = vld [vmem:[%s3 + $0x8b8] sm:$0xff]
  %v1132 = vld [vmem:[%s3 + $0x8c0] sm:$0xff]
  %v1133 = vld [vmem:[%s3 + $0x8c8] sm:$0xff]
  %v1134 = vld [vmem:[%s3 + $0x8d0] sm:$0xff]
  %v1135 = vld [vmem:[%s3 + $0x8d8] sm:$0xff]
  %v1136 = vld [vmem:[%s3 + $0x8e0] sm:$0xff]
  %v1137 = vld [vmem:[%s3 + $0x8e8] sm:$0xff]
  %v1138 = vld [vmem:[%s3 + $0x8f0] sm:$0xff]
  %v1139 = vld [vmem:[%s3 + $0x8f8] sm:$0xff]
  %v1140 = vld [vmem:[%s3 + $0x900] sm:$0xff]
  %v1141 = vld [vmem:[%s3 + $0x908] sm:$0xff]
  %v1142 = vld [vmem:[%s3 + $0x910] sm:$0xff]
  %v1143 = vld [vmem:[%s3 + $0x918] sm:$0xff]
  %v1144 = vld [vmem:[%s3 + $0x920] sm:$0xff]
  %v1145 = vld [vmem:[%s3 + $0x928] sm:$0xff]
  %v1146 = vld [vmem:[%s3 + $0x930] sm:$0xff]
  %v1147 = vld [vmem:[%s3 + $0x938] sm:$0xff]
  %v1148 = vld [vmem:[%s3 + $0x940] sm:$0xff]
  %v1149 = vld [vmem:[%s3 + $0x948] sm:$0xff]
  %v1150 = vld [vmem:[%s3 + $0x950] sm:$0xff]
  %v1151 = vld [vmem:[%s3 + $0x958] sm:$0xff]
  %v1152 = vld [vmem:[%s3 + $0x960] sm:$0xff]
  %v1153 = vld [vmem:[%s3 + $0x968] sm:$0xff]
  %v1154 = vld [vmem:[%s3 + $0x970] sm:$0xff]
  %v1155 = vld [vmem:[%s3 + $0x978] sm:$0xff]
  %v1156 = vld [vmem:[%s3 + $0x980] sm:$0xff]
  %v1157 = vld [vmem:[%s3 + $0x988] sm:$0xff]
  %v1158 = vld [vmem:[%s3 + $0x990] sm:$0xff]
  %v1159 = vld [vmem:[%s3 + $0x998] sm:$0xff]
  %v1160 = vld [vmem:[%s3 + $0x9a0] sm:$0xff]
  %v1161 = vld [vmem:[%s3 + $0x9a8] sm:$0xff]
  %v1162 = vld [vmem:[%s3 + $0x9b0] sm:$0xff]
  %v1163 = vld [vmem:[%s3 + $0x9b8] sm:$0xff]
  %v1164 = vld [vmem:[%s3 + $0x9c0] sm:$0xff]
  %v1165 = vld [vmem:[%s3 + $0x9c8] sm:$0xff]
  %v1166 = vld [vmem:[%s3 + $0x9d0] sm:$0xff]
  %v1167 = vld [vmem:[%s3 + $0x9d8] sm:$0xff]
  %v1168 = vld [vmem:[%s3 + $0x9e0] sm:$0xff]
  %v1169 = vld [vmem:[%s3 + $0x9e8] sm:$0xff]
  %v1170 = vld [vmem:[%s3 + $0x9f0] sm:$0xff]
  %v1171 = vld [vmem:[%s3 + $0x9f8] sm:$0xff]
  %v1172 = vld [vmem:[%s3 + $0xa00] sm:$0xff]
  %v1173 = vld [vmem:[%s3 + $0xa08] sm:$0xff]
  %v1174 = vld [vmem:[%s3 + $0xa10] sm:$0xff]
  %v1175 = vld [vmem:[%s3 + $0xa18] sm:$0xff]
  %v1176 = vld [vmem:[%s3 + $0xa20] sm:$0xff]
  %v1177 = vld [vmem:[%s3 + $0xa28] sm:$0xff]
  %v1178 = vld [vmem:[%s3 + $0xa30] sm:$0xff]
  %v1179 = vld [vmem:[%s3 + $0xa38] sm:$0xff]
  %v1180 = vld [vmem:[%s3 + $0xa40] sm:$0xff]
  %v1181 = vld [vmem:[%s3 + $0xa48] sm:$0xff]
  %v1182 = vld [vmem:[%s3 + $0xa50] sm:$0xff]
  %v1183 = vld [vmem:[%s3 + $0xa58] sm:$0xff]
  %v1184 = vld [vmem:[%s3 + $0xa60] sm:$0xff]
  %v1185 = vld [vmem:[%s3 + $0xa68] sm:$0xff]
  %v1186 = vld [vmem:[%s3 + $0xa70] sm:$0xff]
  %v1187 = vld [vmem:[%s3 + $0xa78] sm:$0xff]
  %v1188 = vld [vmem:[%s3 + $0xa80] sm:$0xff]
  %v1189 = vld [vmem:[%s3 + $0xa88] sm:$0xff]
  %v1190 = vld [vmem:[%s3 + $0xa90] sm:$0xff]
  %v1191 = vld [vmem:[%s3 + $0xa98] sm:$0xff]
  %v1192 = vld [vmem:[%s3 + $0xaa0] sm:$0xff]
  %v1193 = vld [vmem:[%s3 + $0xaa8] sm:$0xff]
  %v1194 = vld [vmem:[%s3 + $0xab0] sm:$0xff]
  %v1195 = vld [vmem:[%s3 + $0xab8] sm:$0xff]
  %v1196 = vld [vmem:[%s3 + $0xac0] sm:$0xff]
  %v1197 = vld [vmem:[%s3 + $0xac8] sm:$0xff]
  %v1198 = vld [vmem:[%s3 + $0xad0] sm:$0xff]
  %v1199 = vld [vmem:[%s3 + $0xad8] sm:$0xff]
  %v1200 = vld [vmem:[%s3 + $0xae0] sm:$0xff]
  %v1201 = vld [vmem:[%s3 + $0xae8] sm:$0xff]
  %v1202 = vld [vmem:[%s3 + $0xaf0] sm:$0xff]
  %v1203 = vld [vmem:[%s3 + $0xaf8] sm:$0xff]
  %v1204 = vld [vmem:[%s3 + $0xb00] sm:$0xff]
  %v1205 = vld [vmem:[%s3 + $0xb08] sm:$0xff]
  %v1206 = vld [vmem:[%s3 + $0xb10] sm:$0xff]
  %v1207 = vld [vmem:[%s3 + $0xb18] sm:$0xff]
  %v1208 = vld [vmem:[%s3 + $0xb20] sm:$0xff]
  %v1209 = vld [vmem:[%s3 + $0xb28] sm:$0xff]
  %v1210 = vld [vmem:[%s3 + $0xb30] sm:$0xff]
  %v1211 = vld [vmem:[%s3 + $0xb38] sm:$0xff]
  %v1212 = vld [vmem:[%s3 + $0xb40] sm:$0xff]
  %v1213 = vld [vmem:[%s3 + $0xb48] sm:$0xff]
  %v1214 = vld [vmem:[%s3 + $0xb50] sm:$0xff]
  %v1215 = vld [vmem:[%s3 + $0xb58] sm:$0xff]
  %v1216 = vld [vmem:[%s3 + $0xb60] sm:$0xff]
  %v1217 = vld [vmem:[%s3 + $0xb68] sm:$0xff]
  %v1218 = vld [vmem:[%s3 + $0xb70] sm:$0xff]
  %v1219 = vld [vmem:[%s3 + $0xb78] sm:$0xff]
  %v1220 = vld [vmem:[%s3 + $0xb80] sm:$0xff]
  %v1221 = vld [vmem:[%s3 + $0xb88] sm:$0xff]
  %v1222 = vld [vmem:[%s3 + $0xb90] sm:$0xff]
  %v1223 = vld [vmem:[%s3 + $0xb98] sm:$0xff]
  %v1224 = vld [vmem:[%s3 + $0xba0] sm:$0xff]
  %v1225 = vld [vmem:[%s3 + $0xba8] sm:$0xff]
  %v1226 = vld [vmem:[%s3 + $0xbb0] sm:$0xff]
  %v1227 = vld [vmem:[%s3 + $0xbb8] sm:$0xff]
  %v1228 = vld [vmem:[%s3 + $0xbc0] sm:$0xff]
  %v1229 = vld [vmem:[%s3 + $0xbc8] sm:$0xff]
  %v1230 = vld [vmem:[%s3 + $0xbd0] sm:$0xff]
  %v1231 = vld [vmem:[%s3 + $0xbd8] sm:$0xff]
  %v1232 = vld [vmem:[%s3 + $0xbe0] sm:$0xff]
  %v1233 = vld [vmem:[%s3 + $0xbe8] sm:$0xff]
  %v1234 = vld [vmem:[%s3 + $0xbf0] sm:$0xff]
  %v1235 = vld [vmem:[%s3 + $0xbf8] sm:$0xff]
  %v1236 = vld [vmem:[%s3 + $0xc00] sm:$0xff]
  %v1237 = vld [vmem:[%s3 + $0xc08] sm:$0xff]
  %v1238 = vld [vmem:[%s3 + $0xc10] sm:$0xff]
  %v1239 = vld [vmem:[%s3 + $0xc18] sm:$0xff]
  %v1240 = vld [vmem:[%s3 + $0xc20] sm:$0xff]
  %v1241 = vld [vmem:[%s3 + $0xc28] sm:$0xff]
  %v1242 = vld [vmem:[%s3 + $0xc30] sm:$0xff]
  %v1243 = vld [vmem:[%s3 + $0xc38] sm:$0xff]
  %v1244 = vld [vmem:[%s3 + $0xc40] sm:$0xff]
  %v1245 = vld [vmem:[%s3 + $0xc48] sm:$0xff]
  %v1246 = vld [vmem:[%s3 + $0xc50] sm:$0xff]
  %v1247 = vld [vmem:[%s3 + $0xc58] sm:$0xff]
  %v1248 = vld [vmem:[%s3 + $0xc60] sm:$0xff]
  %v1249 = vld [vmem:[%s3 + $0xc68] sm:$0xff]
  %v1250 = vld [vmem:[%s3 + $0xc70] sm:$0xff]
  %v1251 = vld [vmem:[%s3 + $0xc78] sm:$0xff]
  %v1252 = vld [vmem:[%s3 + $0xc80] sm:$0xff]
  %v1253 = vld [vmem:[%s3 + $0xc88] sm:$0xff]
  %v1254 = vld [vmem:[%s3 + $0xc90] sm:$0xff]
  %v1255 = vld [vmem:[%s3 + $0xc98] sm:$0xff]
  %v1256 = vld [vmem:[%s3 + $0xca0] sm:$0xff]
  %v1257 = vld [vmem:[%s3 + $0xca8] sm:$0xff]
  %v1258 = vld [vmem:[%s3 + $0xcb0] sm:$0xff]
  %v1259 = vld [vmem:[%s3 + $0xcb8] sm:$0xff]
  %v1260 = vld [vmem:[%s3 + $0xcc0] sm:$0xff]
  %v1261 = vld [vmem:[%s3 + $0xcc8] sm:$0xff]
  %v1262 = vld [vmem:[%s3 + $0xcd0] sm:$0xff]
  %v1263 = vld [vmem:[%s3 + $0xcd8] sm:$0xff]
  %v1264 = vld [vmem:[%s3 + $0xce0] sm:$0xff]
  %v1265 = vld [vmem:[%s3 + $0xce8] sm:$0xff]
  %v1266 = vld [vmem:[%s3 + $0xcf0] sm:$0xff]
  %v1267 = vld [vmem:[%s3 + $0xcf8] sm:$0xff]
  %v1268 = vld [vmem:[%s3 + $0xd00] sm:$0xff]
  %v1269 = vld [vmem:[%s3 + $0xd08] sm:$0xff]
  %v1270 = vld [vmem:[%s3 + $0xd10] sm:$0xff]
  %v1271 = vld [vmem:[%s3 + $0xd18] sm:$0xff]
  %v1272 = vld [vmem:[%s3 + $0xd20] sm:$0xff]
  %v1273 = vld [vmem:[%s3 + $0xd28] sm:$0xff]
  %v1274 = vld [vmem:[%s3 + $0xd30] sm:$0xff]
  %v1275 = vld [vmem:[%s3 + $0xd38] sm:$0xff]
  %v1276 = vld [vmem:[%s3 + $0xd40] sm:$0xff]
  %v1277 = vld [vmem:[%s3 + $0xd48] sm:$0xff]
  %v1278 = vld [vmem:[%s3 + $0xd50] sm:$0xff]
  %v1279 = vld [vmem:[%s3 + $0xd58] sm:$0xff]
  %v1280 = vld [vmem:[%s3 + $0xd60] sm:$0xff]
  %v1281 = vld [vmem:[%s3 + $0xd68] sm:$0xff]
  %v1282 = vld [vmem:[%s3 + $0xd70] sm:$0xff]
  %v1283 = vld [vmem:[%s3 + $0xd78] sm:$0xff]
  %v1284 = vld [vmem:[%s3 + $0xd80] sm:$0xff]
  %v1285 = vld [vmem:[%s3 + $0xd88] sm:$0xff]
  %v1286 = vld [vmem:[%s3 + $0xd90] sm:$0xff]
  %v1287 = vld [vmem:[%s3 + $0xd98] sm:$0xff]
  %v1288 = vld [vmem:[%s3 + $0xda0] sm:$0xff]
  %v1289 = vld [vmem:[%s3 + $0xda8] sm:$0xff]
  %v1290 = vld [vmem:[%s3 + $0xdb0] sm:$0xff]
  %v1291 = vld [vmem:[%s3 + $0xdb8] sm:$0xff]
  %v1292 = vld [vmem:[%s3 + $0xdc0] sm:$0xff]
  %v1293 = vld [vmem:[%s3 + $0xdc8] sm:$0xff]
  %v1294 = vld [vmem:[%s3 + $0xdd0] sm:$0xff]
  %v1295 = vld [vmem:[%s3 + $0xdd8] sm:$0xff]
  %v1296 = vld [vmem:[%s3 + $0xde0] sm:$0xff]
  %v1297 = vld [vmem:[%s3 + $0xde8] sm:$0xff]
  %v1298 = vld [vmem:[%s3 + $0xdf0] sm:$0xff]
  %v1299 = vld [vmem:[%s3 + $0xdf8] sm:$0xff]
  %v1300 = vld [vmem:[%s3 + $0xe00] sm:$0xff]
  %v1301 = vld [vmem:[%s3 + $0xe08] sm:$0xff]
  %v1302 = vld [vmem:[%s3 + $0xe10] sm:$0xff]
  %v1303 = vld [vmem:[%s3 + $0xe18] sm:$0xff]
  %v1304 = vld [vmem:[%s3 + $0xe20] sm:$0xff]
  %v1305 = vld [vmem:[%s3 + $0xe28] sm:$0xff]
  %v1306 = vld [vmem:[%s3 + $0xe30] sm:$0xff]
  %v1307 = vld [vmem:[%s3 + $0xe38] sm:$0xff]
  %v1308 = vld [vmem:[%s3 + $0xe40] sm:$0xff]
  %v1309 = vld [vmem:[%s3 + $0xe48] sm:$0xff]
  %v1310 = vld [vmem:[%s3 + $0xe50] sm:$0xff]
  %v1311 = vld [vmem:[%s3 + $0xe58] sm:$0xff]
  %v1312 = vld [vmem:[%s3 + $0xe60] sm:$0xff]
  %v1313 = vld [vmem:[%s3 + $0xe68] sm:$0xff]
  %v1314 = vld [vmem:[%s3 + $0xe70] sm:$0xff]
  %v1315 = vld [vmem:[%s3 + $0xe78] sm:$0xff]
  %v1316 = vld [vmem:[%s3 + $0xe80] sm:$0xff]
  %v1317 = vld [vmem:[%s3 + $0xe88] sm:$0xff]
  %v1318 = vld [vmem:[%s3 + $0xe90] sm:$0xff]
  %v1319 = vld [vmem:[%s3 + $0xe98] sm:$0xff]
  %v1320 = vld [vmem:[%s3 + $0xea0] sm:$0xff]
  %v1321 = vld [vmem:[%s3 + $0xea8] sm:$0xff]
  %v1322 = vld [vmem:[%s3 + $0xeb0] sm:$0xff]
  %v1323 = vld [vmem:[%s3 + $0xeb8] sm:$0xff]
  %v1324 = vld [vmem:[%s3 + $0xec0] sm:$0xff]
  %v1325 = vld [vmem:[%s3 + $0xec8] sm:$0xff]
  %v1326 = vld [vmem:[%s3 + $0xed0] sm:$0xff]
  %v1327 = vld [vmem:[%s3 + $0xed8] sm:$0xff]
  %v1328 = vld [vmem:[%s3 + $0xee0] sm:$0xff]
  %v1329 = vld [vmem:[%s3 + $0xee8] sm:$0xff]
  %v1330 = vld [vmem:[%s3 + $0xef0] sm:$0xff]
  %v1331 = vld [vmem:[%s3 + $0xef8] sm:$0xff]
  %v1332 = vld [vmem:[%s3 + $0xf00] sm:$0xff]
  %v1333 = vld [vmem:[%s3 + $0xf08] sm:$0xff]
  %v1334 = vld [vmem:[%s3 + $0xf10] sm:$0xff]
  %v1335 = vld [vmem:[%s3 + $0xf18] sm:$0xff]
  %v1336 = vld [vmem:[%s3 + $0xf20] sm:$0xff]
  %v1337 = vld [vmem:[%s3 + $0xf28] sm:$0xff]
  %v1338 = vld [vmem:[%s3 + $0xf30] sm:$0xff]
  %v1339 = vld [vmem:[%s3 + $0xf38] sm:$0xff]
  %v1340 = vld [vmem:[%s3 + $0xf40] sm:$0xff]
  %v1341 = vld [vmem:[%s3 + $0xf48] sm:$0xff]
  %v1342 = vld [vmem:[%s3 + $0xf50] sm:$0xff]
  %v1343 = vld [vmem:[%s3 + $0xf58] sm:$0xff]
  %v1344 = vld [vmem:[%s3 + $0xf60] sm:$0xff]
  %v1345 = vld [vmem:[%s3 + $0xf68] sm:$0xff]
  %v1346 = vld [vmem:[%s3 + $0xf70] sm:$0xff]
  %v1347 = vld [vmem:[%s3 + $0xf78] sm:$0xff]
  %v1348 = vld [vmem:[%s3 + $0xf80] sm:$0xff]
  %v1349 = vld [vmem:[%s3 + $0xf88] sm:$0xff]
  %v1350 = vld [vmem:[%s3 + $0xf90] sm:$0xff]
  %v1351 = vld [vmem:[%s3 + $0xf98] sm:$0xff]
  %v1352 = vld [vmem:[%s3 + $0xfa0] sm:$0xff]
  %v1353 = vld [vmem:[%s3 + $0xfa8] sm:$0xff]
  %v1354 = vld [vmem:[%s3 + $0xfb0] sm:$0xff]
  %v1355 = vld [vmem:[%s3 + $0xfb8] sm:$0xff]
  %v1356 = vld [vmem:[%s3 + $0xfc0] sm:$0xff]
  %v1357 = vld [vmem:[%s3 + $0xfc8] sm:$0xff]
  %v1358 = vld [vmem:[%s3 + $0xfd0] sm:$0xff]
  %v1359 = vld [vmem:[%s3 + $0xfd8] sm:$0xff]
  %v1360 = vld [vmem:[%s3 + $0xfe0] sm:$0xff]
  %v1361 = vld [vmem:[%s3 + $0xfe8] sm:$0xff]
  %v1362 = vld [vmem:[%s3 + $0xff0] sm:$0xff]
  %v1363 = vld [vmem:[%s3 + $0xff8] sm:$0xff]
  %v1364 = vld [vmem:[%s3 + $0x1000] sm:$0xff]
  %v1365 = vld [vmem:[%s3 + $0x1008] sm:$0xff]
  %v1366 = vld [vmem:[%s3 + $0x1010] sm:$0xff]
  %v1367 = vld [vmem:[%s3 + $0x1018] sm:$0xff]
  %v1368 = vld [vmem:[%s3 + $0x1020] sm:$0xff]
  %v1369 = vld [vmem:[%s3 + $0x1028] sm:$0xff]
  %v1370 = vld [vmem:[%s3 + $0x1030] sm:$0xff]
  %v1371 = vld [vmem:[%s3 + $0x1038] sm:$0xff]
  %v1372 = vld [vmem:[%s3 + $0x1040] sm:$0xff]
  %v1373 = vld [vmem:[%s3 + $0x1048] sm:$0xff]
  %v1374 = vld [vmem:[%s3 + $0x1050] sm:$0xff]
  %v1375 = vld [vmem:[%s3 + $0x1058] sm:$0xff]
  %v1376 = vld [vmem:[%s3 + $0x1060] sm:$0xff]
  %v1377 = vld [vmem:[%s3 + $0x1068] sm:$0xff]
  %v1378 = vld [vmem:[%s3 + $0x1070] sm:$0xff]
  %v1379 = vld [vmem:[%s3 + $0x1078] sm:$0xff]
  %v1380 = vld [vmem:[%s3 + $0x1080] sm:$0xff]
  %v1381 = vld [vmem:[%s3 + $0x1088] sm:$0xff]
  %v1382 = vld [vmem:[%s3 + $0x1090] sm:$0xff]
  %v1383 = vld [vmem:[%s3 + $0x1098] sm:$0xff]
  %v1384 = vld [vmem:[%s3 + $0x10a0] sm:$0xff]
  %v1385 = vld [vmem:[%s3 + $0x10a8] sm:$0xff]
  %v1386 = vld [vmem:[%s3 + $0x10b0] sm:$0xff]
  %v1387 = vld [vmem:[%s3 + $0x10b8] sm:$0xff]
  %v1388 = vld [vmem:[%s3 + $0x10c0] sm:$0xff]
  %v1389 = vld [vmem:[%s3 + $0x10c8] sm:$0xff]
  %v1390 = vld [vmem:[%s3 + $0x10d0] sm:$0xff]
  %v1391 = vld [vmem:[%s3 + $0x10d8] sm:$0xff]
  %v1392 = vld [vmem:[%s3 + $0x10e0] sm:$0xff]
  %v1393 = vld [vmem:[%s3 + $0x10e8] sm:$0xff]
  %v1394 = vld [vmem:[%s3 + $0x10f0] sm:$0xff]
  %v1395 = vld [vmem:[%s3 + $0x10f8] sm:$0xff]
  %v1396 = vld [vmem:[%s3 + $0x1100] sm:$0xff]
  %v1397 = vld [vmem:[%s3 + $0x1108] sm:$0xff]
  %v1398 = vld [vmem:[%s3 + $0x1110] sm:$0xff]
  %v1399 = vld [vmem:[%s3 + $0x1118] sm:$0xff]
  %v1400 = vld [vmem:[%s3 + $0x1120] sm:$0xff]
  %v1401 = vld [vmem:[%s3 + $0x1128] sm:$0xff]
  %v1402 = vld [vmem:[%s3 + $0x1130] sm:$0xff]
  %v1403 = vld [vmem:[%s3 + $0x1138] sm:$0xff]
  %v1404 = vld [vmem:[%s3 + $0x1140] sm:$0xff]
  %v1405 = vld [vmem:[%s3 + $0x1148] sm:$0xff]
  %v1406 = vld [vmem:[%s3 + $0x1150] sm:$0xff]
  %v1407 = vld [vmem:[%s3 + $0x1158] sm:$0xff]
  %v1408 = vld [vmem:[%s3 + $0x1160] sm:$0xff]
  %v1409 = vld [vmem:[%s3 + $0x1168] sm:$0xff]
  %v1410 = vld [vmem:[%s3 + $0x1170] sm:$0xff]
  %v1411 = vld [vmem:[%s3 + $0x1178] sm:$0xff]
  %v1412 = vld [vmem:[%s3 + $0x1180] sm:$0xff]
  %v1413 = vld [vmem:[%s3 + $0x1188] sm:$0xff]
  %v1414 = vld [vmem:[%s3 + $0x1190] sm:$0xff]
  %v1415 = vld [vmem:[%s3 + $0x1198] sm:$0xff]
  %v1416 = vld [vmem:[%s3 + $0x11a0] sm:$0xff]
  %v1417 = vld [vmem:[%s3 + $0x11a8] sm:$0xff]
  %v1418 = vld [vmem:[%s3 + $0x11b0] sm:$0xff]
  %v1419 = vld [vmem:[%s3 + $0x11b8] sm:$0xff]
  %v1420 = vld [vmem:[%s3 + $0x11c0] sm:$0xff]
  %v1421 = vld [vmem:[%s3 + $0x11c8] sm:$0xff]
  %v1422 = vld [vmem:[%s3 + $0x11d0] sm:$0xff]
  %v1423 = vld [vmem:[%s3 + $0x11d8] sm:$0xff]
  %v1424 = vld [vmem:[%s3 + $0x11e0] sm:$0xff]
  %v1425 = vld [vmem:[%s3 + $0x11e8] sm:$0xff]
  %v1426 = vld [vmem:[%s3 + $0x11f0] sm:$0xff]
  %v1427 = vld [vmem:[%s3 + $0x11f8] sm:$0xff]
  %v1428 = vld [vmem:[%s3 + $0x1200] sm:$0xff]
  %v1429 = vld [vmem:[%s3 + $0x1208] sm:$0xff]
  %v1430 = vld [vmem:[%s3 + $0x1210] sm:$0xff]
  %v1431 = vld [vmem:[%s3 + $0x1218] sm:$0xff]
  %v1432 = vld [vmem:[%s3 + $0x1220] sm:$0xff]
  %v1433 = vld [vmem:[%s3 + $0x1228] sm:$0xff]
  %v1434 = vld [vmem:[%s3 + $0x1230] sm:$0xff]
  %v1435 = vld [vmem:[%s3 + $0x1238] sm:$0xff]
  %v1436 = vld [vmem:[%s3 + $0x1240] sm:$0xff]
  %v1437 = vld [vmem:[%s3 + $0x1248] sm:$0xff]
  %v1438 = vld [vmem:[%s3 + $0x1250] sm:$0xff]
  %v1439 = vld [vmem:[%s3 + $0x1258] sm:$0xff]
  %v1440 = vld [vmem:[%s3 + $0x1260] sm:$0xff]
  %v1441 = vld [vmem:[%s3 + $0x1268] sm:$0xff]
  %v1442 = vld [vmem:[%s3 + $0x1270] sm:$0xff]
  %v1443 = vld [vmem:[%s3 + $0x1278] sm:$0xff]
  %v1444 = vld [vmem:[%s3 + $0x1280] sm:$0xff]
  %v1445 = vld [vmem:[%s3 + $0x1288] sm:$0xff]
  %v1446 = vld [vmem:[%s3 + $0x1290] sm:$0xff]
  %v1447 = vld [vmem:[%s3 + $0x1298] sm:$0xff]
  %v1448 = vld [vmem:[%s3 + $0x12a0] sm:$0xff]
  %v1449 = vld [vmem:[%s3 + $0x12a8] sm:$0xff]
  %v1450 = vld [vmem:[%s3 + $0x12b0] sm:$0xff]
  %v1451 = vld [vmem:[%s3 + $0x12b8] sm:$0xff]
  %v1452 = vld [vmem:[%s3 + $0x12c0] sm:$0xff]
  %v1453 = vld [vmem:[%s3 + $0x12c8] sm:$0xff]
  %v1454 = vld [vmem:[%s3 + $0x12d0] sm:$0xff]
  %v1455 = vld [vmem:[%s3 + $0x12d8] sm:$0xff]
  %v1456 = vld [vmem:[%s3 + $0x12e0] sm:$0xff]
  %v1457 = vld [vmem:[%s3 + $0x12e8] sm:$0xff]
  %v1458 = vld [vmem:[%s3 + $0x12f0] sm:$0xff]
  %v1459 = vld [vmem:[%s3 + $0x12f8] sm:$0xff]
  %v1460 = vld [vmem:[%s3 + $0x1300] sm:$0xff]
  %v1461 = vld [vmem:[%s3 + $0x1308] sm:$0xff]
  %v1462 = vld [vmem:[%s3 + $0x1310] sm:$0xff]
  %v1463 = vld [vmem:[%s3 + $0x1318] sm:$0xff]
  %v1464 = vld [vmem:[%s3 + $0x1320] sm:$0xff]
  %v1465 = vld [vmem:[%s3 + $0x1328] sm:$0xff]
  %v1466 = vld [vmem:[%s3 + $0x1330] sm:$0xff]
  %v1467 = vld [vmem:[%s3 + $0x1338] sm:$0xff]
  %v1468 = vld [vmem:[%s3 + $0x1340] sm:$0xff]
  %v1469 = vld [vmem:[%s3 + $0x1348] sm:$0xff]
  %v1470 = vld [vmem:[%s3 + $0x1350] sm:$0xff]
  %v1471 = vld [vmem:[%s3 + $0x1358] sm:$0xff]
  %v1472 = vld [vmem:[%s3 + $0x1360] sm:$0xff]
  %v1473 = vld [vmem:[%s3 + $0x1368] sm:$0xff]
  %v1474 = vld [vmem:[%s3 + $0x1370] sm:$0xff]
  %v1475 = vld [vmem:[%s3 + $0x1378] sm:$0xff]
  %v1476 = vld [vmem:[%s3 + $0x1380] sm:$0xff]
  %v1477 = vld [vmem:[%s3 + $0x1388] sm:$0xff]
  %v1478 = vld [vmem:[%s3 + $0x1390] sm:$0xff]
  %v1479 = vld [vmem:[%s3 + $0x1398] sm:$0xff]
  %v1480 = vld [vmem:[%s3 + $0x13a0] sm:$0xff]
  %v1481 = vld [vmem:[%s3 + $0x13a8] sm:$0xff]
  %v1482 = vld [vmem:[%s3 + $0x13b0] sm:$0xff]
  %v1483 = vld [vmem:[%s3 + $0x13b8] sm:$0xff]
  %v1484 = vld [vmem:[%s3 + $0x13c0] sm:$0xff]
  %v1485 = vld [vmem:[%s3 + $0x13c8] sm:$0xff]
  %v1486 = vld [vmem:[%s3 + $0x13d0] sm:$0xff]
  %v1487 = vld [vmem:[%s3 + $0x13d8] sm:$0xff]
  %v1488 = vld [vmem:[%s3 + $0x13e0] sm:$0xff]
  %v1489 = vld [vmem:[%s3 + $0x13e8] sm:$0xff]
  %v1490 = vld [vmem:[%s3 + $0x13f0] sm:$0xff]
  %v1491 = vld [vmem:[%s3 + $0x13f8] sm:$0xff]
  %v1492 = vld [vmem:[%s3 + $0x1400] sm:$0xff]
  %v1493 = vld [vmem:[%s3 + $0x1408] sm:$0xff]
  %v1494 = vld [vmem:[%s3 + $0x1410] sm:$0xff]
  %v1495 = vld [vmem:[%s3 + $0x1418] sm:$0xff]
  %v1496 = vld [vmem:[%s3 + $0x1420] sm:$0xff]
  %v1497 = vld [vmem:[%s3 + $0x1428] sm:$0xff]
  %v1498 = vld [vmem:[%s3 + $0x1430] sm:$0xff]
  %v1499 = vld [vmem:[%s3 + $0x1438] sm:$0xff]
  %v1500 = vld [vmem:[%s3 + $0x1440] sm:$0xff]
  %v1501 = vld [vmem:[%s3 + $0x1448] sm:$0xff]
  %v1502 = vld [vmem:[%s3 + $0x1450] sm:$0xff]
  %v1503 = vld [vmem:[%s3 + $0x1458] sm:$0xff]
  %v1504 = vld [vmem:[%s3 + $0x1460] sm:$0xff]
  %v1505 = vld [vmem:[%s3 + $0x1468] sm:$0xff]
  %v1506 = vld [vmem:[%s3 + $0x1470] sm:$0xff]
  %v1507 = vld [vmem:[%s3 + $0x1478] sm:$0xff]
  %v1508 = vld [vmem:[%s3 + $0x1480] sm:$0xff]
  %v1509 = vld [vmem:[%s3 + $0x1488] sm:$0xff]
  %v1510 = vld [vmem:[%s3 + $0x1490] sm:$0xff]
  %v1511 = vld [vmem:[%s3 + $0x1498] sm:$0xff]
  %v1512 = vld [vmem:[%s3 + $0x14a0] sm:$0xff]
  %v1513 = vld [vmem:[%s3 + $0x14a8] sm:$0xff]
  %v1514 = vld [vmem:[%s3 + $0x14b0] sm:$0xff]
  %v1515 = vld [vmem:[%s3 + $0x14b8] sm:$0xff]
  %v1516 = vld [vmem:[%s3 + $0x14c0] sm:$0xff]
  %v1517 = vld [vmem:[%s3 + $0x14c8] sm:$0xff]
  %v1518 = vld [vmem:[%s3 + $0x14d0] sm:$0xff]
  %v1519 = vld [vmem:[%s3 + $0x14d8] sm:$0xff]
  %v1520 = vld [vmem:[%s3 + $0x14e0] sm:$0xff]
  %v1521 = vld [vmem:[%s3 + $0x14e8] sm:$0xff]
  %v1522 = vld [vmem:[%s3 + $0x14f0] sm:$0xff]
  %v1523 = vld [vmem:[%s3 + $0x14f8] sm:$0xff]
  %v1524 = vld [vmem:[%s3 + $0x1500] sm:$0xff]
  %v1525 = vld [vmem:[%s3 + $0x1508] sm:$0xff]
  %v1526 = vld [vmem:[%s3 + $0x1510] sm:$0xff]
  %v1527 = vld [vmem:[%s3 + $0x1518] sm:$0xff]
  %v1528 = vld [vmem:[%s3 + $0x1520] sm:$0xff]
  %v1529 = vld [vmem:[%s3 + $0x1528] sm:$0xff]
  %v1530 = vld [vmem:[%s3 + $0x1530] sm:$0xff]
  %v1531 = vld [vmem:[%s3 + $0x1538] sm:$0xff]
  %v1532 = vld [vmem:[%s3 + $0x1540] sm:$0xff]
  %v1533 = vld [vmem:[%s3 + $0x1548] sm:$0xff]
  %v1534 = vld [vmem:[%s3 + $0x1550] sm:$0xff]
  %v1535 = vld [vmem:[%s3 + $0x1558] sm:$0xff]
  %v1536 = vld [vmem:[%s3 + $0x1560] sm:$0xff]
  %v1537 = vld [vmem:[%s3 + $0x1568] sm:$0xff]
  %v1538 = vld [vmem:[%s3 + $0x1570] sm:$0xff]
  %v1539 = vld [vmem:[%s3 + $0x1578] sm:$0xff]
  %v1540 = vld [vmem:[%s3 + $0x1580] sm:$0xff]
  %v1541 = vld [vmem:[%s3 + $0x1588] sm:$0xff]
  %v1542 = vld [vmem:[%s3 + $0x1590] sm:$0xff]
  %v1543 = vld [vmem:[%s3 + $0x1598] sm:$0xff]
  %v1544 = vld [vmem:[%s3 + $0x15a0] sm:$0xff]
  %v1545 = vld [vmem:[%s3 + $0x15a8] sm:$0xff]
  %v1546 = vld [vmem:[%s3 + $0x15b0] sm:$0xff]
  %v1547 = vld [vmem:[%s3 + $0x15b8] sm:$0xff]
  %v1548 = vld [vmem:[%s3 + $0x15c0] sm:$0xff]
  %v1549 = vld [vmem:[%s3 + $0x15c8] sm:$0xff]
  %v1550 = vld [vmem:[%s3 + $0x15d0] sm:$0xff]
  %v1551 = vld [vmem:[%s3 + $0x15d8] sm:$0xff]
  %v1552 = vld [vmem:[%s3 + $0x15e0] sm:$0xff]
  %v1553 = vld [vmem:[%s3 + $0x15e8] sm:$0xff]
  %v1554 = vld [vmem:[%s3 + $0x15f0] sm:$0xff]
  %v1555 = vld [vmem:[%s3 + $0x15f8] sm:$0xff]
  %v1556 = vld [vmem:[%s3 + $0x1600] sm:$0xff]
  %v1557 = vld [vmem:[%s3 + $0x1608] sm:$0xff]
  %v1558 = vld [vmem:[%s3 + $0x1610] sm:$0xff]
  %v1559 = vld [vmem:[%s3 + $0x1618] sm:$0xff]
  %v1560 = vld [vmem:[%s3 + $0x1620] sm:$0xff]
  %v1561 = vld [vmem:[%s3 + $0x1628] sm:$0xff]
  %v1562 = vld [vmem:[%s3 + $0x1630] sm:$0xff]
  %v1563 = vld [vmem:[%s3 + $0x1638] sm:$0xff]
  %v1564 = vld [vmem:[%s3 + $0x1640] sm:$0xff]
  %v1565 = vld [vmem:[%s3 + $0x1648] sm:$0xff]
  %v1566 = vld [vmem:[%s3 + $0x1650] sm:$0xff]
  %v1567 = vld [vmem:[%s3 + $0x1658] sm:$0xff]
  %v1568 = vld [vmem:[%s3 + $0x1660] sm:$0xff]
  %v1569 = vld [vmem:[%s3 + $0x1668] sm:$0xff]
  %v1570 = vld [vmem:[%s3 + $0x1670] sm:$0xff]
  %v1571 = vld [vmem:[%s3 + $0x1678] sm:$0xff]
  %v1572 = vld [vmem:[%s3 + $0x1680] sm:$0xff]
  %v1573 = vld [vmem:[%s3 + $0x1688] sm:$0xff]
  %v1574 = vld [vmem:[%s3 + $0x1690] sm:$0xff]
  %v1575 = vld [vmem:[%s3 + $0x1698] sm:$0xff]
  %v1576 = vld [vmem:[%s3 + $0x16a0] sm:$0xff]
  %v1577 = vld [vmem:[%s3 + $0x16a8] sm:$0xff]
  %v1578 = vld [vmem:[%s3 + $0x16b0] sm:$0xff]
  %v1579 = vld [vmem:[%s3 + $0x16b8] sm:$0xff]
  %v1580 = vld [vmem:[%s3 + $0x16c0] sm:$0xff]
  %v1581 = vld [vmem:[%s3 + $0x16c8] sm:$0xff]
  %v1582 = vld [vmem:[%s3 + $0x16d0] sm:$0xff]
  %v1583 = vld [vmem:[%s3 + $0x16d8] sm:$0xff]
  %v1584 = vld [vmem:[%s3 + $0x16e0] sm:$0xff]
  %v1585 = vld [vmem:[%s3 + $0x16e8] sm:$0xff]
  %v1586 = vld [vmem:[%s3 + $0x16f0] sm:$0xff]
  %v1587 = vld [vmem:[%s3 + $0x16f8] sm:$0xff]
  %v1588 = vld [vmem:[%s3 + $0x1700] sm:$0xff]
  %v1589 = vld [vmem:[%s3 + $0x1708] sm:$0xff]
  %v1590 = vld [vmem:[%s3 + $0x1710] sm:$0xff]
  %v1591 = vld [vmem:[%s3 + $0x1718] sm:$0xff]
  %v1592 = vld [vmem:[%s3 + $0x1720] sm:$0xff]
  %v1593 = vld [vmem:[%s3 + $0x1728] sm:$0xff]
  %v1594 = vld [vmem:[%s3 + $0x1730] sm:$0xff]
  %v1595 = vld [vmem:[%s3 + $0x1738] sm:$0xff]
  %v1596 = vld [vmem:[%s3 + $0x1740] sm:$0xff]
  %v1597 = vld [vmem:[%s3 + $0x1748] sm:$0xff]
  %v1598 = vld [vmem:[%s3 + $0x1750] sm:$0xff]
  %v1599 = vld [vmem:[%s3 + $0x1758] sm:$0xff]
  %v1600 = vld [vmem:[%s3 + $0x1760] sm:$0xff]
  %v1601 = vld [vmem:[%s3 + $0x1768] sm:$0xff]
  %v1602 = vld [vmem:[%s3 + $0x1770] sm:$0xff]
  %v1603 = vld [vmem:[%s3 + $0x1778] sm:$0xff]
  %v1604 = vld [vmem:[%s3 + $0x1780] sm:$0xff]
  %v1605 = vld [vmem:[%s3 + $0x1788] sm:$0xff]
  %v1606 = vld [vmem:[%s3 + $0x1790] sm:$0xff]
  %v1607 = vld [vmem:[%s3 + $0x1798] sm:$0xff]
  %v1608 = vld [vmem:[%s3 + $0x17a0] sm:$0xff]
  %v1609 = vld [vmem:[%s3 + $0x17a8] sm:$0xff]
  %v1610 = vld [vmem:[%s3 + $0x17b0] sm:$0xff]
  %v1611 = vld [vmem:[%s3 + $0x17b8] sm:$0xff]
  %v1612 = vld [vmem:[%s3 + $0x17c0] sm:$0xff]
  %v1613 = vld [vmem:[%s3 + $0x17c8] sm:$0xff]
  %v1614 = vld [vmem:[%s3 + $0x17d0] sm:$0xff]
  %v1615 = vld [vmem:[%s3 + $0x17d8] sm:$0xff]
  %v1616 = vld [vmem:[%s3 + $0x17e0] sm:$0xff]
  %v1617 = vld [vmem:[%s3 + $0x17e8] sm:$0xff]
  %v1618 = vld [vmem:[%s3 + $0x17f0] sm:$0xff]
  %v1619 = vld [vmem:[%s3 + $0x17f8] sm:$0xff]
  %v1620 = vld [vmem:[%s3 + $0x1800] sm:$0xff]
  %v1621 = vld [vmem:[%s3 + $0x1808] sm:$0xff]
  %v1622 = vld [vmem:[%s3 + $0x1810] sm:$0xff]
  %v1623 = vld [vmem:[%s3 + $0x1818] sm:$0xff]
  %v1624 = vld [vmem:[%s3 + $0x1820] sm:$0xff]
  %v1625 = vld [vmem:[%s3 + $0x1828] sm:$0xff]
  %v1626 = vld [vmem:[%s3 + $0x1830] sm:$0xff]
  %v1627 = vld [vmem:[%s3 + $0x1838] sm:$0xff]
  %v1628 = vld [vmem:[%s3 + $0x1840] sm:$0xff]
  %v1629 = vld [vmem:[%s3 + $0x1848] sm:$0xff]
  %v1630 = vld [vmem:[%s3 + $0x1850] sm:$0xff]
  %v1631 = vld [vmem:[%s3 + $0x1858] sm:$0xff]
  %v1632 = vld [vmem:[%s3 + $0x1860] sm:$0xff]
  %v1633 = vld [vmem:[%s3 + $0x1868] sm:$0xff]
  %v1634 = vld [vmem:[%s3 + $0x1870] sm:$0xff]
  %v1635 = vld [vmem:[%s3 + $0x1878] sm:$0xff]
  %v1636 = vld [vmem:[%s3 + $0x1880] sm:$0xff]
  %v1637 = vld [vmem:[%s3 + $0x1888] sm:$0xff]
  %v1638 = vld [vmem:[%s3 + $0x1890] sm:$0xff]
  %v1639 = vld [vmem:[%s3 + $0x1898] sm:$0xff]
  %v1640 = vld [vmem:[%s3 + $0x18a0] sm:$0xff]
  %v1641 = vld [vmem:[%s3 + $0x18a8] sm:$0xff]
  %v1642 = vld [vmem:[%s3 + $0x18b0] sm:$0xff]
  %v1643 = vld [vmem:[%s3 + $0x18b8] sm:$0xff]
  %v1644 = vld [vmem:[%s3 + $0x18c0] sm:$0xff]
  %v1645 = vld [vmem:[%s3 + $0x18c8] sm:$0xff]
  %v1646 = vld [vmem:[%s3 + $0x18d0] sm:$0xff]
  %v1647 = vld [vmem:[%s3 + $0x18d8] sm:$0xff]
  %v1648 = vld [vmem:[%s3 + $0x18e0] sm:$0xff]
  %v1649 = vld [vmem:[%s3 + $0x18e8] sm:$0xff]
  %v1650 = vld [vmem:[%s3 + $0x18f0] sm:$0xff]
  %v1651 = vld [vmem:[%s3 + $0x18f8] sm:$0xff]
  %v1652 = vld [vmem:[%s3 + $0x1900] sm:$0xff]
  %v1653 = vld [vmem:[%s3 + $0x1908] sm:$0xff]
  %v1654 = vld [vmem:[%s3 + $0x1910] sm:$0xff]
  %v1655 = vld [vmem:[%s3 + $0x1918] sm:$0xff]
  %v1656 = vld [vmem:[%s3 + $0x1920] sm:$0xff]
  %v1657 = vld [vmem:[%s3 + $0x1928] sm:$0xff]
  %v1658 = vld [vmem:[%s3 + $0x1930] sm:$0xff]
  %v1659 = vld [vmem:[%s3 + $0x1938] sm:$0xff]
  %v1660 = vld [vmem:[%s3 + $0x1940] sm:$0xff]
  %v1661 = vld [vmem:[%s3 + $0x1948] sm:$0xff]
  %v1662 = vld [vmem:[%s3 + $0x1950] sm:$0xff]
  %v1663 = vld [vmem:[%s3 + $0x1958] sm:$0xff]
  %v1664 = vld [vmem:[%s3 + $0x1960] sm:$0xff]
  %v1665 = vld [vmem:[%s3 + $0x1968] sm:$0xff]
  %v1666 = vld [vmem:[%s3 + $0x1970] sm:$0xff]
  %v1667 = vld [vmem:[%s3 + $0x1978] sm:$0xff]
  %v1668 = vld [vmem:[%s3 + $0x1980] sm:$0xff]
  %v1669 = vld [vmem:[%s3 + $0x1988] sm:$0xff]
  %v1670 = vld [vmem:[%s3 + $0x1990] sm:$0xff]
  %v1671 = vld [vmem:[%s3 + $0x1998] sm:$0xff]
  %v1672 = vld [vmem:[%s3 + $0x19a0] sm:$0xff]
  %v1673 = vld [vmem:[%s3 + $0x19a8] sm:$0xff]
  %v1674 = vld [vmem:[%s3 + $0x19b0] sm:$0xff]
  %v1675 = vld [vmem:[%s3 + $0x19b8] sm:$0xff]
  %v1676 = vld [vmem:[%s3 + $0x19c0] sm:$0xff]
  %v1677 = vld [vmem:[%s3 + $0x19c8] sm:$0xff]
  %v1678 = vld [vmem:[%s3 + $0x19d0] sm:$0xff]
  %v1679 = vld [vmem:[%s3 + $0x19d8] sm:$0xff]
  %v1680 = vld [vmem:[%s3 + $0x19e0] sm:$0xff]
  %v1681 = vld [vmem:[%s3 + $0x19e8] sm:$0xff]
  %v1682 = vld [vmem:[%s3 + $0x19f0] sm:$0xff]
  %v1683 = vld [vmem:[%s3 + $0x19f8] sm:$0xff]
  %v1684 = vld [vmem:[%s3 + $0x1a00] sm:$0xff]
  %v1685 = vld [vmem:[%s3 + $0x1a08] sm:$0xff]
  %v1686 = vld [vmem:[%s3 + $0x1a10] sm:$0xff]
  %v1687 = vld [vmem:[%s3 + $0x1a18] sm:$0xff]
  %v1688 = vld [vmem:[%s3 + $0x1a20] sm:$0xff]
  %v1689 = vld [vmem:[%s3 + $0x1a28] sm:$0xff]
  %v1690 = vld [vmem:[%s3 + $0x1a30] sm:$0xff]
  %v1691 = vld [vmem:[%s3 + $0x1a38] sm:$0xff]
  %v1692 = vld [vmem:[%s3 + $0x1a40] sm:$0xff]
  %v1693 = vld [vmem:[%s3 + $0x1a48] sm:$0xff]
  %v1694 = vld [vmem:[%s3 + $0x1a50] sm:$0xff]
  %v1695 = vld [vmem:[%s3 + $0x1a58] sm:$0xff]
  %v1696 = vld [vmem:[%s3 + $0x1a60] sm:$0xff]
  %v1697 = vld [vmem:[%s3 + $0x1a68] sm:$0xff]
  %v1698 = vld [vmem:[%s3 + $0x1a70] sm:$0xff]
  %v1699 = vld [vmem:[%s3 + $0x1a78] sm:$0xff]
  %v1700 = vld [vmem:[%s3 + $0x1a80] sm:$0xff]
  %v1701 = vld [vmem:[%s3 + $0x1a88] sm:$0xff]
  %v1702 = vld [vmem:[%s3 + $0x1a90] sm:$0xff]
  %v1703 = vld [vmem:[%s3 + $0x1a98] sm:$0xff]
  %v1704 = vld [vmem:[%s3 + $0x1aa0] sm:$0xff]
  %v1705 = vld [vmem:[%s3 + $0x1aa8] sm:$0xff]
  %v1706 = vld [vmem:[%s3 + $0x1ab0] sm:$0xff]
  %v1707 = vld [vmem:[%s3 + $0x1ab8] sm:$0xff]
  %v1708 = vld [vmem:[%s3 + $0x1ac0] sm:$0xff]
  %v1709 = vld [vmem:[%s3 + $0x1ac8] sm:$0xff]
  %v1710 = vld [vmem:[%s3 + $0x1ad0] sm:$0xff]
  %v1711 = vld [vmem:[%s3 + $0x1ad8] sm:$0xff]
  %v1712 = vld [vmem:[%s3 + $0x1ae0] sm:$0xff]
  %v1713 = vld [vmem:[%s3 + $0x1ae8] sm:$0xff]
  %v1714 = vld [vmem:[%s3 + $0x1af0] sm:$0xff]
  %v1715 = vld [vmem:[%s3 + $0x1af8] sm:$0xff]
  %v1716 = vld [vmem:[%s3 + $0x1b00] sm:$0xff]
  %v1717 = vld [vmem:[%s3 + $0x1b08] sm:$0xff]
  %v1718 = vld [vmem:[%s3 + $0x1b10] sm:$0xff]
  %v1719 = vld [vmem:[%s3 + $0x1b18] sm:$0xff]
  %v1720 = vld [vmem:[%s3 + $0x1b20] sm:$0xff]
  %v1721 = vld [vmem:[%s3 + $0x1b28] sm:$0xff]
  %v1722 = vld [vmem:[%s3 + $0x1b30] sm:$0xff]
  %v1723 = vld [vmem:[%s3 + $0x1b38] sm:$0xff]
  %v1724 = vld [vmem:[%s3 + $0x1b40] sm:$0xff]
  %v1725 = vld [vmem:[%s3 + $0x1b48] sm:$0xff]
  %v1726 = vld [vmem:[%s3 + $0x1b50] sm:$0xff]
  %v1727 = vld [vmem:[%s3 + $0x1b58] sm:$0xff]
  %v1728 = vld [vmem:[%s3 + $0x1b60] sm:$0xff]
  %v1729 = vld [vmem:[%s3 + $0x1b68] sm:$0xff]
  %v1730 = vld [vmem:[%s3 + $0x1b70] sm:$0xff]
  %v1731 = vld [vmem:[%s3 + $0x1b78] sm:$0xff]
  %v1732 = vld [vmem:[%s3 + $0x1b80] sm:$0xff]
  %v1733 = vld [vmem:[%s3 + $0x1b88] sm:$0xff]
  %v1734 = vld [vmem:[%s3 + $0x1b90] sm:$0xff]
  %v1735 = vld [vmem:[%s3 + $0x1b98] sm:$0xff]
  %v1736 = vld [vmem:[%s3 + $0x1ba0] sm:$0xff]
  %v1737 = vld [vmem:[%s3 + $0x1ba8] sm:$0xff]
  %v1738 = vld [vmem:[%s3 + $0x1bb0] sm:$0xff]
  %v1739 = vld [vmem:[%s3 + $0x1bb8] sm:$0xff]
  %v1740 = vld [vmem:[%s3 + $0x1bc0] sm:$0xff]
  %v1741 = vld [vmem:[%s3 + $0x1bc8] sm:$0xff]
  %v1742 = vld [vmem:[%s3 + $0x1bd0] sm:$0xff]
  %v1743 = vld [vmem:[%s3 + $0x1bd8] sm:$0xff]
  %v1744 = vld [vmem:[%s3 + $0x1be0] sm:$0xff]
  %v1745 = vld [vmem:[%s3 + $0x1be8] sm:$0xff]
  %v1746 = vld [vmem:[%s3 + $0x1bf0] sm:$0xff]
  %v1747 = vld [vmem:[%s3 + $0x1bf8] sm:$0xff]
  %v1748 = vld [vmem:[%s3 + $0x1c00] sm:$0xff]
  %v1749 = vld [vmem:[%s3 + $0x1c08] sm:$0xff]
  %v1750 = vld [vmem:[%s3 + $0x1c10] sm:$0xff]
  %v1751 = vld [vmem:[%s3 + $0x1c18] sm:$0xff]
  %v1752 = vld [vmem:[%s3 + $0x1c20] sm:$0xff]
  %v1753 = vld [vmem:[%s3 + $0x1c28] sm:$0xff]
  %v1754 = vld [vmem:[%s3 + $0x1c30] sm:$0xff]
  %v1755 = vld [vmem:[%s3 + $0x1c38] sm:$0xff]
  %v1756 = vld [vmem:[%s3 + $0x1c40] sm:$0xff]
  %v1757 = vld [vmem:[%s3 + $0x1c48] sm:$0xff]
  %v1758 = vld [vmem:[%s3 + $0x1c50] sm:$0xff]
  %v1759 = vld [vmem:[%s3 + $0x1c58] sm:$0xff]
  %v1760 = vld [vmem:[%s3 + $0x1c60] sm:$0xff]
  %v1761 = vld [vmem:[%s3 + $0x1c68] sm:$0xff]
  %v1762 = vld [vmem:[%s3 + $0x1c70] sm:$0xff]
  %v1763 = vld [vmem:[%s3 + $0x1c78] sm:$0xff]
  %v1764 = vld [vmem:[%s3 + $0x1c80] sm:$0xff]
  %v1765 = vld [vmem:[%s3 + $0x1c88] sm:$0xff]
  %v1766 = vld [vmem:[%s3 + $0x1c90] sm:$0xff]
  %v1767 = vld [vmem:[%s3 + $0x1c98] sm:$0xff]
  %v1768 = vld [vmem:[%s3 + $0x1ca0] sm:$0xff]
  %v1769 = vld [vmem:[%s3 + $0x1ca8] sm:$0xff]
  %v1770 = vld [vmem:[%s3 + $0x1cb0] sm:$0xff]
  %v1771 = vld [vmem:[%s3 + $0x1cb8] sm:$0xff]
  %v1772 = vld [vmem:[%s3 + $0x1cc0] sm:$0xff]
  %v1773 = vld [vmem:[%s3 + $0x1cc8] sm:$0xff]
  %v1774 = vld [vmem:[%s3 + $0x1cd0] sm:$0xff]
  %v1775 = vld [vmem:[%s3 + $0x1cd8] sm:$0xff]
  %v1776 = vld [vmem:[%s3 + $0x1ce0] sm:$0xff]
  %v1777 = vld [vmem:[%s3 + $0x1ce8] sm:$0xff]
  %v1778 = vld [vmem:[%s3 + $0x1cf0] sm:$0xff]
  %v1779 = vld [vmem:[%s3 + $0x1cf8] sm:$0xff]
  %v1780 = vld [vmem:[%s3 + $0x1d00] sm:$0xff]
  %v1781 = vld [vmem:[%s3 + $0x1d08] sm:$0xff]
  %v1782 = vld [vmem:[%s3 + $0x1d10] sm:$0xff]
  %v1783 = vld [vmem:[%s3 + $0x1d18] sm:$0xff]
  %v1784 = vld [vmem:[%s3 + $0x1d20] sm:$0xff]
  %v1785 = vld [vmem:[%s3 + $0x1d28] sm:$0xff]
  %v1786 = vld [vmem:[%s3 + $0x1d30] sm:$0xff]
  %v1787 = vld [vmem:[%s3 + $0x1d38] sm:$0xff]
  %v1788 = vld [vmem:[%s3 + $0x1d40] sm:$0xff]
  %v1789 = vld [vmem:[%s3 + $0x1d48] sm:$0xff]
  %v1790 = vld [vmem:[%s3 + $0x1d50] sm:$0xff]
  %v1791 = vld [vmem:[%s3 + $0x1d58] sm:$0xff]
  %v1792 = vld [vmem:[%s3 + $0x1d60] sm:$0xff]
  %v1793 = vld [vmem:[%s3 + $0x1d68] sm:$0xff]
  %v1794 = vld [vmem:[%s3 + $0x1d70] sm:$0xff]
  %v1795 = vld [vmem:[%s3 + $0x1d78] sm:$0xff]
  %v1796 = vld [vmem:[%s3 + $0x1d80] sm:$0xff]
  %v1797 = vld [vmem:[%s3 + $0x1d88] sm:$0xff]
  %v1798 = vld [vmem:[%s3 + $0x1d90] sm:$0xff]
  %v1799 = vld [vmem:[%s3 + $0x1d98] sm:$0xff]
  %v1800 = vld [vmem:[%s3 + $0x1da0] sm:$0xff]
  %v1801 = vld [vmem:[%s3 + $0x1da8] sm:$0xff]
  %v1802 = vld [vmem:[%s3 + $0x1db0] sm:$0xff]
  %v1803 = vld [vmem:[%s3 + $0x1db8] sm:$0xff]
  %v1804 = vld [vmem:[%s3 + $0x1dc0] sm:$0xff]
  %v1805 = vld [vmem:[%s3 + $0x1dc8] sm:$0xff]
  %v1806 = vld [vmem:[%s3 + $0x1dd0] sm:$0xff]
  %v1807 = vld [vmem:[%s3 + $0x1dd8] sm:$0xff]
  %v1808 = vld [vmem:[%s3 + $0x1de0] sm:$0xff]
  %v1809 = vld [vmem:[%s3 + $0x1de8] sm:$0xff]
  %v1810 = vld [vmem:[%s3 + $0x1df0] sm:$0xff]
  %v1811 = vld [vmem:[%s3 + $0x1df8] sm:$0xff]
  %v1812 = vld [vmem:[%s3 + $0x1e00] sm:$0xff]
  %v1813 = vld [vmem:[%s3 + $0x1e08] sm:$0xff]
  %v1814 = vld [vmem:[%s3 + $0x1e10] sm:$0xff]
  %v1815 = vld [vmem:[%s3 + $0x1e18] sm:$0xff]
  %v1816 = vld [vmem:[%s3 + $0x1e20] sm:$0xff]
  %v1817 = vld [vmem:[%s3 + $0x1e28] sm:$0xff]
  %v1818 = vld [vmem:[%s3 + $0x1e30] sm:$0xff]
  %v1819 = vld [vmem:[%s3 + $0x1e38] sm:$0xff]
  %v1820 = vld [vmem:[%s3 + $0x1e40] sm:$0xff]
  %v1821 = vld [vmem:[%s3 + $0x1e48] sm:$0xff]
  %v1822 = vld [vmem:[%s3 + $0x1e50] sm:$0xff]
  %v1823 = vld [vmem:[%s3 + $0x1e58] sm:$0xff]
  %v1824 = vld [vmem:[%s3 + $0x1e60] sm:$0xff]
  %v1825 = vld [vmem:[%s3 + $0x1e68] sm:$0xff]
  %v1826 = vld [vmem:[%s3 + $0x1e70] sm:$0xff]
  %v1827 = vld [vmem:[%s3 + $0x1e78] sm:$0xff]
  %v1828 = vld [vmem:[%s3 + $0x1e80] sm:$0xff]
  %v1829 = vld [vmem:[%s3 + $0x1e88] sm:$0xff]
  %v1830 = vld [vmem:[%s3 + $0x1e90] sm:$0xff]
  %v1831 = vld [vmem:[%s3 + $0x1e98] sm:$0xff]
  %v1832 = vld [vmem:[%s3 + $0x1ea0] sm:$0xff]
  %v1833 = vld [vmem:[%s3 + $0x1ea8] sm:$0xff]
  %v1834 = vld [vmem:[%s3 + $0x1eb0] sm:$0xff]
  %v1835 = vld [vmem:[%s3 + $0x1eb8] sm:$0xff]
  %v1836 = vld [vmem:[%s3 + $0x1ec0] sm:$0xff]
  %v1837 = vld [vmem:[%s3 + $0x1ec8] sm:$0xff]
  %v1838 = vld [vmem:[%s3 + $0x1ed0] sm:$0xff]
  %v1839 = vld [vmem:[%s3 + $0x1ed8] sm:$0xff]
  %v1840 = vld [vmem:[%s3 + $0x1ee0] sm:$0xff]
  %v1841 = vld [vmem:[%s3 + $0x1ee8] sm:$0xff]
  %v1842 = vld [vmem:[%s3 + $0x1ef0] sm:$0xff]
  %v1843 = vld [vmem:[%s3 + $0x1ef8] sm:$0xff]
  %v1844 = vld [vmem:[%s3 + $0x1f00] sm:$0xff]
  %v1845 = vld [vmem:[%s3 + $0x1f08] sm:$0xff]
  %v1846 = vld [vmem:[%s3 + $0x1f10] sm:$0xff]
  %v1847 = vld [vmem:[%s3 + $0x1f18] sm:$0xff]
  %v1848 = vld [vmem:[%s3 + $0x1f20] sm:$0xff]
  %v1849 = vld [vmem:[%s3 + $0x1f28] sm:$0xff]
  %v1850 = vld [vmem:[%s3 + $0x1f30] sm:$0xff]
  %v1851 = vld [vmem:[%s3 + $0x1f38] sm:$0xff]
  %v1852 = vld [vmem:[%s3 + $0x1f40] sm:$0xff]
  %v1853 = vld [vmem:[%s3 + $0x1f48] sm:$0xff]
  %v1854 = vld [vmem:[%s3 + $0x1f50] sm:$0xff]
  %v1855 = vld [vmem:[%s3 + $0x1f58] sm:$0xff]
  %v1856 = vld [vmem:[%s3 + $0x1f60] sm:$0xff]
  %v1857 = vld [vmem:[%s3 + $0x1f68] sm:$0xff]
  %v1858 = vld [vmem:[%s3 + $0x1f70] sm:$0xff]
  %v1859 = vld [vmem:[%s3 + $0x1f78] sm:$0xff]
  %v1860 = vld [vmem:[%s3 + $0x1f80] sm:$0xff]
  %v1861 = vld [vmem:[%s3 + $0x1f88] sm:$0xff]
  %v1862 = vld [vmem:[%s3 + $0x1f90] sm:$0xff]
  %v1863 = vld [vmem:[%s3 + $0x1f98] sm:$0xff]
  %v1864 = vld [vmem:[%s3 + $0x1fa0] sm:$0xff]
  %v1865 = vld [vmem:[%s3 + $0x1fa8] sm:$0xff]
  %v1866 = vld [vmem:[%s3 + $0x1fb0] sm:$0xff]
  %v1867 = vld [vmem:[%s3 + $0x1fb8] sm:$0xff]
  %v1868 = vld [vmem:[%s3 + $0x1fc0] sm:$0xff]
  %v1869 = vld [vmem:[%s3 + $0x1fc8] sm:$0xff]
  %v1870 = vld [vmem:[%s3 + $0x1fd0] sm:$0xff]
  %v1871 = vld [vmem:[%s3 + $0x1fd8] sm:$0xff]
  %v1872 = vld [vmem:[%s3 + $0x1fe0] sm:$0xff]
  %v1873 = vld [vmem:[%s3 + $0x1fe8] sm:$0xff]
  %v1874 = vld [vmem:[%s3 + $0x1ff0] sm:$0xff]
  %v1875 = vld [vmem:[%s3 + $0x1ff8] sm:$0xff]
  %1876 = vmatprep.subr.mxu0 %v1485
  %1877 = vmatpush1.msra.mxu0 %v1484
  %1878 = vmatprep.subr.mxu0 %v1477
  %1879 = vmatpush1.msra.mxu0 %v1476
  %1880 = vmatprep.subr.mxu0 %v1469
  %1881 = vmatpush1.msra.mxu0 %v1468
  %1882 = vmatprep.subr.mxu0 %v1461
  %1883 = vmatpush1.msra.mxu0 %v1460
  %1884 = vmatprep.subr.mxu0 %v1453
  %1885 = vmatpush1.msra.mxu0 %v1452
  %1886 = vmatprep.subr.mxu0 %v1445
  %1887 = vmatpush1.msra.mxu0 %v1444
  %1888 = vmatprep.subr.mxu0 %v1437
  %1889 = vmatpush1.msra.mxu0 %v1436
  %1890 = vmatprep.subr.mxu0 %v1429
  %1891 = vmatpush1.msra.mxu0 %v1428
  %1892 = vmatprep.subr.mxu0 %v1421
  %1893 = vmatpush1.msra.mxu0 %v1420
  %1894 = vmatprep.subr.mxu0 %v1413
  %1895 = vmatpush1.msra.mxu0 %v1412
  %1896 = vmatprep.subr.mxu0 %v1405
  %1897 = vmatpush1.msra.mxu0 %v1404
  %1898 = vmatprep.subr.mxu0 %v1397
  %1899 = vmatpush1.msra.mxu0 %v1396
  %1900 = vmatprep.subr.mxu0 %v1389
  %1901 = vmatpush1.msra.mxu0 %v1388
  %1902 = vmatprep.subr.mxu0 %v1381
  %1903 = vmatpush1.msra.mxu0 %v1380
  %1904 = vmatprep.subr.mxu0 %v1373
  %1905 = vmatpush1.msra.mxu0 %v1372
  %1906 = vmatprep.subr.mxu0 %v1365
  %1907 = vmatpush1.msra.mxu0 %v1364
  %1908 = vmatprep.subr.mxu0 %v1613
  %1909 = vmatpush2.msra.mxu0 %v1612
  %1910 = vmatprep.subr.mxu0 %v1605
  %1911 = vmatpush2.msra.mxu0 %v1604
  %1912 = vmatprep.subr.mxu0 %v1597
  %1913 = vmatpush2.msra.mxu0 %v1596
  %1914 = vmatprep.subr.mxu0 %v1589
  %1915 = vmatpush2.msra.mxu0 %v1588
  %1916 = vmatprep.subr.mxu0 %v1581
  %1917 = vmatpush2.msra.mxu0 %v1580
  %1918 = vmatprep.subr.mxu0 %v1573
  %1919 = vmatpush2.msra.mxu0 %v1572
  %1920 = vmatprep.subr.mxu0 %v1565
  %1921 = vmatpush2.msra.mxu0 %v1564
  %1922 = vmatprep.subr.mxu0 %v1557
  %1923 = vmatpush2.msra.mxu0 %v1556
  %1924 = vmatprep.subr.mxu0 %v1549
  %1925 = vmatpush2.msra.mxu0 %v1548
  %1926 = vmatprep.subr.mxu0 %v1541
  %1927 = vmatpush2.msra.mxu0 %v1540
  %1928 = vmatprep.subr.mxu0 %v1533
  %1929 = vmatpush2.msra.mxu0 %v1532
  %1930 = vmatprep.subr.mxu0 %v1525
  %1931 = vmatpush2.msra.mxu0 %v1524
  %1932 = vmatprep.subr.mxu0 %v1517
  %1933 = vmatpush2.msra.mxu0 %v1516
  %1934 = vmatprep.subr.mxu0 %v1509
  %1935 = vmatpush2.msra.mxu0 %v1508
  %1936 = vmatprep.subr.mxu0 %v1501
  %1937 = vmatpush2.msra.mxu0 %v1500
  %1938 = vmatprep.subr.mxu0 %v1493
  %1939 = vmatpush2.msra.mxu0 %v1492
  %1940 = vmatprep.mubr.f32.mxu0 %v849
  %1941 = vmatmul.mubr.f32.gmra.mxu0 %v848
  %v1942 = vpop.f32.mrf.mxu0
  %v1943 = vadd.f32 0.0, %v1942
  %v1944 = vpop.f32.mrf.mxu0
  %v1945 = vadd.f32 0.0, %v1944
  %1946 = vdwg.mxu0
  %1947 = vmatprep.subr.mxu0 %v1741
  %1948 = vmatpush1.msra.mxu0 %v1740
  %1949 = vmatprep.subr.mxu0 %v1733
  %1950 = vmatpush1.msra.mxu0 %v1732
  %1951 = vmatprep.subr.mxu0 %v1725
  %1952 = vmatpush1.msra.mxu0 %v1724
  %1953 = vmatprep.subr.mxu0 %v1717
  %1954 = vmatpush1.msra.mxu0 %v1716
  %1955 = vmatprep.subr.mxu0 %v1709
  %1956 = vmatpush1.msra.mxu0 %v1708
  %1957 = vmatprep.subr.mxu0 %v1701
  %1958 = vmatpush1.msra.mxu0 %v1700
  %1959 = vmatprep.subr.mxu0 %v1693
  %1960 = vmatpush1.msra.mxu0 %v1692
  %1961 = vmatprep.subr.mxu0 %v1685
  %1962 = vmatpush1.msra.mxu0 %v1684
  %1963 = vmatprep.subr.mxu0 %v1677
  %1964 = vmatpush1.msra.mxu0 %v1676
  %1965 = vmatprep.subr.mxu0 %v1669
  %1966 = vmatpush1.msra.mxu0 %v1668
  %1967 = vmatprep.subr.mxu0 %v1661
  %1968 = vmatpush1.msra.mxu0 %v1660
  %1969 = vmatprep.subr.mxu0 %v1653
  %1970 = vmatpush1.msra.mxu0 %v1652
  %1971 = vmatprep.subr.mxu0 %v1645
  %1972 = vmatpush1.msra.mxu0 %v1644
  %1973 = vmatprep.subr.mxu0 %v1637
  %1974 = vmatpush1.msra.mxu0 %v1636
  %1975 = vmatprep.subr.mxu0 %v1629
  %1976 = vmatpush1.msra.mxu0 %v1628
  %1977 = vmatprep.subr.mxu0 %v1621
  %1978 = vmatpush1.msra.mxu0 %v1620
  %1979 = vmatprep.subr.mxu0 %v1869
  %1980 = vmatpush2.msra.mxu0 %v1868
  %1981 = vmatprep.subr.mxu0 %v1861
  %1982 = vmatpush2.msra.mxu0 %v1860
  %1983 = vmatprep.subr.mxu0 %v1853
  %1984 = vmatpush2.msra.mxu0 %v1852
  %1985 = vmatprep.subr.mxu0 %v1845
  %1986 = vmatpush2.msra.mxu0 %v1844
  %1987 = vmatprep.subr.mxu0 %v1837
  %1988 = vmatpush2.msra.mxu0 %v1836
  %1989 = vmatprep.subr.mxu0 %v1829
  %1990 = vmatpush2.msra.mxu0 %v1828
  %1991 = vmatprep.subr.mxu0 %v1821
  %1992 = vmatpush2.msra.mxu0 %v1820
  %1993 = vmatprep.subr.mxu0 %v1813
  %1994 = vmatpush2.msra.mxu0 %v1812
  %1995 = vmatprep.subr.mxu0 %v1805
  %1996 = vmatpush2.msra.mxu0 %v1804
  %1997 = vmatprep.subr.mxu0 %v1797
  %1998 = vmatpush2.msra.mxu0 %v1796
  %1999 = vmatprep.subr.mxu0 %v1789
  %2000 = vmatpush2.msra.mxu0 %v1788
  %2001 = vmatprep.subr.mxu0 %v1781
  %2002 = vmatpush2.msra.mxu0 %v1780
  %2003 = vmatprep.subr.mxu0 %v1773
  %2004 = vmatpush2.msra.mxu0 %v1772
  %2005 = vmatprep.subr.mxu0 %v1765
  %2006 = vmatpush2.msra.mxu0 %v1764
  %2007 = vmatprep.subr.mxu0 %v1757
  %2008 = vmatpush2.msra.mxu0 %v1756
  %2009 = vmatprep.subr.mxu0 %v1749
  %2010 = vmatpush2.msra.mxu0 %v1748
  %2011 = vmatprep.mubr.f32.mxu0 %v851
  %2012 = vmatmul.mubr.f32.gmra.mxu0 %v850
  %v2013 = vpop.f32.mrf.mxu0
  %v2014 = vadd.f32 %v1943, %v2013
  %v2015 = vpop.f32.mrf.mxu0
  %v2016 = vadd.f32 %v1945, %v2015
  %2017 = vdwg.mxu0
  %2018 = vmatprep.subr.mxu0 %v1487
  %2019 = vmatpush1.msra.mxu0 %v1486
  %2020 = vmatprep.subr.mxu0 %v1479
  %2021 = vmatpush1.msra.mxu0 %v1478
  %2022 = vmatprep.subr.mxu0 %v1471
  %2023 = vmatpush1.msra.mxu0 %v1470
  %2024 = vmatprep.subr.mxu0 %v1463
  %2025 = vmatpush1.msra.mxu0 %v1462
  %2026 = vmatprep.subr.mxu0 %v1455
  %2027 = vmatpush1.msra.mxu0 %v1454
  %2028 = vmatprep.subr.mxu0 %v1447
  %2029 = vmatpush1.msra.mxu0 %v1446
  %2030 = vmatprep.subr.mxu0 %v1439
  %2031 = vmatpush1.msra.mxu0 %v1438
  %2032 = vmatprep.subr.mxu0 %v1431
  %2033 = vmatpush1.msra.mxu0 %v1430
  %2034 = vmatprep.subr.mxu0 %v1423
  %2035 = vmatpush1.msra.mxu0 %v1422
  %2036 = vmatprep.subr.mxu0 %v1415
  %2037 = vmatpush1.msra.mxu0 %v1414
  %2038 = vmatprep.subr.mxu0 %v1407
  %2039 = vmatpush1.msra.mxu0 %v1406
  %2040 = vmatprep.subr.mxu0 %v1399
  %2041 = vmatpush1.msra.mxu0 %v1398
  %2042 = vmatprep.subr.mxu0 %v1391
  %2043 = vmatpush1.msra.mxu0 %v1390
  %2044 = vmatprep.subr.mxu0 %v1383
  %2045 = vmatpush1.msra.mxu0 %v1382
  %2046 = vmatprep.subr.mxu0 %v1375
  %2047 = vmatpush1.msra.mxu0 %v1374
  %2048 = vmatprep.subr.mxu0 %v1367
  %2049 = vmatpush1.msra.mxu0 %v1366
  %2050 = vmatprep.subr.mxu0 %v1615
  %2051 = vmatpush2.msra.mxu0 %v1614
  %2052 = vmatprep.subr.mxu0 %v1607
  %2053 = vmatpush2.msra.mxu0 %v1606
  %2054 = vmatprep.subr.mxu0 %v1599
  %2055 = vmatpush2.msra.mxu0 %v1598
  %2056 = vmatprep.subr.mxu0 %v1591
  %2057 = vmatpush2.msra.mxu0 %v1590
  %2058 = vmatprep.subr.mxu0 %v1583
  %2059 = vmatpush2.msra.mxu0 %v1582
  %2060 = vmatprep.subr.mxu0 %v1575
  %2061 = vmatpush2.msra.mxu0 %v1574
  %2062 = vmatprep.subr.mxu0 %v1567
  %2063 = vmatpush2.msra.mxu0 %v1566
  %2064 = vmatprep.subr.mxu0 %v1559
  %2065 = vmatpush2.msra.mxu0 %v1558
  %2066 = vmatprep.subr.mxu0 %v1551
  %2067 = vmatpush2.msra.mxu0 %v1550
  %2068 = vmatprep.subr.mxu0 %v1543
  %2069 = vmatpush2.msra.mxu0 %v1542
  %2070 = vmatprep.subr.mxu0 %v1535
  %2071 = vmatpush2.msra.mxu0 %v1534
  %2072 = vmatprep.subr.mxu0 %v1527
  %2073 = vmatpush2.msra.mxu0 %v1526
  %2074 = vmatprep.subr.mxu0 %v1519
  %2075 = vmatpush2.msra.mxu0 %v1518
  %2076 = vmatprep.subr.mxu0 %v1511
  %2077 = vmatpush2.msra.mxu0 %v1510
  %2078 = vmatprep.subr.mxu0 %v1503
  %2079 = vmatpush2.msra.mxu0 %v1502
  %2080 = vmatprep.subr.mxu0 %v1495
  %2081 = vmatpush2.msra.mxu0 %v1494
  %2082 = vmatprep.mubr.f32.mxu0 %v849
  %2083 = vmatmul.mubr.f32.gmra.mxu0 %v848
  %v2084 = vpop.f32.mrf.mxu0
  %v2085 = vadd.f32 0.0, %v2084
  %v2086 = vpop.f32.mrf.mxu0
  %v2087 = vadd.f32 0.0, %v2086
  %2088 = vdwg.mxu0
  %2089 = vmatprep.subr.mxu0 %v1743
  %2090 = vmatpush1.msra.mxu0 %v1742
  %2091 = vmatprep.subr.mxu0 %v1735
  %2092 = vmatpush1.msra.mxu0 %v1734
  %2093 = vmatprep.subr.mxu0 %v1727
  %2094 = vmatpush1.msra.mxu0 %v1726
  %2095 = vmatprep.subr.mxu0 %v1719
  %2096 = vmatpush1.msra.mxu0 %v1718
  %2097 = vmatprep.subr.mxu0 %v1711
  %2098 = vmatpush1.msra.mxu0 %v1710
  %2099 = vmatprep.subr.mxu0 %v1703
  %2100 = vmatpush1.msra.mxu0 %v1702
  %2101 = vmatprep.subr.mxu0 %v1695
  %2102 = vmatpush1.msra.mxu0 %v1694
  %2103 = vmatprep.subr.mxu0 %v1687
  %2104 = vmatpush1.msra.mxu0 %v1686
  %2105 = vmatprep.subr.mxu0 %v1679
  %2106 = vmatpush1.msra.mxu0 %v1678
  %2107 = vmatprep.subr.mxu0 %v1671
  %2108 = vmatpush1.msra.mxu0 %v1670
  %2109 = vmatprep.subr.mxu0 %v1663
  %2110 = vmatpush1.msra.mxu0 %v1662
  %2111 = vmatprep.subr.mxu0 %v1655
  %2112 = vmatpush1.msra.mxu0 %v1654
  %2113 = vmatprep.subr.mxu0 %v1647
  %2114 = vmatpush1.msra.mxu0 %v1646
  %2115 = vmatprep.subr.mxu0 %v1639
  %2116 = vmatpush1.msra.mxu0 %v1638
  %2117 = vmatprep.subr.mxu0 %v1631
  %2118 = vmatpush1.msra.mxu0 %v1630
  %2119 = vmatprep.subr.mxu0 %v1623
  %2120 = vmatpush1.msra.mxu0 %v1622
  %2121 = vmatprep.subr.mxu0 %v1871
  %2122 = vmatpush2.msra.mxu0 %v1870
  %2123 = vmatprep.subr.mxu0 %v1863
  %2124 = vmatpush2.msra.mxu0 %v1862
  %2125 = vmatprep.subr.mxu0 %v1855
  %2126 = vmatpush2.msra.mxu0 %v1854
  %2127 = vmatprep.subr.mxu0 %v1847
  %2128 = vmatpush2.msra.mxu0 %v1846
  %2129 = vmatprep.subr.mxu0 %v1839
  %2130 = vmatpush2.msra.mxu0 %v1838
  %2131 = vmatprep.subr.mxu0 %v1831
  %2132 = vmatpush2.msra.mxu0 %v1830
  %2133 = vmatprep.subr.mxu0 %v1823
  %2134 = vmatpush2.msra.mxu0 %v1822
  %2135 = vmatprep.subr.mxu0 %v1815
  %2136 = vmatpush2.msra.mxu0 %v1814
  %2137 = vmatprep.subr.mxu0 %v1807
  %2138 = vmatpush2.msra.mxu0 %v1806
  %2139 = vmatprep.subr.mxu0 %v1799
  %2140 = vmatpush2.msra.mxu0 %v1798
  %2141 = vmatprep.subr.mxu0 %v1791
  %2142 = vmatpush2.msra.mxu0 %v1790
  %2143 = vmatprep.subr.mxu0 %v1783
  %2144 = vmatpush2.msra.mxu0 %v1782
  %2145 = vmatprep.subr.mxu0 %v1775
  %2146 = vmatpush2.msra.mxu0 %v1774
  %2147 = vmatprep.subr.mxu0 %v1767
  %2148 = vmatpush2.msra.mxu0 %v1766
  %2149 = vmatprep.subr.mxu0 %v1759
  %2150 = vmatpush2.msra.mxu0 %v1758
  %2151 = vmatprep.subr.mxu0 %v1751
  %2152 = vmatpush2.msra.mxu0 %v1750
  %2153 = vmatprep.mubr.f32.mxu0 %v851
  %2154 = vmatmul.mubr.f32.gmra.mxu0 %v850
  %v2155 = vpop.f32.mrf.mxu0
  %v2156 = vadd.f32 %v2085, %v2155
  %v2157 = vpop.f32.mrf.mxu0
  %v2158 = vadd.f32 %v2087, %v2157
  %2159 = vdwg.mxu0
  %2160 = vmatprep.subr.mxu0 %v1489
  %2161 = vmatpush1.msra.mxu0 %v1488
  %2162 = vmatprep.subr.mxu0 %v1481
  %2163 = vmatpush1.msra.mxu0 %v1480
  %2164 = vmatprep.subr.mxu0 %v1473
  %2165 = vmatpush1.msra.mxu0 %v1472
  %2166 = vmatprep.subr.mxu0 %v1465
  %2167 = vmatpush1.msra.mxu0 %v1464
  %2168 = vmatprep.subr.mxu0 %v1457
  %2169 = vmatpush1.msra.mxu0 %v1456
  %2170 = vmatprep.subr.mxu0 %v1449
  %2171 = vmatpush1.msra.mxu0 %v1448
  %2172 = vmatprep.subr.mxu0 %v1441
  %2173 = vmatpush1.msra.mxu0 %v1440
  %2174 = vmatprep.subr.mxu0 %v1433
  %2175 = vmatpush1.msra.mxu0 %v1432
  %2176 = vmatprep.subr.mxu0 %v1425
  %2177 = vmatpush1.msra.mxu0 %v1424
  %2178 = vmatprep.subr.mxu0 %v1417
  %2179 = vmatpush1.msra.mxu0 %v1416
  %2180 = vmatprep.subr.mxu0 %v1409
  %2181 = vmatpush1.msra.mxu0 %v1408
  %2182 = vmatprep.subr.mxu0 %v1401
  %2183 = vmatpush1.msra.mxu0 %v1400
  %2184 = vmatprep.subr.mxu0 %v1393
  %2185 = vmatpush1.msra.mxu0 %v1392
  %2186 = vmatprep.subr.mxu0 %v1385
  %2187 = vmatpush1.msra.mxu0 %v1384
  %2188 = vmatprep.subr.mxu0 %v1377
  %2189 = vmatpush1.msra.mxu0 %v1376
  %2190 = vmatprep.subr.mxu0 %v1369
  %2191 = vmatpush1.msra.mxu0 %v1368
  %2192 = vmatprep.subr.mxu0 %v1617
  %2193 = vmatpush2.msra.mxu0 %v1616
  %2194 = vmatprep.subr.mxu0 %v1609
  %2195 = vmatpush2.msra.mxu0 %v1608
  %2196 = vmatprep.subr.mxu0 %v1601
  %2197 = vmatpush2.msra.mxu0 %v1600
  %2198 = vmatprep.subr.mxu0 %v1593
  %2199 = vmatpush2.msra.mxu0 %v1592
  %2200 = vmatprep.subr.mxu0 %v1585
  %2201 = vmatpush2.msra.mxu0 %v1584
  %2202 = vmatprep.subr.mxu0 %v1577
  %2203 = vmatpush2.msra.mxu0 %v1576
  %2204 = vmatprep.subr.mxu0 %v1569
  %2205 = vmatpush2.msra.mxu0 %v1568
  %2206 = vmatprep.subr.mxu0 %v1561
  %2207 = vmatpush2.msra.mxu0 %v1560
  %2208 = vmatprep.subr.mxu0 %v1553
  %2209 = vmatpush2.msra.mxu0 %v1552
  %2210 = vmatprep.subr.mxu0 %v1545
  %2211 = vmatpush2.msra.mxu0 %v1544
  %2212 = vmatprep.subr.mxu0 %v1537
  %2213 = vmatpush2.msra.mxu0 %v1536
  %2214 = vmatprep.subr.mxu0 %v1529
  %2215 = vmatpush2.msra.mxu0 %v1528
  %2216 = vmatprep.subr.mxu0 %v1521
  %2217 = vmatpush2.msra.mxu0 %v1520
  %2218 = vmatprep.subr.mxu0 %v1513
  %2219 = vmatpush2.msra.mxu0 %v1512
  %2220 = vmatprep.subr.mxu0 %v1505
  %2221 = vmatpush2.msra.mxu0 %v1504
  %2222 = vmatprep.subr.mxu0 %v1497
  %2223 = vmatpush2.msra.mxu0 %v1496
  %2224 = vmatprep.mubr.f32.mxu0 %v849
  %2225 = vmatmul.mubr.f32.gmra.mxu0 %v848
  %v2226 = vpop.f32.mrf.mxu0
  %v2227 = vadd.f32 0.0, %v2226
  %v2228 = vpop.f32.mrf.mxu0
  %v2229 = vadd.f32 0.0, %v2228
  %2230 = vdwg.mxu0
  %2231 = vmatprep.subr.mxu0 %v1745
  %2232 = vmatpush1.msra.mxu0 %v1744
  %2233 = vmatprep.subr.mxu0 %v1737
  %2234 = vmatpush1.msra.mxu0 %v1736
  %2235 = vmatprep.subr.mxu0 %v1729
  %2236 = vmatpush1.msra.mxu0 %v1728
  %2237 = vmatprep.subr.mxu0 %v1721
  %2238 = vmatpush1.msra.mxu0 %v1720
  %2239 = vmatprep.subr.mxu0 %v1713
  %2240 = vmatpush1.msra.mxu0 %v1712
  %2241 = vmatprep.subr.mxu0 %v1705
  %2242 = vmatpush1.msra.mxu0 %v1704
  %2243 = vmatprep.subr.mxu0 %v1697
  %2244 = vmatpush1.msra.mxu0 %v1696
  %2245 = vmatprep.subr.mxu0 %v1689
  %2246 = vmatpush1.msra.mxu0 %v1688
  %2247 = vmatprep.subr.mxu0 %v1681
  %2248 = vmatpush1.msra.mxu0 %v1680
  %2249 = vmatprep.subr.mxu0 %v1673
  %2250 = vmatpush1.msra.mxu0 %v1672
  %2251 = vmatprep.subr.mxu0 %v1665
  %2252 = vmatpush1.msra.mxu0 %v1664
  %2253 = vmatprep.subr.mxu0 %v1657
  %2254 = vmatpush1.msra.mxu0 %v1656
  %2255 = vmatprep.subr.mxu0 %v1649
  %2256 = vmatpush1.msra.mxu0 %v1648
  %2257 = vmatprep.subr.mxu0 %v1641
  %2258 = vmatpush1.msra.mxu0 %v1640
  %2259 = vmatprep.subr.mxu0 %v1633
  %2260 = vmatpush1.msra.mxu0 %v1632
  %2261 = vmatprep.subr.mxu0 %v1625
  %2262 = vmatpush1.msra.mxu0 %v1624
  %2263 = vmatprep.subr.mxu0 %v1873
  %2264 = vmatpush2.msra.mxu0 %v1872
  %2265 = vmatprep.subr.mxu0 %v1865
  %2266 = vmatpush2.msra.mxu0 %v1864
  %2267 = vmatprep.subr.mxu0 %v1857
  %2268 = vmatpush2.msra.mxu0 %v1856
  %2269 = vmatprep.subr.mxu0 %v1849
  %2270 = vmatpush2.msra.mxu0 %v1848
  %2271 = vmatprep.subr.mxu0 %v1841
  %2272 = vmatpush2.msra.mxu0 %v1840
  %2273 = vmatprep.subr.mxu0 %v1833
  %2274 = vmatpush2.msra.mxu0 %v1832
  %2275 = vmatprep.subr.mxu0 %v1825
  %2276 = vmatpush2.msra.mxu0 %v1824
  %2277 = vmatprep.subr.mxu0 %v1817
  %2278 = vmatpush2.msra.mxu0 %v1816
  %2279 = vmatprep.subr.mxu0 %v1809
  %2280 = vmatpush2.msra.mxu0 %v1808
  %2281 = vmatprep.subr.mxu0 %v1801
  %2282 = vmatpush2.msra.mxu0 %v1800
  %2283 = vmatprep.subr.mxu0 %v1793
  %2284 = vmatpush2.msra.mxu0 %v1792
  %2285 = vmatprep.subr.mxu0 %v1785
  %2286 = vmatpush2.msra.mxu0 %v1784
  %2287 = vmatprep.subr.mxu0 %v1777
  %2288 = vmatpush2.msra.mxu0 %v1776
  %2289 = vmatprep.subr.mxu0 %v1769
  %2290 = vmatpush2.msra.mxu0 %v1768
  %2291 = vmatprep.subr.mxu0 %v1761
  %2292 = vmatpush2.msra.mxu0 %v1760
  %2293 = vmatprep.subr.mxu0 %v1753
  %2294 = vmatpush2.msra.mxu0 %v1752
  %2295 = vmatprep.mubr.f32.mxu0 %v851
  %2296 = vmatmul.mubr.f32.gmra.mxu0 %v850
  %v2297 = vpop.f32.mrf.mxu0
  %v2298 = vadd.f32 %v2227, %v2297
  %v2299 = vpop.f32.mrf.mxu0
  %v2300 = vadd.f32 %v2229, %v2299
  %2301 = vdwg.mxu0
  %2302 = vmatprep.subr.mxu0 %v1491
  %2303 = vmatpush1.msra.mxu0 %v1490
  %2304 = vmatprep.subr.mxu0 %v1483
  %2305 = vmatpush1.msra.mxu0 %v1482
  %2306 = vmatprep.subr.mxu0 %v1475
  %2307 = vmatpush1.msra.mxu0 %v1474
  %2308 = vmatprep.subr.mxu0 %v1467
  %2309 = vmatpush1.msra.mxu0 %v1466
  %2310 = vmatprep.subr.mxu0 %v1459
  %2311 = vmatpush1.msra.mxu0 %v1458
  %2312 = vmatprep.subr.mxu0 %v1451
  %2313 = vmatpush1.msra.mxu0 %v1450
  %2314 = vmatprep.subr.mxu0 %v1443
  %2315 = vmatpush1.msra.mxu0 %v1442
  %2316 = vmatprep.subr.mxu0 %v1435
  %2317 = vmatpush1.msra.mxu0 %v1434
  %2318 = vmatprep.subr.mxu0 %v1427
  %2319 = vmatpush1.msra.mxu0 %v1426
  %2320 = vmatprep.subr.mxu0 %v1419
  %2321 = vmatpush1.msra.mxu0 %v1418
  %2322 = vmatprep.subr.mxu0 %v1411
  %2323 = vmatpush1.msra.mxu0 %v1410
  %2324 = vmatprep.subr.mxu0 %v1403
  %2325 = vmatpush1.msra.mxu0 %v1402
  %2326 = vmatprep.subr.mxu0 %v1395
  %2327 = vmatpush1.msra.mxu0 %v1394
  %2328 = vmatprep.subr.mxu0 %v1387
  %2329 = vmatpush1.msra.mxu0 %v1386
  %2330 = vmatprep.subr.mxu0 %v1379
  %2331 = vmatpush1.msra.mxu0 %v1378
  %2332 = vmatprep.subr.mxu0 %v1371
  %2333 = vmatpush1.msra.mxu0 %v1370
  %2334 = vmatprep.subr.mxu0 %v1619
  %2335 = vmatpush2.msra.mxu0 %v1618
  %2336 = vmatprep.subr.mxu0 %v1611
  %2337 = vmatpush2.msra.mxu0 %v1610
  %2338 = vmatprep.subr.mxu0 %v1603
  %2339 = vmatpush2.msra.mxu0 %v1602
  %2340 = vmatprep.subr.mxu0 %v1595
  %2341 = vmatpush2.msra.mxu0 %v1594
  %2342 = vmatprep.subr.mxu0 %v1587
  %2343 = vmatpush2.msra.mxu0 %v1586
  %2344 = vmatprep.subr.mxu0 %v1579
  %2345 = vmatpush2.msra.mxu0 %v1578
  %2346 = vmatprep.subr.mxu0 %v1571
  %2347 = vmatpush2.msra.mxu0 %v1570
  %2348 = vmatprep.subr.mxu0 %v1563
  %2349 = vmatpush2.msra.mxu0 %v1562
  %2350 = vmatprep.subr.mxu0 %v1555
  %2351 = vmatpush2.msra.mxu0 %v1554
  %2352 = vmatprep.subr.mxu0 %v1547
  %2353 = vmatpush2.msra.mxu0 %v1546
  %2354 = vmatprep.subr.mxu0 %v1539
  %2355 = vmatpush2.msra.mxu0 %v1538
  %2356 = vmatprep.subr.mxu0 %v1531
  %2357 = vmatpush2.msra.mxu0 %v1530
  %2358 = vmatprep.subr.mxu0 %v1523
  %2359 = vmatpush2.msra.mxu0 %v1522
  %2360 = vmatprep.subr.mxu0 %v1515
  %2361 = vmatpush2.msra.mxu0 %v1514
  %2362 = vmatprep.subr.mxu0 %v1507
  %2363 = vmatpush2.msra.mxu0 %v1506
  %2364 = vmatprep.subr.mxu0 %v1499
  %2365 = vmatpush2.msra.mxu0 %v1498
  %2366 = vmatprep.mubr.f32.mxu0 %v849
  %2367 = vmatmul.mubr.f32.gmra.mxu0 %v848
  %v2368 = vpop.f32.mrf.mxu0
  %v2369 = vadd.f32 0.0, %v2368
  %v2370 = vpop.f32.mrf.mxu0
  %v2371 = vadd.f32 0.0, %v2370
  %2372 = vdwg.mxu0
  %2373 = vmatprep.subr.mxu0 %v1747
  %2374 = vmatpush1.msra.mxu0 %v1746
  %2375 = vmatprep.subr.mxu0 %v1739
  %2376 = vmatpush1.msra.mxu0 %v1738
  %2377 = vmatprep.subr.mxu0 %v1731
  %2378 = vmatpush1.msra.mxu0 %v1730
  %2379 = vmatprep.subr.mxu0 %v1723
  %2380 = vmatpush1.msra.mxu0 %v1722
  %2381 = vmatprep.subr.mxu0 %v1715
  %2382 = vmatpush1.msra.mxu0 %v1714
  %2383 = vmatprep.subr.mxu0 %v1707
  %2384 = vmatpush1.msra.mxu0 %v1706
  %2385 = vmatprep.subr.mxu0 %v1699
  %2386 = vmatpush1.msra.mxu0 %v1698
  %2387 = vmatprep.subr.mxu0 %v1691
  %2388 = vmatpush1.msra.mxu0 %v1690
  %2389 = vmatprep.subr.mxu0 %v1683
  %2390 = vmatpush1.msra.mxu0 %v1682
  %2391 = vmatprep.subr.mxu0 %v1675
  %2392 = vmatpush1.msra.mxu0 %v1674
  %2393 = vmatprep.subr.mxu0 %v1667
  %2394 = vmatpush1.msra.mxu0 %v1666
  %2395 = vmatprep.subr.mxu0 %v1659
  %2396 = vmatpush1.msra.mxu0 %v1658
  %2397 = vmatprep.subr.mxu0 %v1651
  %2398 = vmatpush1.msra.mxu0 %v1650
  %2399 = vmatprep.subr.mxu0 %v1643
  %2400 = vmatpush1.msra.mxu0 %v1642
  %2401 = vmatprep.subr.mxu0 %v1635
  %2402 = vmatpush1.msra.mxu0 %v1634
  %2403 = vmatprep.subr.mxu0 %v1627
  %2404 = vmatpush1.msra.mxu0 %v1626
  %2405 = vmatprep.subr.mxu0 %v1875
  %2406 = vmatpush2.msra.mxu0 %v1874
  %2407 = vmatprep.subr.mxu0 %v1867
  %2408 = vmatpush2.msra.mxu0 %v1866
  %2409 = vmatprep.subr.mxu0 %v1859
  %2410 = vmatpush2.msra.mxu0 %v1858
  %2411 = vmatprep.subr.mxu0 %v1851
  %2412 = vmatpush2.msra.mxu0 %v1850
  %2413 = vmatprep.subr.mxu0 %v1843
  %2414 = vmatpush2.msra.mxu0 %v1842
  %2415 = vmatprep.subr.mxu0 %v1835
  %2416 = vmatpush2.msra.mxu0 %v1834
  %2417 = vmatprep.subr.mxu0 %v1827
  %2418 = vmatpush2.msra.mxu0 %v1826
  %2419 = vmatprep.subr.mxu0 %v1819
  %2420 = vmatpush2.msra.mxu0 %v1818
  %2421 = vmatprep.subr.mxu0 %v1811
  %2422 = vmatpush2.msra.mxu0 %v1810
  %2423 = vmatprep.subr.mxu0 %v1803
  %2424 = vmatpush2.msra.mxu0 %v1802
  %2425 = vmatprep.subr.mxu0 %v1795
  %2426 = vmatpush2.msra.mxu0 %v1794
  %2427 = vmatprep.subr.mxu0 %v1787
  %2428 = vmatpush2.msra.mxu0 %v1786
  %2429 = vmatprep.subr.mxu0 %v1779
  %2430 = vmatpush2.msra.mxu0 %v1778
  %2431 = vmatprep.subr.mxu0 %v1771
  %2432 = vmatpush2.msra.mxu0 %v1770
  %2433 = vmatprep.subr.mxu0 %v1763
  %2434 = vmatpush2.msra.mxu0 %v1762
  %2435 = vmatprep.subr.mxu0 %v1755
  %2436 = vmatpush2.msra.mxu0 %v1754
  %2437 = vmatprep.mubr.f32.mxu0 %v851
  %2438 = vmatmul.mubr.f32.gmra.mxu0 %v850
  %v2439 = vpop.f32.mrf.mxu0
  %v2440 = vadd.f32 %v2369, %v2439
  %v2441 = vpop.f32.mrf.mxu0
  %v2442 = vadd.f32 %v2371, %v2441
  %2443 = vdwg.mxu0
  %2444 = vmatprep.subr.mxu0 %v973
  %2445 = vmatpush1.msra.mxu0 %v972
  %2446 = vmatprep.subr.mxu0 %v965
  %2447 = vmatpush1.msra.mxu0 %v964
  %2448 = vmatprep.subr.mxu0 %v957
  %2449 = vmatpush1.msra.mxu0 %v956
  %2450 = vmatprep.subr.mxu0 %v949
  %2451 = vmatpush1.msra.mxu0 %v948
  %2452 = vmatprep.subr.mxu0 %v941
  %2453 = vmatpush1.msra.mxu0 %v940
  %2454 = vmatprep.subr.mxu0 %v933
  %2455 = vmatpush1.msra.mxu0 %v932
  %2456 = vmatprep.subr.mxu0 %v925
  %2457 = vmatpush1.msra.mxu0 %v924
  %2458 = vmatprep.subr.mxu0 %v917
  %2459 = vmatpush1.msra.mxu0 %v916
  %2460 = vmatprep.subr.mxu0 %v909
  %2461 = vmatpush1.msra.mxu0 %v908
  %2462 = vmatprep.subr.mxu0 %v901
  %2463 = vmatpush1.msra.mxu0 %v900
  %2464 = vmatprep.subr.mxu0 %v893
  %2465 = vmatpush1.msra.mxu0 %v892
  %2466 = vmatprep.subr.mxu0 %v885
  %2467 = vmatpush1.msra.mxu0 %v884
  %2468 = vmatprep.subr.mxu0 %v877
  %2469 = vmatpush1.msra.mxu0 %v876
  %2470 = vmatprep.subr.mxu0 %v869
  %2471 = vmatpush1.msra.mxu0 %v868
  %2472 = vmatprep.subr.mxu0 %v861
  %2473 = vmatpush1.msra.mxu0 %v860
  %2474 = vmatprep.subr.mxu0 %v853
  %2475 = vmatpush1.msra.mxu0 %v852
  %2476 = vmatprep.subr.mxu0 %v1101
  %2477 = vmatpush2.msra.mxu0 %v1100
  %2478 = vmatprep.subr.mxu0 %v1093
  %2479 = vmatpush2.msra.mxu0 %v1092
  %2480 = vmatprep.subr.mxu0 %v1085
  %2481 = vmatpush2.msra.mxu0 %v1084
  %2482 = vmatprep.subr.mxu0 %v1077
  %2483 = vmatpush2.msra.mxu0 %v1076
  %2484 = vmatprep.subr.mxu0 %v1069
  %2485 = vmatpush2.msra.mxu0 %v1068
  %2486 = vmatprep.subr.mxu0 %v1061
  %2487 = vmatpush2.msra.mxu0 %v1060
  %2488 = vmatprep.subr.mxu0 %v1053
  %2489 = vmatpush2.msra.mxu0 %v1052
  %2490 = vmatprep.subr.mxu0 %v1045
  %2491 = vmatpush2.msra.mxu0 %v1044
  %2492 = vmatprep.subr.mxu0 %v1037
  %2493 = vmatpush2.msra.mxu0 %v1036
  %2494 = vmatprep.subr.mxu0 %v1029
  %2495 = vmatpush2.msra.mxu0 %v1028
  %2496 = vmatprep.subr.mxu0 %v1021
  %2497 = vmatpush2.msra.mxu0 %v1020
  %2498 = vmatprep.subr.mxu0 %v1013
  %2499 = vmatpush2.msra.mxu0 %v1012
  %2500 = vmatprep.subr.mxu0 %v1005
  %2501 = vmatpush2.msra.mxu0 %v1004
  %2502 = vmatprep.subr.mxu0 %v997
  %2503 = vmatpush2.msra.mxu0 %v996
  %2504 = vmatprep.subr.mxu0 %v989
  %2505 = vmatpush2.msra.mxu0 %v988
  %2506 = vmatprep.subr.mxu0 %v981
  %2507 = vmatpush2.msra.mxu0 %v980
  %2508 = vmatprep.mubr.f32.mxu0 %v845
  %2509 = vmatmul.mubr.f32.gmra.mxu0 %v844
  %v2510 = vpop.f32.mrf.mxu0
  %v2511 = vadd.f32 %v2014, %v2510
  %v2512 = vpop.f32.mrf.mxu0
  %v2513 = vadd.f32 %v2016, %v2512
  %2514 = vdwg.mxu0
  %2515 = vmatprep.subr.mxu0 %v1229
  %2516 = vmatpush1.msra.mxu0 %v1228
  %2517 = vmatprep.subr.mxu0 %v1221
  %2518 = vmatpush1.msra.mxu0 %v1220
  %2519 = vmatprep.subr.mxu0 %v1213
  %2520 = vmatpush1.msra.mxu0 %v1212
  %2521 = vmatprep.subr.mxu0 %v1205
  %2522 = vmatpush1.msra.mxu0 %v1204
  %2523 = vmatprep.subr.mxu0 %v1197
  %2524 = vmatpush1.msra.mxu0 %v1196
  %2525 = vmatprep.subr.mxu0 %v1189
  %2526 = vmatpush1.msra.mxu0 %v1188
  %2527 = vmatprep.subr.mxu0 %v1181
  %2528 = vmatpush1.msra.mxu0 %v1180
  %2529 = vmatprep.subr.mxu0 %v1173
  %2530 = vmatpush1.msra.mxu0 %v1172
  %2531 = vmatprep.subr.mxu0 %v1165
  %2532 = vmatpush1.msra.mxu0 %v1164
  %2533 = vmatprep.subr.mxu0 %v1157
  %2534 = vmatpush1.msra.mxu0 %v1156
  %2535 = vmatprep.subr.mxu0 %v1149
  %2536 = vmatpush1.msra.mxu0 %v1148
  %2537 = vmatprep.subr.mxu0 %v1141
  %2538 = vmatpush1.msra.mxu0 %v1140
  %2539 = vmatprep.subr.mxu0 %v1133
  %2540 = vmatpush1.msra.mxu0 %v1132
  %2541 = vmatprep.subr.mxu0 %v1125
  %2542 = vmatpush1.msra.mxu0 %v1124
  %2543 = vmatprep.subr.mxu0 %v1117
  %2544 = vmatpush1.msra.mxu0 %v1116
  %2545 = vmatprep.subr.mxu0 %v1109
  %2546 = vmatpush1.msra.mxu0 %v1108
  %2547 = vmatprep.subr.mxu0 %v1357
  %2548 = vmatpush2.msra.mxu0 %v1356
  %2549 = vmatprep.subr.mxu0 %v1349
  %2550 = vmatpush2.msra.mxu0 %v1348
  %2551 = vmatprep.subr.mxu0 %v1341
  %2552 = vmatpush2.msra.mxu0 %v1340
  %2553 = vmatprep.subr.mxu0 %v1333
  %2554 = vmatpush2.msra.mxu0 %v1332
  %2555 = vmatprep.subr.mxu0 %v1325
  %2556 = vmatpush2.msra.mxu0 %v1324
  %2557 = vmatprep.subr.mxu0 %v1317
  %2558 = vmatpush2.msra.mxu0 %v1316
  %2559 = vmatprep.subr.mxu0 %v1309
  %2560 = vmatpush2.msra.mxu0 %v1308
  %2561 = vmatprep.subr.mxu0 %v1301
  %2562 = vmatpush2.msra.mxu0 %v1300
  %2563 = vmatprep.subr.mxu0 %v1293
  %2564 = vmatpush2.msra.mxu0 %v1292
  %2565 = vmatprep.subr.mxu0 %v1285
  %2566 = vmatpush2.msra.mxu0 %v1284
  %2567 = vmatprep.subr.mxu0 %v1277
  %2568 = vmatpush2.msra.mxu0 %v1276
  %2569 = vmatprep.subr.mxu0 %v1269
  %2570 = vmatpush2.msra.mxu0 %v1268
  %2571 = vmatprep.subr.mxu0 %v1261
  %2572 = vmatpush2.msra.mxu0 %v1260
  %2573 = vmatprep.subr.mxu0 %v1253
  %2574 = vmatpush2.msra.mxu0 %v1252
  %2575 = vmatprep.subr.mxu0 %v1245
  %2576 = vmatpush2.msra.mxu0 %v1244
  %2577 = vmatprep.subr.mxu0 %v1237
  %2578 = vmatpush2.msra.mxu0 %v1236
  %2579 = vmatprep.mubr.f32.mxu0 %v847
  %2580 = vmatmul.mubr.f32.gmra.mxu0 %v846
  %v2581 = vpop.f32.mrf.mxu0
  %v2582 = vadd.f32 %v2511, %v2581
  %v2583 = vpop.f32.mrf.mxu0
  %v2584 = vadd.f32 %v2513, %v2583
  %2585 = vdwg.mxu0
  %2586 = vmatprep.subr.mxu0 %v975
  %2587 = vmatpush1.msra.mxu0 %v974
  %2588 = vmatprep.subr.mxu0 %v967
  %2589 = vmatpush1.msra.mxu0 %v966
  %2590 = vmatprep.subr.mxu0 %v959
  %2591 = vmatpush1.msra.mxu0 %v958
  %2592 = vmatprep.subr.mxu0 %v951
  %2593 = vmatpush1.msra.mxu0 %v950
  %2594 = vmatprep.subr.mxu0 %v943
  %2595 = vmatpush1.msra.mxu0 %v942
  %2596 = vmatprep.subr.mxu0 %v935
  %2597 = vmatpush1.msra.mxu0 %v934
  %2598 = vmatprep.subr.mxu0 %v927
  %2599 = vmatpush1.msra.mxu0 %v926
  %2600 = vmatprep.subr.mxu0 %v919
  %2601 = vmatpush1.msra.mxu0 %v918
  %2602 = vmatprep.subr.mxu0 %v911
  %2603 = vmatpush1.msra.mxu0 %v910
  %2604 = vmatprep.subr.mxu0 %v903
  %2605 = vmatpush1.msra.mxu0 %v902
  %2606 = vmatprep.subr.mxu0 %v895
  %2607 = vmatpush1.msra.mxu0 %v894
  %2608 = vmatprep.subr.mxu0 %v887
  %2609 = vmatpush1.msra.mxu0 %v886
  %2610 = vmatprep.subr.mxu0 %v879
  %2611 = vmatpush1.msra.mxu0 %v878
  %2612 = vmatprep.subr.mxu0 %v871
  %2613 = vmatpush1.msra.mxu0 %v870
  %2614 = vmatprep.subr.mxu0 %v863
  %2615 = vmatpush1.msra.mxu0 %v862
  %2616 = vmatprep.subr.mxu0 %v855
  %2617 = vmatpush1.msra.mxu0 %v854
  %2618 = vmatprep.subr.mxu0 %v1103
  %2619 = vmatpush2.msra.mxu0 %v1102
  %2620 = vmatprep.subr.mxu0 %v1095
  %2621 = vmatpush2.msra.mxu0 %v1094
  %2622 = vmatprep.subr.mxu0 %v1087
  %2623 = vmatpush2.msra.mxu0 %v1086
  %2624 = vmatprep.subr.mxu0 %v1079
  %2625 = vmatpush2.msra.mxu0 %v1078
  %2626 = vmatprep.subr.mxu0 %v1071
  %2627 = vmatpush2.msra.mxu0 %v1070
  %2628 = vmatprep.subr.mxu0 %v1063
  %2629 = vmatpush2.msra.mxu0 %v1062
  %2630 = vmatprep.subr.mxu0 %v1055
  %2631 = vmatpush2.msra.mxu0 %v1054
  %2632 = vmatprep.subr.mxu0 %v1047
  %2633 = vmatpush2.msra.mxu0 %v1046
  %2634 = vmatprep.subr.mxu0 %v1039
  %2635 = vmatpush2.msra.mxu0 %v1038
  %2636 = vmatprep.subr.mxu0 %v1031
  %2637 = vmatpush2.msra.mxu0 %v1030
  %2638 = vmatprep.subr.mxu0 %v1023
  %2639 = vmatpush2.msra.mxu0 %v1022
  %2640 = vmatprep.subr.mxu0 %v1015
  %2641 = vmatpush2.msra.mxu0 %v1014
  %2642 = vmatprep.subr.mxu0 %v1007
  %2643 = vmatpush2.msra.mxu0 %v1006
  %2644 = vmatprep.subr.mxu0 %v999
  %2645 = vmatpush2.msra.mxu0 %v998
  %2646 = vmatprep.subr.mxu0 %v991
  %2647 = vmatpush2.msra.mxu0 %v990
  %2648 = vmatprep.subr.mxu0 %v983
  %2649 = vmatpush2.msra.mxu0 %v982
  %2650 = vmatprep.mubr.f32.mxu0 %v845
  %2651 = vmatmul.mubr.f32.gmra.mxu0 %v844
  %v2652 = vpop.f32.mrf.mxu0
  %v2653 = vadd.f32 %v2156, %v2652
  %v2654 = vpop.f32.mrf.mxu0
  %v2655 = vadd.f32 %v2158, %v2654
  %2656 = vdwg.mxu0
  %2657 = vmatprep.subr.mxu0 %v1231
  %2658 = vmatpush1.msra.mxu0 %v1230
  %2659 = vmatprep.subr.mxu0 %v1223
  %2660 = vmatpush1.msra.mxu0 %v1222
  %2661 = vmatprep.subr.mxu0 %v1215
  %2662 = vmatpush1.msra.mxu0 %v1214
  %2663 = vmatprep.subr.mxu0 %v1207
  %2664 = vmatpush1.msra.mxu0 %v1206
  %2665 = vmatprep.subr.mxu0 %v1199
  %2666 = vmatpush1.msra.mxu0 %v1198
  %2667 = vmatprep.subr.mxu0 %v1191
  %2668 = vmatpush1.msra.mxu0 %v1190
  %2669 = vmatprep.subr.mxu0 %v1183
  %2670 = vmatpush1.msra.mxu0 %v1182
  %2671 = vmatprep.subr.mxu0 %v1175
  %2672 = vmatpush1.msra.mxu0 %v1174
  %2673 = vmatprep.subr.mxu0 %v1167
  %2674 = vmatpush1.msra.mxu0 %v1166
  %2675 = vmatprep.subr.mxu0 %v1159
  %2676 = vmatpush1.msra.mxu0 %v1158
  %2677 = vmatprep.subr.mxu0 %v1151
  %2678 = vmatpush1.msra.mxu0 %v1150
  %2679 = vmatprep.subr.mxu0 %v1143
  %2680 = vmatpush1.msra.mxu0 %v1142
  %2681 = vmatprep.subr.mxu0 %v1135
  %2682 = vmatpush1.msra.mxu0 %v1134
  %2683 = vmatprep.subr.mxu0 %v1127
  %2684 = vmatpush1.msra.mxu0 %v1126
  %2685 = vmatprep.subr.mxu0 %v1119
  %2686 = vmatpush1.msra.mxu0 %v1118
  %2687 = vmatprep.subr.mxu0 %v1111
  %2688 = vmatpush1.msra.mxu0 %v1110
  %2689 = vmatprep.subr.mxu0 %v1359
  %2690 = vmatpush2.msra.mxu0 %v1358
  %2691 = vmatprep.subr.mxu0 %v1351
  %2692 = vmatpush2.msra.mxu0 %v1350
  %2693 = vmatprep.subr.mxu0 %v1343
  %2694 = vmatpush2.msra.mxu0 %v1342
  %2695 = vmatprep.subr.mxu0 %v1335
  %2696 = vmatpush2.msra.mxu0 %v1334
  %2697 = vmatprep.subr.mxu0 %v1327
  %2698 = vmatpush2.msra.mxu0 %v1326
  %2699 = vmatprep.subr.mxu0 %v1319
  %2700 = vmatpush2.msra.mxu0 %v1318
  %2701 = vmatprep.subr.mxu0 %v1311
  %2702 = vmatpush2.msra.mxu0 %v1310
  %2703 = vmatprep.subr.mxu0 %v1303
  %2704 = vmatpush2.msra.mxu0 %v1302
  %2705 = vmatprep.subr.mxu0 %v1295
  %2706 = vmatpush2.msra.mxu0 %v1294
  %2707 = vmatprep.subr.mxu0 %v1287
  %2708 = vmatpush2.msra.mxu0 %v1286
  %2709 = vmatprep.subr.mxu0 %v1279
  %2710 = vmatpush2.msra.mxu0 %v1278
  %2711 = vmatprep.subr.mxu0 %v1271
  %2712 = vmatpush2.msra.mxu0 %v1270
  %2713 = vmatprep.subr.mxu0 %v1263
  %2714 = vmatpush2.msra.mxu0 %v1262
  %2715 = vmatprep.subr.mxu0 %v1255
  %2716 = vmatpush2.msra.mxu0 %v1254
  %2717 = vmatprep.subr.mxu0 %v1247
  %2718 = vmatpush2.msra.mxu0 %v1246
  %2719 = vmatprep.subr.mxu0 %v1239
  %2720 = vmatpush2.msra.mxu0 %v1238
  %2721 = vmatprep.mubr.f32.mxu0 %v847
  %2722 = vmatmul.mubr.f32.gmra.mxu0 %v846
  %v2723 = vpop.f32.mrf.mxu0
  %v2724 = vadd.f32 %v2653, %v2723
  %v2725 = vpop.f32.mrf.mxu0
  %v2726 = vadd.f32 %v2655, %v2725
  %2727 = vdwg.mxu0
  %2728 = vmatprep.subr.mxu0 %v977
  %2729 = vmatpush1.msra.mxu0 %v976
  %2730 = vmatprep.subr.mxu0 %v969
  %2731 = vmatpush1.msra.mxu0 %v968
  %2732 = vmatprep.subr.mxu0 %v961
  %2733 = vmatpush1.msra.mxu0 %v960
  %2734 = vmatprep.subr.mxu0 %v953
  %2735 = vmatpush1.msra.mxu0 %v952
  %2736 = vmatprep.subr.mxu0 %v945
  %2737 = vmatpush1.msra.mxu0 %v944
  %2738 = vmatprep.subr.mxu0 %v937
  %2739 = vmatpush1.msra.mxu0 %v936
  %2740 = vmatprep.subr.mxu0 %v929
  %2741 = vmatpush1.msra.mxu0 %v928
  %2742 = vmatprep.subr.mxu0 %v921
  %2743 = vmatpush1.msra.mxu0 %v920
  %2744 = vmatprep.subr.mxu0 %v913
  %2745 = vmatpush1.msra.mxu0 %v912
  %2746 = vmatprep.subr.mxu0 %v905
  %2747 = vmatpush1.msra.mxu0 %v904
  %2748 = vmatprep.subr.mxu0 %v897
  %2749 = vmatpush1.msra.mxu0 %v896
  %2750 = vmatprep.subr.mxu0 %v889
  %2751 = vmatpush1.msra.mxu0 %v888
  %2752 = vmatprep.subr.mxu0 %v881
  %2753 = vmatpush1.msra.mxu0 %v880
  %2754 = vmatprep.subr.mxu0 %v873
  %2755 = vmatpush1.msra.mxu0 %v872
  %2756 = vmatprep.subr.mxu0 %v865
  %2757 = vmatpush1.msra.mxu0 %v864
  %2758 = vmatprep.subr.mxu0 %v857
  %2759 = vmatpush1.msra.mxu0 %v856
  %2760 = vmatprep.subr.mxu0 %v1105
  %2761 = vmatpush2.msra.mxu0 %v1104
  %2762 = vmatprep.subr.mxu0 %v1097
  %2763 = vmatpush2.msra.mxu0 %v1096
  %2764 = vmatprep.subr.mxu0 %v1089
  %2765 = vmatpush2.msra.mxu0 %v1088
  %2766 = vmatprep.subr.mxu0 %v1081
  %2767 = vmatpush2.msra.mxu0 %v1080
  %2768 = vmatprep.subr.mxu0 %v1073
  %2769 = vmatpush2.msra.mxu0 %v1072
  %2770 = vmatprep.subr.mxu0 %v1065
  %2771 = vmatpush2.msra.mxu0 %v1064
  %2772 = vmatprep.subr.mxu0 %v1057
  %2773 = vmatpush2.msra.mxu0 %v1056
  %2774 = vmatprep.subr.mxu0 %v1049
  %2775 = vmatpush2.msra.mxu0 %v1048
  %2776 = vmatprep.subr.mxu0 %v1041
  %2777 = vmatpush2.msra.mxu0 %v1040
  %2778 = vmatprep.subr.mxu0 %v1033
  %2779 = vmatpush2.msra.mxu0 %v1032
  %2780 = vmatprep.subr.mxu0 %v1025
  %2781 = vmatpush2.msra.mxu0 %v1024
  %2782 = vmatprep.subr.mxu0 %v1017
  %2783 = vmatpush2.msra.mxu0 %v1016
  %2784 = vmatprep.subr.mxu0 %v1009
  %2785 = vmatpush2.msra.mxu0 %v1008
  %2786 = vmatprep.subr.mxu0 %v1001
  %2787 = vmatpush2.msra.mxu0 %v1000
  %2788 = vmatprep.subr.mxu0 %v993
  %2789 = vmatpush2.msra.mxu0 %v992
  %2790 = vmatprep.subr.mxu0 %v985
  %2791 = vmatpush2.msra.mxu0 %v984
  %2792 = vmatprep.mubr.f32.mxu0 %v845
  %2793 = vmatmul.mubr.f32.gmra.mxu0 %v844
  %v2794 = vpop.f32.mrf.mxu0
  %v2795 = vadd.f32 %v2298, %v2794
  %v2796 = vpop.f32.mrf.mxu0
  %v2797 = vadd.f32 %v2300, %v2796
  %2798 = vdwg.mxu0
  %2799 = vmatprep.subr.mxu0 %v1233
  %2800 = vmatpush1.msra.mxu0 %v1232
  %2801 = vmatprep.subr.mxu0 %v1225
  %2802 = vmatpush1.msra.mxu0 %v1224
  %2803 = vmatprep.subr.mxu0 %v1217
  %2804 = vmatpush1.msra.mxu0 %v1216
  %2805 = vmatprep.subr.mxu0 %v1209
  %2806 = vmatpush1.msra.mxu0 %v1208
  %2807 = vmatprep.subr.mxu0 %v1201
  %2808 = vmatpush1.msra.mxu0 %v1200
  %2809 = vmatprep.subr.mxu0 %v1193
  %2810 = vmatpush1.msra.mxu0 %v1192
  %2811 = vmatprep.subr.mxu0 %v1185
  %2812 = vmatpush1.msra.mxu0 %v1184
  %2813 = vmatprep.subr.mxu0 %v1177
  %2814 = vmatpush1.msra.mxu0 %v1176
  %2815 = vmatprep.subr.mxu0 %v1169
  %2816 = vmatpush1.msra.mxu0 %v1168
  %2817 = vmatprep.subr.mxu0 %v1161
  %2818 = vmatpush1.msra.mxu0 %v1160
  %2819 = vmatprep.subr.mxu0 %v1153
  %2820 = vmatpush1.msra.mxu0 %v1152
  %2821 = vmatprep.subr.mxu0 %v1145
  %2822 = vmatpush1.msra.mxu0 %v1144
  %2823 = vmatprep.subr.mxu0 %v1137
  %2824 = vmatpush1.msra.mxu0 %v1136
  %2825 = vmatprep.subr.mxu0 %v1129
  %2826 = vmatpush1.msra.mxu0 %v1128
  %2827 = vmatprep.subr.mxu0 %v1121
  %2828 = vmatpush1.msra.mxu0 %v1120
  %2829 = vmatprep.subr.mxu0 %v1113
  %2830 = vmatpush1.msra.mxu0 %v1112
  %2831 = vmatprep.subr.mxu0 %v1361
  %2832 = vmatpush2.msra.mxu0 %v1360
  %2833 = vmatprep.subr.mxu0 %v1353
  %2834 = vmatpush2.msra.mxu0 %v1352
  %2835 = vmatprep.subr.mxu0 %v1345
  %2836 = vmatpush2.msra.mxu0 %v1344
  %2837 = vmatprep.subr.mxu0 %v1337
  %2838 = vmatpush2.msra.mxu0 %v1336
  %2839 = vmatprep.subr.mxu0 %v1329
  %2840 = vmatpush2.msra.mxu0 %v1328
  %2841 = vmatprep.subr.mxu0 %v1321
  %2842 = vmatpush2.msra.mxu0 %v1320
  %2843 = vmatprep.subr.mxu0 %v1313
  %2844 = vmatpush2.msra.mxu0 %v1312
  %2845 = vmatprep.subr.mxu0 %v1305
  %2846 = vmatpush2.msra.mxu0 %v1304
  %2847 = vmatprep.subr.mxu0 %v1297
  %2848 = vmatpush2.msra.mxu0 %v1296
  %2849 = vmatprep.subr.mxu0 %v1289
  %2850 = vmatpush2.msra.mxu0 %v1288
  %2851 = vmatprep.subr.mxu0 %v1281
  %2852 = vmatpush2.msra.mxu0 %v1280
  %2853 = vmatprep.subr.mxu0 %v1273
  %2854 = vmatpush2.msra.mxu0 %v1272
  %2855 = vmatprep.subr.mxu0 %v1265
  %2856 = vmatpush2.msra.mxu0 %v1264
  %2857 = vmatprep.subr.mxu0 %v1257
  %2858 = vmatpush2.msra.mxu0 %v1256
  %2859 = vmatprep.subr.mxu0 %v1249
  %2860 = vmatpush2.msra.mxu0 %v1248
  %2861 = vmatprep.subr.mxu0 %v1241
  %2862 = vmatpush2.msra.mxu0 %v1240
  %2863 = vmatprep.mubr.f32.mxu0 %v847
  %2864 = vmatmul.mubr.f32.gmra.mxu0 %v846
  %v2865 = vpop.f32.mrf.mxu0
  %v2866 = vadd.f32 %v2795, %v2865
  %v2867 = vpop.f32.mrf.mxu0
  %v2868 = vadd.f32 %v2797, %v2867
  %2869 = vdwg.mxu0
  %2870 = vmatprep.subr.mxu0 %v979
  %2871 = vmatpush1.msra.mxu0 %v978
  %2872 = vmatprep.subr.mxu0 %v971
  %2873 = vmatpush1.msra.mxu0 %v970
  %2874 = vmatprep.subr.mxu0 %v963
  %2875 = vmatpush1.msra.mxu0 %v962
  %2876 = vmatprep.subr.mxu0 %v955
  %2877 = vmatpush1.msra.mxu0 %v954
  %2878 = vmatprep.subr.mxu0 %v947
  %2879 = vmatpush1.msra.mxu0 %v946
  %2880 = vmatprep.subr.mxu0 %v939
  %2881 = vmatpush1.msra.mxu0 %v938
  %2882 = vmatprep.subr.mxu0 %v931
  %2883 = vmatpush1.msra.mxu0 %v930
  %2884 = vmatprep.subr.mxu0 %v923
  %2885 = vmatpush1.msra.mxu0 %v922
  %2886 = vmatprep.subr.mxu0 %v915
  %2887 = vmatpush1.msra.mxu0 %v914
  %2888 = vmatprep.subr.mxu0 %v907
  %2889 = vmatpush1.msra.mxu0 %v906
  %2890 = vmatprep.subr.mxu0 %v899
  %2891 = vmatpush1.msra.mxu0 %v898
  %2892 = vmatprep.subr.mxu0 %v891
  %2893 = vmatpush1.msra.mxu0 %v890
  %2894 = vmatprep.subr.mxu0 %v883
  %2895 = vmatpush1.msra.mxu0 %v882
  %2896 = vmatprep.subr.mxu0 %v875
  %2897 = vmatpush1.msra.mxu0 %v874
  %2898 = vmatprep.subr.mxu0 %v867
  %2899 = vmatpush1.msra.mxu0 %v866
  %2900 = vmatprep.subr.mxu0 %v859
  %2901 = vmatpush1.msra.mxu0 %v858
  %2902 = vmatprep.subr.mxu0 %v1107
  %2903 = vmatpush2.msra.mxu0 %v1106
  %2904 = vmatprep.subr.mxu0 %v1099
  %2905 = vmatpush2.msra.mxu0 %v1098
  %2906 = vmatprep.subr.mxu0 %v1091
  %2907 = vmatpush2.msra.mxu0 %v1090
  %2908 = vmatprep.subr.mxu0 %v1083
  %2909 = vmatpush2.msra.mxu0 %v1082
  %2910 = vmatprep.subr.mxu0 %v1075
  %2911 = vmatpush2.msra.mxu0 %v1074
  %2912 = vmatprep.subr.mxu0 %v1067
  %2913 = vmatpush2.msra.mxu0 %v1066
  %2914 = vmatprep.subr.mxu0 %v1059
  %2915 = vmatpush2.msra.mxu0 %v1058
  %2916 = vmatprep.subr.mxu0 %v1051
  %2917 = vmatpush2.msra.mxu0 %v1050
  %2918 = vmatprep.subr.mxu0 %v1043
  %2919 = vmatpush2.msra.mxu0 %v1042
  %2920 = vmatprep.subr.mxu0 %v1035
  %2921 = vmatpush2.msra.mxu0 %v1034
  %2922 = vmatprep.subr.mxu0 %v1027
  %2923 = vmatpush2.msra.mxu0 %v1026
  %2924 = vmatprep.subr.mxu0 %v1019
  %2925 = vmatpush2.msra.mxu0 %v1018
  %2926 = vmatprep.subr.mxu0 %v1011
  %2927 = vmatpush2.msra.mxu0 %v1010
  %2928 = vmatprep.subr.mxu0 %v1003
  %2929 = vmatpush2.msra.mxu0 %v1002
  %2930 = vmatprep.subr.mxu0 %v995
  %2931 = vmatpush2.msra.mxu0 %v994
  %2932 = vmatprep.subr.mxu0 %v987
  %2933 = vmatpush2.msra.mxu0 %v986
  %2934 = vmatprep.mubr.f32.mxu0 %v845
  %2935 = vmatmul.mubr.f32.gmra.mxu0 %v844
  %v2936 = vpop.f32.mrf.mxu0
  %v2937 = vadd.f32 %v2440, %v2936
  %v2938 = vpop.f32.mrf.mxu0
  %v2939 = vadd.f32 %v2442, %v2938
  %2940 = vdwg.mxu0
  %2941 = vmatprep.subr.mxu0 %v1235
  %2942 = vmatpush1.msra.mxu0 %v1234
  %2943 = vmatprep.subr.mxu0 %v1227
  %2944 = vmatpush1.msra.mxu0 %v1226
  %2945 = vmatprep.subr.mxu0 %v1219
  %2946 = vmatpush1.msra.mxu0 %v1218
  %2947 = vmatprep.subr.mxu0 %v1211
  %2948 = vmatpush1.msra.mxu0 %v1210
  %2949 = vmatprep.subr.mxu0 %v1203
  %2950 = vmatpush1.msra.mxu0 %v1202
  %2951 = vmatprep.subr.mxu0 %v1195
  %2952 = vmatpush1.msra.mxu0 %v1194
  %2953 = vmatprep.subr.mxu0 %v1187
  %2954 = vmatpush1.msra.mxu0 %v1186
  %2955 = vmatprep.subr.mxu0 %v1179
  %2956 = vmatpush1.msra.mxu0 %v1178
  %2957 = vmatprep.subr.mxu0 %v1171
  %2958 = vmatpush1.msra.mxu0 %v1170
  %2959 = vmatprep.subr.mxu0 %v1163
  %2960 = vmatpush1.msra.mxu0 %v1162
  %2961 = vmatprep.subr.mxu0 %v1155
  %2962 = vmatpush1.msra.mxu0 %v1154
  %2963 = vmatprep.subr.mxu0 %v1147
  %2964 = vmatpush1.msra.mxu0 %v1146
  %2965 = vmatprep.subr.mxu0 %v1139
  %2966 = vmatpush1.msra.mxu0 %v1138
  %2967 = vmatprep.subr.mxu0 %v1131
  %2968 = vmatpush1.msra.mxu0 %v1130
  %2969 = vmatprep.subr.mxu0 %v1123
  %2970 = vmatpush1.msra.mxu0 %v1122
  %2971 = vmatprep.subr.mxu0 %v1115
  %2972 = vmatpush1.msra.mxu0 %v1114
  %2973 = vmatprep.subr.mxu0 %v1363
  %2974 = vmatpush2.msra.mxu0 %v1362
  %2975 = vmatprep.subr.mxu0 %v1355
  %2976 = vmatpush2.msra.mxu0 %v1354
  %2977 = vmatprep.subr.mxu0 %v1347
  %2978 = vmatpush2.msra.mxu0 %v1346
  %2979 = vmatprep.subr.mxu0 %v1339
  %2980 = vmatpush2.msra.mxu0 %v1338
  %2981 = vmatprep.subr.mxu0 %v1331
  %2982 = vmatpush2.msra.mxu0 %v1330
  %2983 = vmatprep.subr.mxu0 %v1323
  %2984 = vmatpush2.msra.mxu0 %v1322
  %2985 = vmatprep.subr.mxu0 %v1315
  %2986 = vmatpush2.msra.mxu0 %v1314
  %2987 = vmatprep.subr.mxu0 %v1307
  %2988 = vmatpush2.msra.mxu0 %v1306
  %2989 = vmatprep.subr.mxu0 %v1299
  %2990 = vmatpush2.msra.mxu0 %v1298
  %2991 = vmatprep.subr.mxu0 %v1291
  %2992 = vmatpush2.msra.mxu0 %v1290
  %2993 = vmatprep.subr.mxu0 %v1283
  %2994 = vmatpush2.msra.mxu0 %v1282
  %2995 = vmatprep.subr.mxu0 %v1275
  %2996 = vmatpush2.msra.mxu0 %v1274
  %2997 = vmatprep.subr.mxu0 %v1267
  %2998 = vmatpush2.msra.mxu0 %v1266
  %2999 = vmatprep.subr.mxu0 %v1259
  %3000 = vmatpush2.msra.mxu0 %v1258
  %3001 = vmatprep.subr.mxu0 %v1251
  %3002 = vmatpush2.msra.mxu0 %v1250
  %3003 = vmatprep.subr.mxu0 %v1243
  %3004 = vmatpush2.msra.mxu0 %v1242
  %3005 = vmatprep.mubr.f32.mxu0 %v847
  %3006 = vmatmul.mubr.f32.gmra.mxu0 %v846
  %v3007 = vpop.f32.mrf.mxu0
  %v3008 = vadd.f32 %v2937, %v3007
  %v3009 = vpop.f32.mrf.mxu0
  %v3010 = vadd.f32 %v2939, %v3009
  %3011 = vdwg.mxu0
  %v3012 = vld [vmem:[%s4] sm:$0xff]
  %v3014 = vlaneseq
  %v3015 = vshrl.u32 %v3014, 7
  %v3016 = vsub.s32 0, %v3015
  %v3017 = vrot.slane %v3012, %v3016
  %v3018 = vlaneseq
  %v3019 = vshrl.u32 %v3018, 7
  %v3020 = vsub.s32 1, %v3019
  %v3021 = vrot.slane %v3012, %v3020
  %v3022 = vlaneseq
  %v3023 = vshrl.u32 %v3022, 7
  %v3024 = vsub.s32 2, %v3023
  %v3025 = vrot.slane %v3012, %v3024
  %v3026 = vlaneseq
  %v3027 = vshrl.u32 %v3026, 7
  %v3028 = vsub.s32 3, %v3027
  %v3029 = vrot.slane %v3012, %v3028
  %v3030 = vlaneseq
  %v3031 = vshrl.u32 %v3030, 7
  %v3032 = vsub.s32 4, %v3031
  %v3033 = vrot.slane %v3012, %v3032
  %v3034 = vlaneseq
  %v3035 = vshrl.u32 %v3034, 7
  %v3036 = vsub.s32 5, %v3035
  %v3037 = vrot.slane %v3012, %v3036
  %v3038 = vlaneseq
  %v3039 = vshrl.u32 %v3038, 7
  %v3040 = vsub.s32 6, %v3039
  %v3041 = vrot.slane %v3012, %v3040
  %v3042 = vlaneseq
  %v3043 = vshrl.u32 %v3042, 7
  %v3044 = vsub.s32 7, %v3043
  %v3045 = vrot.slane %v3012, %v3044
  %v3054 = vadd.f32 %v2582, %v3017
  %v3055 = vadd.f32 %v2584, %v3021
  %v3056 = vadd.f32 %v2724, %v3025
  %v3057 = vadd.f32 %v2726, %v3029
  %v3058 = vadd.f32 %v2866, %v3033
  %v3059 = vadd.f32 %v2868, %v3037
  %v3060 = vadd.f32 %v3008, %v3041
  %v3061 = vadd.f32 %v3010, %v3045
  %v3062 = vmax.f32 %v3054, 0.0
  %v3063 = vmax.f32 %v3055, 0.0
  %v3064 = vmax.f32 %v3056, 0.0
  %v3065 = vmax.f32 %v3057, 0.0
  %v3066 = vmax.f32 %v3058, 0.0
  %v3067 = vmax.f32 %v3059, 0.0
  %v3068 = vmax.f32 %v3060, 0.0
  %v3069 = vmax.f32 %v3061, 0.0
  %v3070 = vld [vmem:[%s5] sm:$0xff]
  %v3071 = vld [vmem:[%s5 + $0x8] sm:$0xff]
  %v3072 = vld [vmem:[%s5 + $0x10] sm:$0xff]
  %v3073 = vld [vmem:[%s5 + $0x18] sm:$0xff]
  %v3074 = vld [vmem:[%s5 + $0x20] sm:$0xff]
  %v3075 = vld [vmem:[%s5 + $0x28] sm:$0xff]
  %v3076 = vld [vmem:[%s5 + $0x30] sm:$0xff]
  %v3077 = vld [vmem:[%s5 + $0x38] sm:$0xff]
  %v3078 = vld [vmem:[%s5 + $0x40] sm:$0xff]
  %v3079 = vld [vmem:[%s5 + $0x48] sm:$0xff]
  %v3080 = vld [vmem:[%s5 + $0x50] sm:$0xff]
  %v3081 = vld [vmem:[%s5 + $0x58] sm:$0xff]
  %v3082 = vld [vmem:[%s5 + $0x60] sm:$0xff]
  %v3083 = vld [vmem:[%s5 + $0x68] sm:$0xff]
  %v3084 = vld [vmem:[%s5 + $0x70] sm:$0xff]
  %v3085 = vld [vmem:[%s5 + $0x78] sm:$0xff]
  %v3086 = vld [vmem:[%s5 + $0x80] sm:$0xff]
  %v3087 = vld [vmem:[%s5 + $0x88] sm:$0xff]
  %v3088 = vld [vmem:[%s5 + $0x90] sm:$0xff]
  %v3089 = vld [vmem:[%s5 + $0x98] sm:$0xff]
  %v3090 = vld [vmem:[%s5 + $0xa0] sm:$0xff]
  %v3091 = vld [vmem:[%s5 + $0xa8] sm:$0xff]
  %v3092 = vld [vmem:[%s5 + $0xb0] sm:$0xff]
  %v3093 = vld [vmem:[%s5 + $0xb8] sm:$0xff]
  %v3094 = vld [vmem:[%s5 + $0xc0] sm:$0xff]
  %v3095 = vld [vmem:[%s5 + $0xc8] sm:$0xff]
  %v3096 = vld [vmem:[%s5 + $0xd0] sm:$0xff]
  %v3097 = vld [vmem:[%s5 + $0xd8] sm:$0xff]
  %v3098 = vld [vmem:[%s5 + $0xe0] sm:$0xff]
  %v3099 = vld [vmem:[%s5 + $0xe8] sm:$0xff]
  %v3100 = vld [vmem:[%s5 + $0xf0] sm:$0xff]
  %v3101 = vld [vmem:[%s5 + $0xf8] sm:$0xff]
  %v3102 = vld [vmem:[%s5 + $0x100] sm:$0xff]
  %v3103 = vld [vmem:[%s5 + $0x108] sm:$0xff]
  %v3104 = vld [vmem:[%s5 + $0x110] sm:$0xff]
  %v3105 = vld [vmem:[%s5 + $0x118] sm:$0xff]
  %v3106 = vld [vmem:[%s5 + $0x120] sm:$0xff]
  %v3107 = vld [vmem:[%s5 + $0x128] sm:$0xff]
  %v3108 = vld [vmem:[%s5 + $0x130] sm:$0xff]
  %v3109 = vld [vmem:[%s5 + $0x138] sm:$0xff]
  %v3110 = vld [vmem:[%s5 + $0x140] sm:$0xff]
  %v3111 = vld [vmem:[%s5 + $0x148] sm:$0xff]
  %v3112 = vld [vmem:[%s5 + $0x150] sm:$0xff]
  %v3113 = vld [vmem:[%s5 + $0x158] sm:$0xff]
  %v3114 = vld [vmem:[%s5 + $0x160] sm:$0xff]
  %v3115 = vld [vmem:[%s5 + $0x168] sm:$0xff]
  %v3116 = vld [vmem:[%s5 + $0x170] sm:$0xff]
  %v3117 = vld [vmem:[%s5 + $0x178] sm:$0xff]
  %v3118 = vld [vmem:[%s5 + $0x180] sm:$0xff]
  %v3119 = vld [vmem:[%s5 + $0x188] sm:$0xff]
  %v3120 = vld [vmem:[%s5 + $0x190] sm:$0xff]
  %v3121 = vld [vmem:[%s5 + $0x198] sm:$0xff]
  %v3122 = vld [vmem:[%s5 + $0x1a0] sm:$0xff]
  %v3123 = vld [vmem:[%s5 + $0x1a8] sm:$0xff]
  %v3124 = vld [vmem:[%s5 + $0x1b0] sm:$0xff]
  %v3125 = vld [vmem:[%s5 + $0x1b8] sm:$0xff]
  %v3126 = vld [vmem:[%s5 + $0x1c0] sm:$0xff]
  %v3127 = vld [vmem:[%s5 + $0x1c8] sm:$0xff]
  %v3128 = vld [vmem:[%s5 + $0x1d0] sm:$0xff]
  %v3129 = vld [vmem:[%s5 + $0x1d8] sm:$0xff]
  %v3130 = vld [vmem:[%s5 + $0x1e0] sm:$0xff]
  %v3131 = vld [vmem:[%s5 + $0x1e8] sm:$0xff]
  %v3132 = vld [vmem:[%s5 + $0x1f0] sm:$0xff]
  %v3133 = vld [vmem:[%s5 + $0x1f8] sm:$0xff]
  %v3134 = vld [vmem:[%s5 + $0x200] sm:$0xff]
  %v3135 = vld [vmem:[%s5 + $0x208] sm:$0xff]
  %v3136 = vld [vmem:[%s5 + $0x210] sm:$0xff]
  %v3137 = vld [vmem:[%s5 + $0x218] sm:$0xff]
  %v3138 = vld [vmem:[%s5 + $0x220] sm:$0xff]
  %v3139 = vld [vmem:[%s5 + $0x228] sm:$0xff]
  %v3140 = vld [vmem:[%s5 + $0x230] sm:$0xff]
  %v3141 = vld [vmem:[%s5 + $0x238] sm:$0xff]
  %v3142 = vld [vmem:[%s5 + $0x240] sm:$0xff]
  %v3143 = vld [vmem:[%s5 + $0x248] sm:$0xff]
  %v3144 = vld [vmem:[%s5 + $0x250] sm:$0xff]
  %v3145 = vld [vmem:[%s5 + $0x258] sm:$0xff]
  %v3146 = vld [vmem:[%s5 + $0x260] sm:$0xff]
  %v3147 = vld [vmem:[%s5 + $0x268] sm:$0xff]
  %v3148 = vld [vmem:[%s5 + $0x270] sm:$0xff]
  %v3149 = vld [vmem:[%s5 + $0x278] sm:$0xff]
  %v3150 = vld [vmem:[%s5 + $0x280] sm:$0xff]
  %v3151 = vld [vmem:[%s5 + $0x288] sm:$0xff]
  %v3152 = vld [vmem:[%s5 + $0x290] sm:$0xff]
  %v3153 = vld [vmem:[%s5 + $0x298] sm:$0xff]
  %v3154 = vld [vmem:[%s5 + $0x2a0] sm:$0xff]
  %v3155 = vld [vmem:[%s5 + $0x2a8] sm:$0xff]
  %v3156 = vld [vmem:[%s5 + $0x2b0] sm:$0xff]
  %v3157 = vld [vmem:[%s5 + $0x2b8] sm:$0xff]
  %v3158 = vld [vmem:[%s5 + $0x2c0] sm:$0xff]
  %v3159 = vld [vmem:[%s5 + $0x2c8] sm:$0xff]
  %v3160 = vld [vmem:[%s5 + $0x2d0] sm:$0xff]
  %v3161 = vld [vmem:[%s5 + $0x2d8] sm:$0xff]
  %v3162 = vld [vmem:[%s5 + $0x2e0] sm:$0xff]
  %v3163 = vld [vmem:[%s5 + $0x2e8] sm:$0xff]
  %v3164 = vld [vmem:[%s5 + $0x2f0] sm:$0xff]
  %v3165 = vld [vmem:[%s5 + $0x2f8] sm:$0xff]
  %v3166 = vld [vmem:[%s5 + $0x300] sm:$0xff]
  %v3167 = vld [vmem:[%s5 + $0x308] sm:$0xff]
  %v3168 = vld [vmem:[%s5 + $0x310] sm:$0xff]
  %v3169 = vld [vmem:[%s5 + $0x318] sm:$0xff]
  %v3170 = vld [vmem:[%s5 + $0x320] sm:$0xff]
  %v3171 = vld [vmem:[%s5 + $0x328] sm:$0xff]
  %v3172 = vld [vmem:[%s5 + $0x330] sm:$0xff]
  %v3173 = vld [vmem:[%s5 + $0x338] sm:$0xff]
  %v3174 = vld [vmem:[%s5 + $0x340] sm:$0xff]
  %v3175 = vld [vmem:[%s5 + $0x348] sm:$0xff]
  %v3176 = vld [vmem:[%s5 + $0x350] sm:$0xff]
  %v3177 = vld [vmem:[%s5 + $0x358] sm:$0xff]
  %v3178 = vld [vmem:[%s5 + $0x360] sm:$0xff]
  %v3179 = vld [vmem:[%s5 + $0x368] sm:$0xff]
  %v3180 = vld [vmem:[%s5 + $0x370] sm:$0xff]
  %v3181 = vld [vmem:[%s5 + $0x378] sm:$0xff]
  %v3182 = vld [vmem:[%s5 + $0x380] sm:$0xff]
  %v3183 = vld [vmem:[%s5 + $0x388] sm:$0xff]
  %v3184 = vld [vmem:[%s5 + $0x390] sm:$0xff]
  %v3185 = vld [vmem:[%s5 + $0x398] sm:$0xff]
  %v3186 = vld [vmem:[%s5 + $0x3a0] sm:$0xff]
  %v3187 = vld [vmem:[%s5 + $0x3a8] sm:$0xff]
  %v3188 = vld [vmem:[%s5 + $0x3b0] sm:$0xff]
  %v3189 = vld [vmem:[%s5 + $0x3b8] sm:$0xff]
  %v3190 = vld [vmem:[%s5 + $0x3c0] sm:$0xff]
  %v3191 = vld [vmem:[%s5 + $0x3c8] sm:$0xff]
  %v3192 = vld [vmem:[%s5 + $0x3d0] sm:$0xff]
  %v3193 = vld [vmem:[%s5 + $0x3d8] sm:$0xff]
  %v3194 = vld [vmem:[%s5 + $0x3e0] sm:$0xff]
  %v3195 = vld [vmem:[%s5 + $0x3e8] sm:$0xff]
  %v3196 = vld [vmem:[%s5 + $0x3f0] sm:$0xff]
  %v3197 = vld [vmem:[%s5 + $0x3f8] sm:$0xff]
  %v3198 = vld [vmem:[%s6] sm:$0x1]
  %v3200 = vlaneseq
  %v3201 = vshrl.u32 %v3200, 7
  %v3202 = vsub.s32 0, %v3201
  %v3203 = vrot.slane %v3198, %v3202
  %3205 = vmatprep.subr.mxu0 0.0
  %3206 = vmatpush1.msra.mxu0 %v3085
  %3207 = vmatprep.subr.mxu0 0.0
  %3208 = vmatpush1.msra.mxu0 %v3084
  %3209 = vmatprep.subr.mxu0 0.0
  %3210 = vmatpush1.msra.mxu0 %v3083
  %3211 = vmatprep.subr.mxu0 0.0
  %3212 = vmatpush1.msra.mxu0 %v3082
  %3213 = vmatprep.subr.mxu0 0.0
  %3214 = vmatpush1.msra.mxu0 %v3081
  %3215 = vmatprep.subr.mxu0 0.0
  %3216 = vmatpush1.msra.mxu0 %v3080
  %3217 = vmatprep.subr.mxu0 0.0
  %3218 = vmatpush1.msra.mxu0 %v3079
  %3219 = vmatprep.subr.mxu0 0.0
  %3220 = vmatpush1.msra.mxu0 %v3078
  %3221 = vmatprep.subr.mxu0 0.0
  %3222 = vmatpush1.msra.mxu0 %v3077
  %3223 = vmatprep.subr.mxu0 0.0
  %3224 = vmatpush1.msra.mxu0 %v3076
  %3225 = vmatprep.subr.mxu0 0.0
  %3226 = vmatpush1.msra.mxu0 %v3075
  %3227 = vmatprep.subr.mxu0 0.0
  %3228 = vmatpush1.msra.mxu0 %v3074
  %3229 = vmatprep.subr.mxu0 0.0
  %3230 = vmatpush1.msra.mxu0 %v3073
  %3231 = vmatprep.subr.mxu0 0.0
  %3232 = vmatpush1.msra.mxu0 %v3072
  %3233 = vmatprep.subr.mxu0 0.0
  %3234 = vmatpush1.msra.mxu0 %v3071
  %3235 = vmatprep.subr.mxu0 0.0
  %3236 = vmatpush1.msra.mxu0 %v3070
  %3237 = vmatprep.subr.mxu0 0.0
  %3238 = vmatpush2.msra.mxu0 %v3101
  %3239 = vmatprep.subr.mxu0 0.0
  %3240 = vmatpush2.msra.mxu0 %v3100
  %3241 = vmatprep.subr.mxu0 0.0
  %3242 = vmatpush2.msra.mxu0 %v3099
  %3243 = vmatprep.subr.mxu0 0.0
  %3244 = vmatpush2.msra.mxu0 %v3098
  %3245 = vmatprep.subr.mxu0 0.0
  %3246 = vmatpush2.msra.mxu0 %v3097
  %3247 = vmatprep.subr.mxu0 0.0
  %3248 = vmatpush2.msra.mxu0 %v3096
  %3249 = vmatprep.subr.mxu0 0.0
  %3250 = vmatpush2.msra.mxu0 %v3095
  %3251 = vmatprep.subr.mxu0 0.0
  %3252 = vmatpush2.msra.mxu0 %v3094
  %3253 = vmatprep.subr.mxu0 0.0
  %3254 = vmatpush2.msra.mxu0 %v3093
  %3255 = vmatprep.subr.mxu0 0.0
  %3256 = vmatpush2.msra.mxu0 %v3092
  %3257 = vmatprep.subr.mxu0 0.0
  %3258 = vmatpush2.msra.mxu0 %v3091
  %3259 = vmatprep.subr.mxu0 0.0
  %3260 = vmatpush2.msra.mxu0 %v3090
  %3261 = vmatprep.subr.mxu0 0.0
  %3262 = vmatpush2.msra.mxu0 %v3089
  %3263 = vmatprep.subr.mxu0 0.0
  %3264 = vmatpush2.msra.mxu0 %v3088
  %3265 = vmatprep.subr.mxu0 0.0
  %3266 = vmatpush2.msra.mxu0 %v3087
  %3267 = vmatprep.subr.mxu0 0.0
  %3268 = vmatpush2.msra.mxu0 %v3086
  %3269 = vmatprep.mubr.f32.mxu0 %v3063
  %3270 = vmatmul.mubr.f32.gmra.mxu0 %v3062
  %v3271 = vpop.f32.mrf.mxu0
  %v3272 = vadd.f32 %v3203, %v3271
  %v3273 = vpop.f32.mrf.mxu0
  %3274 = vdwg.mxu0
  %3275 = vmatprep.subr.mxu0 0.0
  %3276 = vmatpush1.msra.mxu0 %v3117
  %3277 = vmatprep.subr.mxu0 0.0
  %3278 = vmatpush1.msra.mxu0 %v3116
  %3279 = vmatprep.subr.mxu0 0.0
  %3280 = vmatpush1.msra.mxu0 %v3115
  %3281 = vmatprep.subr.mxu0 0.0
  %3282 = vmatpush1.msra.mxu0 %v3114
  %3283 = vmatprep.subr.mxu0 0.0
  %3284 = vmatpush1.msra.mxu0 %v3113
  %3285 = vmatprep.subr.mxu0 0.0
  %3286 = vmatpush1.msra.mxu0 %v3112
  %3287 = vmatprep.subr.mxu0 0.0
  %3288 = vmatpush1.msra.mxu0 %v3111
  %3289 = vmatprep.subr.mxu0 0.0
  %3290 = vmatpush1.msra.mxu0 %v3110
  %3291 = vmatprep.subr.mxu0 0.0
  %3292 = vmatpush1.msra.mxu0 %v3109
  %3293 = vmatprep.subr.mxu0 0.0
  %3294 = vmatpush1.msra.mxu0 %v3108
  %3295 = vmatprep.subr.mxu0 0.0
  %3296 = vmatpush1.msra.mxu0 %v3107
  %3297 = vmatprep.subr.mxu0 0.0
  %3298 = vmatpush1.msra.mxu0 %v3106
  %3299 = vmatprep.subr.mxu0 0.0
  %3300 = vmatpush1.msra.mxu0 %v3105
  %3301 = vmatprep.subr.mxu0 0.0
  %3302 = vmatpush1.msra.mxu0 %v3104
  %3303 = vmatprep.subr.mxu0 0.0
  %3304 = vmatpush1.msra.mxu0 %v3103
  %3305 = vmatprep.subr.mxu0 0.0
  %3306 = vmatpush1.msra.mxu0 %v3102
  %3307 = vmatprep.subr.mxu0 0.0
  %3308 = vmatpush2.msra.mxu0 %v3133
  %3309 = vmatprep.subr.mxu0 0.0
  %3310 = vmatpush2.msra.mxu0 %v3132
  %3311 = vmatprep.subr.mxu0 0.0
  %3312 = vmatpush2.msra.mxu0 %v3131
  %3313 = vmatprep.subr.mxu0 0.0
  %3314 = vmatpush2.msra.mxu0 %v3130
  %3315 = vmatprep.subr.mxu0 0.0
  %3316 = vmatpush2.msra.mxu0 %v3129
  %3317 = vmatprep.subr.mxu0 0.0
  %3318 = vmatpush2.msra.mxu0 %v3128
  %3319 = vmatprep.subr.mxu0 0.0
  %3320 = vmatpush2.msra.mxu0 %v3127
  %3321 = vmatprep.subr.mxu0 0.0
  %3322 = vmatpush2.msra.mxu0 %v3126
  %3323 = vmatprep.subr.mxu0 0.0
  %3324 = vmatpush2.msra.mxu0 %v3125
  %3325 = vmatprep.subr.mxu0 0.0
  %3326 = vmatpush2.msra.mxu0 %v3124
  %3327 = vmatprep.subr.mxu0 0.0
  %3328 = vmatpush2.msra.mxu0 %v3123
  %3329 = vmatprep.subr.mxu0 0.0
  %3330 = vmatpush2.msra.mxu0 %v3122
  %3331 = vmatprep.subr.mxu0 0.0
  %3332 = vmatpush2.msra.mxu0 %v3121
  %3333 = vmatprep.subr.mxu0 0.0
  %3334 = vmatpush2.msra.mxu0 %v3120
  %3335 = vmatprep.subr.mxu0 0.0
  %3336 = vmatpush2.msra.mxu0 %v3119
  %3337 = vmatprep.subr.mxu0 0.0
  %3338 = vmatpush2.msra.mxu0 %v3118
  %3339 = vmatprep.mubr.f32.mxu0 %v3065
  %3340 = vmatmul.mubr.f32.gmra.mxu0 %v3064
  %v3341 = vpop.f32.mrf.mxu0
  %v3342 = vadd.f32 %v3272, %v3341
  %v3343 = vpop.f32.mrf.mxu0
  %3344 = vdwg.mxu0
  %3345 = vmatprep.subr.mxu0 0.0
  %3346 = vmatpush1.msra.mxu0 %v3149
  %3347 = vmatprep.subr.mxu0 0.0
  %3348 = vmatpush1.msra.mxu0 %v3148
  %3349 = vmatprep.subr.mxu0 0.0
  %3350 = vmatpush1.msra.mxu0 %v3147
  %3351 = vmatprep.subr.mxu0 0.0
  %3352 = vmatpush1.msra.mxu0 %v3146
  %3353 = vmatprep.subr.mxu0 0.0
  %3354 = vmatpush1.msra.mxu0 %v3145
  %3355 = vmatprep.subr.mxu0 0.0
  %3356 = vmatpush1.msra.mxu0 %v3144
  %3357 = vmatprep.subr.mxu0 0.0
  %3358 = vmatpush1.msra.mxu0 %v3143
  %3359 = vmatprep.subr.mxu0 0.0
  %3360 = vmatpush1.msra.mxu0 %v3142
  %3361 = vmatprep.subr.mxu0 0.0
  %3362 = vmatpush1.msra.mxu0 %v3141
  %3363 = vmatprep.subr.mxu0 0.0
  %3364 = vmatpush1.msra.mxu0 %v3140
  %3365 = vmatprep.subr.mxu0 0.0
  %3366 = vmatpush1.msra.mxu0 %v3139
  %3367 = vmatprep.subr.mxu0 0.0
  %3368 = vmatpush1.msra.mxu0 %v3138
  %3369 = vmatprep.subr.mxu0 0.0
  %3370 = vmatpush1.msra.mxu0 %v3137
  %3371 = vmatprep.subr.mxu0 0.0
  %3372 = vmatpush1.msra.mxu0 %v3136
  %3373 = vmatprep.subr.mxu0 0.0
  %3374 = vmatpush1.msra.mxu0 %v3135
  %3375 = vmatprep.subr.mxu0 0.0
  %3376 = vmatpush1.msra.mxu0 %v3134
  %3377 = vmatprep.subr.mxu0 0.0
  %3378 = vmatpush2.msra.mxu0 %v3165
  %3379 = vmatprep.subr.mxu0 0.0
  %3380 = vmatpush2.msra.mxu0 %v3164
  %3381 = vmatprep.subr.mxu0 0.0
  %3382 = vmatpush2.msra.mxu0 %v3163
  %3383 = vmatprep.subr.mxu0 0.0
  %3384 = vmatpush2.msra.mxu0 %v3162
  %3385 = vmatprep.subr.mxu0 0.0
  %3386 = vmatpush2.msra.mxu0 %v3161
  %3387 = vmatprep.subr.mxu0 0.0
  %3388 = vmatpush2.msra.mxu0 %v3160
  %3389 = vmatprep.subr.mxu0 0.0
  %3390 = vmatpush2.msra.mxu0 %v3159
  %3391 = vmatprep.subr.mxu0 0.0
  %3392 = vmatpush2.msra.mxu0 %v3158
  %3393 = vmatprep.subr.mxu0 0.0
  %3394 = vmatpush2.msra.mxu0 %v3157
  %3395 = vmatprep.subr.mxu0 0.0
  %3396 = vmatpush2.msra.mxu0 %v3156
  %3397 = vmatprep.subr.mxu0 0.0
  %3398 = vmatpush2.msra.mxu0 %v3155
  %3399 = vmatprep.subr.mxu0 0.0
  %3400 = vmatpush2.msra.mxu0 %v3154
  %3401 = vmatprep.subr.mxu0 0.0
  %3402 = vmatpush2.msra.mxu0 %v3153
  %3403 = vmatprep.subr.mxu0 0.0
  %3404 = vmatpush2.msra.mxu0 %v3152
  %3405 = vmatprep.subr.mxu0 0.0
  %3406 = vmatpush2.msra.mxu0 %v3151
  %3407 = vmatprep.subr.mxu0 0.0
  %3408 = vmatpush2.msra.mxu0 %v3150
  %3409 = vmatprep.mubr.f32.mxu0 %v3067
  %3410 = vmatmul.mubr.f32.gmra.mxu0 %v3066
  %v3411 = vpop.f32.mrf.mxu0
  %v3412 = vadd.f32 %v3342, %v3411
  %v3413 = vpop.f32.mrf.mxu0
  %3414 = vdwg.mxu0
  %3415 = vmatprep.subr.mxu0 0.0
  %3416 = vmatpush1.msra.mxu0 %v3181
  %3417 = vmatprep.subr.mxu0 0.0
  %3418 = vmatpush1.msra.mxu0 %v3180
  %3419 = vmatprep.subr.mxu0 0.0
  %3420 = vmatpush1.msra.mxu0 %v3179
  %3421 = vmatprep.subr.mxu0 0.0
  %3422 = vmatpush1.msra.mxu0 %v3178
  %3423 = vmatprep.subr.mxu0 0.0
  %3424 = vmatpush1.msra.mxu0 %v3177
  %3425 = vmatprep.subr.mxu0 0.0
  %3426 = vmatpush1.msra.mxu0 %v3176
  %3427 = vmatprep.subr.mxu0 0.0
  %3428 = vmatpush1.msra.mxu0 %v3175
  %3429 = vmatprep.subr.mxu0 0.0
  %3430 = vmatpush1.msra.mxu0 %v3174
  %3431 = vmatprep.subr.mxu0 0.0
  %3432 = vmatpush1.msra.mxu0 %v3173
  %3433 = vmatprep.subr.mxu0 0.0
  %3434 = vmatpush1.msra.mxu0 %v3172
  %3435 = vmatprep.subr.mxu0 0.0
  %3436 = vmatpush1.msra.mxu0 %v3171
  %3437 = vmatprep.subr.mxu0 0.0
  %3438 = vmatpush1.msra.mxu0 %v3170
  %3439 = vmatprep.subr.mxu0 0.0
  %3440 = vmatpush1.msra.mxu0 %v3169
  %3441 = vmatprep.subr.mxu0 0.0
  %3442 = vmatpush1.msra.mxu0 %v3168
  %3443 = vmatprep.subr.mxu0 0.0
  %3444 = vmatpush1.msra.mxu0 %v3167
  %3445 = vmatprep.subr.mxu0 0.0
  %3446 = vmatpush1.msra.mxu0 %v3166
  %3447 = vmatprep.subr.mxu0 0.0
  %3448 = vmatpush2.msra.mxu0 %v3197
  %3449 = vmatprep.subr.mxu0 0.0
  %3450 = vmatpush2.msra.mxu0 %v3196
  %3451 = vmatprep.subr.mxu0 0.0
  %3452 = vmatpush2.msra.mxu0 %v3195
  %3453 = vmatprep.subr.mxu0 0.0
  %3454 = vmatpush2.msra.mxu0 %v3194
  %3455 = vmatprep.subr.mxu0 0.0
  %3456 = vmatpush2.msra.mxu0 %v3193
  %3457 = vmatprep.subr.mxu0 0.0
  %3458 = vmatpush2.msra.mxu0 %v3192
  %3459 = vmatprep.subr.mxu0 0.0
  %3460 = vmatpush2.msra.mxu0 %v3191
  %3461 = vmatprep.subr.mxu0 0.0
  %3462 = vmatpush2.msra.mxu0 %v3190
  %3463 = vmatprep.subr.mxu0 0.0
  %3464 = vmatpush2.msra.mxu0 %v3189
  %3465 = vmatprep.subr.mxu0 0.0
  %3466 = vmatpush2.msra.mxu0 %v3188
  %3467 = vmatprep.subr.mxu0 0.0
  %3468 = vmatpush2.msra.mxu0 %v3187
  %3469 = vmatprep.subr.mxu0 0.0
  %3470 = vmatpush2.msra.mxu0 %v3186
  %3471 = vmatprep.subr.mxu0 0.0
  %3472 = vmatpush2.msra.mxu0 %v3185
  %3473 = vmatprep.subr.mxu0 0.0
  %3474 = vmatpush2.msra.mxu0 %v3184
  %3475 = vmatprep.subr.mxu0 0.0
  %3476 = vmatpush2.msra.mxu0 %v3183
  %3477 = vmatprep.subr.mxu0 0.0
  %3478 = vmatpush2.msra.mxu0 %v3182
  %3479 = vmatprep.mubr.f32.mxu0 %v3069
  %3480 = vmatmul.mubr.f32.gmra.mxu0 %v3068
  %v3481 = vpop.f32.mrf.mxu0
  %v3482 = vadd.f32 %v3412, %v3481
  %v3483 = vpop.f32.mrf.mxu0
  %3484 = vdwg.mxu0
  %3485 = vst [vmem:[%s7] sm:$0xff] %v3482
  // Predicated region
  $region30: #{multiview_forward.1} parent=0 // pred_check
    _
  $region31: #{multiview_forward.1} parent=0 // pred_check_branch
    %3487 = sbr.rel (0) target = $region33
  $region32: #{multiview_forward.1} parent=0 // pred_region
    _
  $region33: #{multiview_forward.1} parent=0 // pred_fallthru
    _
  // Predicated region
  $region34: #{multiview_forward.1} parent=0 // pred_check
    _
  $region35: #{multiview_forward.1} parent=0 // pred_check_branch
    %3489 = sbr.rel (0) target = $region37
  $region36: #{multiview_forward.1} parent=0 // pred_region
    _
  $region37: #{multiview_forward.1} parent=0 // pred_fallthru
    _

</llo_original>
